<compile_context>
chip_gen: v7x
topology: tpu7x:2x2x1
jax: 0.10.0
libtpu: 0.0.40
codegen_flags: <defaults>
</compile_context>

<pallas_src>
import math
import functools

import jax
import jax.numpy as jnp
from jax.experimental import pallas as pl
from jax.experimental.pallas import tpu as pltpu


_LN_EPS = 1e-6


# ----------------------------- small helpers -------------------------------

def _round_up(x, m):
    return (x + m - 1) // m * m


def _pad_axis(a, axis, size):
    pad = size - a.shape[axis]
    if pad <= 0:
        return a
    widths = [(0, 0)] * a.ndim
    widths[axis] = (0, pad)
    return jnp.pad(a, widths)


@functools.lru_cache(maxsize=None)
def _vmem_limit_bytes():
    """Generation-aware scoped-VMEM limit (v7x only has 64 MiB per TC)."""
    default = 64 * 1024 * 1024
    try:
        info = pltpu.get_tpu_info()
        cap = int(getattr(info, "vmem_capacity_bytes", default))
    except Exception:
        cap = default
    return max(32 * 1024 * 1024, min(cap * 3 // 4, 96 * 1024 * 1024))


def _pick_row_tile(rows, cap=512):
    if rows <= cap:
        return rows
    for t in (512, 256, 128):
        if t <= cap and rows % t == 0:
            return t
    return rows


def _pick_col_tile(cols, cap=512):
    if cols <= cap:
        return cols
    for t in (512, 256, 128):
        if cols % t == 0:
            return t
    return cols


def _pick_k_tile(k):
    if k <= 1024:
        return k, 1
    for t in (512, 256, 128):
        if k % t == 0:
            return t, k // t
    return k, 1


# ------------------------- fused linear (MXU) kernel ------------------------

def _fused_linear_kernel(*refs, nk, act, has_mod, has_gate, has_res, eps):
    it = iter(refs)
    x_ref = next(it)
    w_ref = next(it)
    b_ref = next(it)
    sh_ref = next(it) if has_mod else None
    sc_ref = next(it) if has_mod else None
    g_ref = next(it) if has_gate else None
    r_ref = next(it) if has_res else None
    o_ref = next(it)
    acc_ref = next(it) if nk > 1 else None
    xm_ref = next(it) if has_mod else None

    j = pl.program_id(2)
    k = pl.program_id(3)

    if has_mod:
        # adaLN prologue: compute once per row tile (j == 0), reuse for all
        # output column tiles from bf16 VMEM scratch.
        @pl.when(j == 0)
        def _():
            xv = x_ref[0].astype(jnp.float32)                 # [tm, K]
            mu = jnp.mean(xv, axis=-1, keepdims=True)
            xc = xv - mu
            var = jnp.mean(xc * xc, axis=-1, keepdims=True)
            xn = xc * jax.lax.rsqrt(var + eps)
            xmv = (xn * (1.0 + sc_ref[0].astype(jnp.float32))
                   + sh_ref[0].astype(jnp.float32))
            xm_ref[...] = xmv.astype(xm_ref.dtype)

        x = xm_ref[...]                                       # [tm, K] bf16
    else:
        x = x_ref[0]                                          # [tm, tk] bf16

    def epilogue(y):
        y = y + b_ref[...].astype(jnp.float32)
        if act == "silu":
            y = y * jax.nn.sigmoid(y)
        elif act == "gelu":
            # TODO(synk): official DiT uses tanh-approx GELU; switch to exact
            # (approximate=False) if the reference DiT uses nn.GELU default.
            y = jax.nn.gelu(y, approximate=True)
        if has_gate:
            y = y * g_ref[0].astype(jnp.float32)
        if has_res:
            y = y + r_ref[0].astype(jnp.float32)
        return y

    if nk == 1:
        y = jnp.dot(x, w_ref[...], preferred_element_type=jnp.float32)
        o_ref[0] = epilogue(y).astype(o_ref.dtype)
    else:
        @pl.when(k == 0)
        def _():
            acc_ref[...] = jnp.zeros_like(acc_ref)

        acc_ref[...] += jnp.dot(x, w_ref[...], preferred_element_type=jnp.float32)

        @pl.when(k == nk - 1)
        def _():
            o_ref[0] = epilogue(acc_ref[...]).astype(o_ref.dtype)


def fused_linear(x, w, b, *, act="none", shift=None, scale=None, gate=None,
                 res=None, out_dtype=jnp.bfloat16, eps=_LN_EPS):
    """y = [res +] [gate *] act( adaLN?(x) @ w + b ).

    x: [B,T,K] or [M,K]; w: [K,Dout]; b: [Dout];
    shift/scale: [B,1,K]; gate: [B,1,Dout]; res: [B or 1, T, Dout].
    """
    squeeze = (x.ndim == 2)
    if squeeze:
        x = x[None]
    B, Tx, K = x.shape
    Dout = w.shape[1]

    has_mod = shift is not None
    has_gate = gate is not None
    has_res = res is not None

    x = x.astype(jnp.bfloat16)
    w = w.astype(jnp.bfloat16)
    b2 = b.reshape(1, Dout).astype(jnp.float32)

    tm = _pick_row_tile(Tx)
    tn = _pick_col_tile(Dout)
    if has_mod:
        tk, nk = K, 1          # LayerNorm needs the full feature dim per block
    else:
        tk, nk = _pick_k_tile(K)

    grid = (B, Tx // tm, Dout // tn, nk)

    in_specs = [
        pl.BlockSpec((1, tm, tk), lambda bb, i, j, kk: (bb, i, kk)),
        pl.BlockSpec((tk, tn), lambda bb, i, j, kk: (kk, j)),
        pl.BlockSpec((1, tn), lambda bb, i, j, kk: (0, j)),
    ]
    inputs = [x, w, b2]
    if has_mod:
        in_specs.append(pl.BlockSpec((1, 1, tk), lambda bb, i, j, kk: (bb, 0, 0)))
        in_specs.append(pl.BlockSpec((1, 1, tk), lambda bb, i, j, kk: (bb, 0, 0)))
        inputs += [shift, scale]
    if has_gate:
        in_specs.append(pl.BlockSpec((1, 1, tn), lambda bb, i, j, kk: (bb, 0, j)))
        inputs.append(gate)
    if has_res:
        if res.shape[0] == 1:
            in_specs.append(pl.BlockSpec((1, tm, tn), lambda bb, i, j, kk: (0, i, j)))
        else:
            in_specs.append(pl.BlockSpec((1, tm, tn), lambda bb, i, j, kk: (bb, i, j)))
        inputs.append(res)

    scratch_shapes = []
    if nk > 1:
        scratch_shapes.append(pltpu.VMEM((tm, tn), jnp.float32))
    if has_mod:
        scratch_shapes.append(pltpu.VMEM((tm, tk), jnp.bfloat16))

    # When the adaLN scratch is reused across column tiles, the j axis must run
    # sequentially on one core.
    semantics = ("parallel", "parallel",
                 "arbitrary" if has_mod else "parallel", "arbitrary")

    kernel = functools.partial(_fused_linear_kernel, nk=nk, act=act,
                               has_mod=has_mod, has_gate=has_gate,
                               has_res=has_res, eps=eps)
    out = pl.pallas_call(
        kernel,
        out_shape=jax.ShapeDtypeStruct((B, Tx, Dout), out_dtype),
        grid=grid,
        in_specs=in_specs,
        out_specs=pl.BlockSpec((1, tm, tn), lambda bb, i, j, kk: (bb, i, j)),
        scratch_shapes=scratch_shapes,
        compiler_params=pltpu.CompilerParams(
            dimension_semantics=semantics,
            vmem_limit_bytes=_vmem_limit_bytes()),
    )(*inputs)
    if squeeze:
        out = out[0]
    return out


# -------------------- fused adaLN + qkv projection kernel -------------------

def _qkv_kernel(x_ref, sh_ref, sc_ref, w_ref, b_ref, q_ref, k_ref, v_ref,
                xm_ref, *, dh, q_scale, eps):
    hh = pl.program_id(2)

    @pl.when(hh == 0)
    def _():
        xv = x_ref[0].astype(jnp.float32)                     # [tq, D]
        mu = jnp.mean(xv, axis=-1, keepdims=True)
        xc = xv - mu
        var = jnp.mean(xc * xc, axis=-1, keepdims=True)
        xn = xc * jax.lax.rsqrt(var + eps)
        xmv = (xn * (1.0 + sc_ref[0].astype(jnp.float32))
               + sh_ref[0].astype(jnp.float32))
        xm_ref[...] = xmv.astype(xm_ref.dtype)

    xm = xm_ref[...]                                          # [tq, D] bf16
    # One fused [D, 3*dh] matmul per head (3x wider MXU output than 3 dots).
    y = (jnp.dot(xm, w_ref[0], preferred_element_type=jnp.float32)
         + b_ref[0].astype(jnp.float32))                      # [tq, 3*dh]
    q_ref[0, 0] = (y[:, :dh] * q_scale).astype(q_ref.dtype)   # softmax scale folded in
    k_ref[0, 0] = y[:, dh:2 * dh].astype(k_ref.dtype)
    v_ref[0, 0] = y[:, 2 * dh:].astype(v_ref.dtype)


def qkv_projection(h, shift, scale, w_qkv, b_qkv, *, q_scale, eps=_LN_EPS):
    """h:[N,T,D]; w_qkv:[H,D,3*dh]; b_qkv:[H,1,3*dh] -> q,k,v each [N,H,T,dh]."""
    n, tp, d = h.shape
    nh = w_qkv.shape[0]
    dh = w_qkv.shape[2] // 3
    tq = _pick_row_tile(tp)
    grid = (n, tp // tq, nh)
    out_sh = jax.ShapeDtypeStruct((n, nh, tp, dh), jnp.bfloat16)
    act_spec = pl.BlockSpec((1, tq, d), lambda b, i, hh: (b, i, 0))
    mod_spec = pl.BlockSpec((1, 1, d), lambda b, i, hh: (b, 0, 0))
    w_spec = pl.BlockSpec((1, d, 3 * dh), lambda b, i, hh: (hh, 0, 0))
    b_spec = pl.BlockSpec((1, 1, 3 * dh), lambda b, i, hh: (hh, 0, 0))
    o_spec = pl.BlockSpec((1, 1, tq, dh), lambda b, i, hh: (b, hh, i, 0))
    return pl.pallas_call(
        functools.partial(_qkv_kernel, dh=dh, q_scale=q_scale, eps=eps),
        out_shape=(out_sh, out_sh, out_sh),
        grid=grid,
        in_specs=[act_spec, mod_spec, mod_spec, w_spec, b_spec],
        out_specs=(o_spec, o_spec, o_spec),
        scratch_shapes=[pltpu.VMEM((tq, d), jnp.bfloat16)],
        compiler_params=pltpu.CompilerParams(
            dimension_semantics=("parallel", "parallel", "arbitrary"),
            vmem_limit_bytes=_vmem_limit_bytes()),
    )(h, shift, scale, w_qkv, b_qkv)


# ----------------------- flash attention (online softmax) -------------------

def _flash_kernel(q_ref, k_ref, v_ref, msk_ref, o_ref, m_sc, l_sc, acc_sc):
    j = pl.program_id(2)

    @pl.when(j == 0)
    def _():
        m_sc[...] = jnp.full(m_sc.shape, -jnp.inf, jnp.float32)
        l_sc[...] = jnp.zeros(l_sc.shape, jnp.float32)
        acc_sc[...] = jnp.zeros(acc_sc.shape, jnp.float32)

    q = q_ref[0]                                              # [H, tq, dh] (pre-scaled)
    k = k_ref[0]                                              # [H, tkv, dh]
    v = v_ref[0]
    s = jnp.einsum('hqd,hkd->hqk', q, k,
                   preferred_element_type=jnp.float32)        # [H, tq, tkv]
    s = jnp.where(msk_ref[...] > 0.0, s, -1e30)               # key-only mask
    m_new = jnp.maximum(m_sc[...], jnp.max(s, axis=-1, keepdims=True))
    alpha = jnp.exp(m_sc[...] - m_new)
    p = jnp.exp(s - m_new)
    l_sc[...] = alpha * l_sc[...] + jnp.sum(p, axis=-1, keepdims=True)
    acc_sc[...] = alpha * acc_sc[...] + jnp.einsum(
        'hqk,hkd->hqd', p.astype(v.dtype), v, preferred_element_type=jnp.float32)
    m_sc[...] = m_new

    @pl.when(j == pl.num_programs(2) - 1)
    def _():
        n_heads = acc_sc.shape[0]
        dh = acc_sc.shape[2]
        # Write directly into concat-heads [tq, H*dh] layout (one column slice
        # per head), so the output projection is a plain D-deep matmul.
        for hh in range(n_heads):
            o_ref[0, :, hh * dh:(hh + 1) * dh] = (
                acc_sc[hh] / l_sc[hh]).astype(o_ref.dtype)


def _pick_kv_tile(tp, nh, dh):
    # keep each double-buffered K / V block a few MiB
    budget = 4 * 1024 * 1024
    max_rows = max(128, budget // max(1, nh * dh * 2))
    if tp <= max_rows:
        return tp
    for t in (512, 256, 128):
        if t <= max_rows and tp % t == 0:
            return t
    return tp


def flash_attention(q, k, v, mask_f):
    """q,k,v: [N,H,T,dh] bf16 (q pre-scaled); mask_f: [N,1,T] f32 (1 = valid key).
    Returns [N, T, H*dh] bf16 (heads concatenated)."""
    n, nh, tp, dh = q.shape
    tq = tp if tp <= 256 else (256 if tp % 256 == 0 else 128)
    tkv = _pick_kv_tile(tp, nh, dh)
    grid = (n, tp // tq, tp // tkv)
    return pl.pallas_call(
        _flash_kernel,
        out_shape=jax.ShapeDtypeStruct((n, tp, nh * dh), jnp.bfloat16),
        grid=grid,
        in_specs=[
            pl.BlockSpec((1, nh, tq, dh), lambda b, i, j: (b, 0, i, 0)),
            pl.BlockSpec((1, nh, tkv, dh), lambda b, i, j: (b, 0, j, 0)),
            pl.BlockSpec((1, nh, tkv, dh), lambda b, i, j: (b, 0, j, 0)),
            pl.BlockSpec((1, 1, tkv), lambda b, i, j: (b, 0, j)),
        ],
        out_specs=pl.BlockSpec((1, tq, nh * dh), lambda b, i, j: (b, i, 0)),
        scratch_shapes=[pltpu.VMEM((nh, tq, 1), jnp.float32),
                        pltpu.VMEM((nh, tq, 1), jnp.float32),
                        pltpu.VMEM((nh, tq, dh), jnp.float32)],
        compiler_params=pltpu.CompilerParams(
            dimension_semantics=("parallel", "parallel", "arbitrary"),
            vmem_limit_bytes=_vmem_limit_bytes()),
    )(q, k, v, mask_f)


# ------------- final layer: adaLN + folded [D,1] projection (VPU) -----------

def _final_kernel(x_ref, sh_ref, sc_ref, w_ref, b_ref, o_ref, *, eps):
    x = x_ref[0].astype(jnp.float32)                          # [tm, D]
    mu = jnp.mean(x, axis=-1, keepdims=True)
    xc = x - mu
    var = jnp.mean(xc * xc, axis=-1, keepdims=True)
    xn = xc * jax.lax.rsqrt(var + eps)
    xm = (xn * (1.0 + sc_ref[0].astype(jnp.float32))
          + sh_ref[0].astype(jnp.float32))
    # VPU multiply + row reduction instead of a Dout=1 MXU matmul.
    y = jnp.sum(xm * w_ref[...].astype(jnp.float32), axis=-1, keepdims=True)
    o_ref[0] = (y + b_ref[0, 0]).astype(o_ref.dtype)


def final_output(h, shift, scale, w_fo, b_fo, *, eps=_LN_EPS):
    n, tp, d = h.shape
    tm = _pick_row_tile(tp)
    w_row = w_fo.reshape(1, d).astype(jnp.float32)
    b_sc = b_fo.reshape(1, 1).astype(jnp.float32)
    grid = (n, tp // tm)
    return pl.pallas_call(
        functools.partial(_final_kernel, eps=eps),
        out_shape=jax.ShapeDtypeStruct((n, tp, 1), jnp.float32),
        grid=grid,
        in_specs=[
            pl.BlockSpec((1, tm, d), lambda bb, i: (bb, i, 0)),
            pl.BlockSpec((1, 1, d), lambda bb, i: (bb, 0, 0)),
            pl.BlockSpec((1, 1, d), lambda bb, i: (bb, 0, 0)),
            pl.BlockSpec((1, d), lambda bb, i: (0, 0)),
            pl.BlockSpec((1, 1), lambda bb, i: (0, 0)),
        ],
        out_specs=pl.BlockSpec((1, tm, 1), lambda bb, i: (bb, i, 0)),
        compiler_params=pltpu.CompilerParams(
            dimension_semantics=("parallel", "parallel"),
            vmem_limit_bytes=_vmem_limit_bytes()),
    )(h, shift, scale, w_row, b_sc)


# ----------------------------- parameters -----------------------------------

def init_params(key, n_layer, n_head, d_hidden, d_cond):
    dh = d_hidden // n_head
    keys = list(jax.random.split(key, 8 + 4 * n_layer))
    ki = iter(keys)

    def dense(din, dout, dtype=jnp.bfloat16):
        w = (jax.random.normal(next(ki), (din, dout), jnp.float32) * 0.02).astype(dtype)
        return {"w": w, "b": jnp.zeros((dout,), jnp.float32)}

    def rnd(shape, dtype=jnp.bfloat16):
        return (jax.random.normal(next(ki), shape, jnp.float32) * 0.02).astype(dtype)

    params = {
        "input_linear": dense(1 + d_cond, d_hidden),
        "time_mlp1": dense(d_hidden, d_hidden),
        "time_mlp2": dense(d_hidden, d_hidden),
        # All per-block adaLN-modulation linears + the final adaLN linear,
        # packed column-wise into one weight: [blk0 6D | ... | final 2D].
        "ada_all": dense(d_hidden, (6 * n_layer + 2) * d_hidden),
        "final_linear": dense(d_hidden, d_hidden, jnp.float32),
        "output_linear": dense(d_hidden, 1, jnp.float32),
        "blocks": [],
    }
    for _ in range(n_layer):
        params["blocks"].append({
            # fused per-head qkv weights: [H, D, 3*dh]
            "w_qkv": rnd((n_head, d_hidden, 3 * dh)),
            "b_qkv": jnp.zeros((n_head, 1, 3 * dh), jnp.float32),
            # output projection stored as a plain [D, D] weight (concat heads)
            "wp": rnd((d_hidden, d_hidden)),
            "bp": jnp.zeros((d_hidden,), jnp.float32),
            "mlp1": dense(d_hidden, 4 * d_hidden),
            "mlp2": dense(4 * d_hidden, d_hidden),
        })
    return params


# ----------------------------- forward pass ---------------------------------

def sinusoidal_embedding(pos, dim):
    half = dim // 2
    freqs = jnp.exp(-math.log(10000.0) * jnp.arange(half, dtype=jnp.float32) / half)
    args = pos.astype(jnp.float32)[..., None] * freqs
    return jnp.concatenate([jnp.sin(args), jnp.cos(args)], axis=-1)


def dit_predictor_forward(params, x, w, t, mask, n_head):
    """
    x:    [N, T, 1]       float32
    w:    [N, T, D_cond]  float32
    t:    [N]             float32
    mask: [N, T]          bool (True = valid)
    returns y: [N, T, 1]  float32
    """
    n, tt, _ = x.shape
    d = params["input_linear"]["w"].shape[1]
    n_layer = len(params["blocks"])
    assert d % n_head == 0
    dh = d // n_head

    # Pad the time axis so row tiles are (8,128)-friendly; padded keys are
    # masked out and padded rows are sliced off at the end.
    tp = _round_up(tt, 8) if tt <= 128 else _round_up(tt, 128)
    xp = _pad_axis(x, 1, tp)
    w_pad = _pad_axis(w, 1, tp)
    maskp = _pad_axis(mask, 1, tp)                            # pads with False
    mask_f = maskp.astype(jnp.float32).reshape(n, 1, tp)      # [N,1,Tp] key mask

    pos = sinusoidal_embedding(jnp.arange(tp, dtype=jnp.float32).reshape(1, tp),
                               d).astype(jnp.bfloat16)        # [1, Tp, D]

    # input projection, with the DiT positional-embedding add fused in.
    xin = jnp.concatenate([xp, w_pad], axis=-1)               # [N, Tp, 1+Dcond]
    h = fused_linear(xin, params["input_linear"]["w"], params["input_linear"]["b"],
                     res=pos)                                 # [N, Tp, D] bf16

    # --- time conditioning (tiny GEMV-like matmuls) ---
    temb = sinusoidal_embedding(t, d)                         # [N, D]
    c = fused_linear(temb, params["time_mlp1"]["w"], params["time_mlp1"]["b"],
                     act="silu")
    c_silu = fused_linear(c, params["time_mlp2"]["w"], params["time_mlp2"]["b"],
                          act="silu")                         # SiLU(time_mlp2(.))
    # one matmul for ALL adaLN modulations (all blocks + final layer)
    mod_all = fused_linear(c_silu, params["ada_all"]["w"], params["ada_all"]["b"])
    mod_all = mod_all.reshape(n, 1, -1)                       # [N, 1, (6L+2)D]

    def mod_slice(off):
        return mod_all[:, :, off:off + d]

    q_scale = 1.0 / math.sqrt(dh)

    # --- DiT blocks (adaLN-Zero) ---
    for l, blk in enumerate(params["blocks"]):
        base = l * 6 * d
        sh_a, sc_a, g_a = mod_slice(base), mod_slice(base + d), mod_slice(base + 2 * d)
        sh_m, sc_m, g_m = mod_slice(base + 3 * d), mod_slice(base + 4 * d), mod_slice(base + 5 * d)

        # attention: adaLN fused into qkv, all-head flash attention,
        # gated residual fused into the output-projection epilogue.
        q, k, v = qkv_projection(h, sh_a, sc_a, blk["w_qkv"], blk["b_qkv"],
                                 q_scale=q_scale)
        a = flash_attention(q, k, v, mask_f)                  # [N, Tp, D]
        h = fused_linear(a, blk["wp"], blk["bp"], gate=g_a, res=h)

        # MLP: adaLN fused into mlp1, gated residual fused into mlp2
        f = fused_linear(h, blk["mlp1"]["w"], blk["mlp1"]["b"], act="gelu",
                         shift=sh_m, scale=sc_m)
        h = fused_linear(f, blk["mlp2"]["w"], blk["mlp2"]["b"], gate=g_m, res=h)
        # TODO(synk): dropout omitted (inference semantics).

    # --- final modulated layer + output projection (algebraically folded) ---
    # TODO(synk): folding is valid because the reconstructed DiT final layer is
    # modulate(LN(x)) -> Linear with no nonlinearity before output_linear.
    base = n_layer * 6 * d
    sh_f, sc_f = mod_slice(base), mod_slice(base + d)
    w_fo = params["final_linear"]["w"] @ params["output_linear"]["w"]     # [D, 1]
    b_fo = (params["final_linear"]["b"] @ params["output_linear"]["w"]
            + params["output_linear"]["b"])                               # [1]
    y = final_output(h, sh_f, sc_f, w_fo, b_fo)                           # [N, Tp, 1]
    return y[:, :tt, :]


# ----------------------------- demo / smoke test ----------------------------

if __name__ == "__main__":
    N_layer, N_head, D_hidden, D_cond, P_dropout = 2, 2, 32, 4, 0.1
    N, T = 2, 8

    key = jax.random.PRNGKey(0)
    kp, kx, kw, kt = jax.random.split(key, 4)

    params = init_params(kp, N_layer, N_head, D_hidden, D_cond)

    x = jax.random.normal(kx, (N, T, 1), jnp.float32)
    w = jax.random.normal(kw, (N, T, D_cond), jnp.float32)
    t = jax.random.uniform(kt, (N,), jnp.float32)
    mask = jnp.ones((N, T), dtype=bool).at[1, T - 2:].set(False)

    fwd = jax.jit(functools.partial(dit_predictor_forward, n_head=N_head))
    y = fwd(params, x, w, t, mask)
    jax.block_until_ready(y)
    assert y.shape == (N, T, 1), y.shape
    assert bool(jnp.all(jnp.isfinite(y)))
    print("KERNEL_OK")
</pallas_src>

<mosaic_0001>
module attributes {stable_mosaic.version = 11 : i64} {
  func.func @_fused_linear_kernel(%arg0: i32, %arg1: i32, %arg2: i32, %arg3: i32, %arg4: memref<1x2x32xbf16, #tpu.memory_space<vmem>>, %arg5: memref<32x32xbf16, #tpu.memory_space<vmem>>, %arg6: memref<1x32xf32, #tpu.memory_space<vmem>>, %arg7: memref<1x2x32xbf16, #tpu.memory_space<vmem>>) attributes {dimension_semantics = [#tpu.dimension_semantics<parallel>, #tpu.dimension_semantics<parallel>, #tpu.dimension_semantics<parallel>, #tpu.dimension_semantics<arbitrary>], iteration_bounds = array<i64: 1, 1, 1, 1>, scalar_prefetch = 0 : i64, scratch_operands = 0 : i64, tpu.core_type = #tpu.core_type<tc>, window_params = [{transform_indices = @transform_0, window_bounds = array<i64: 1, 2, 32>}, {transform_indices = @transform_1, window_bounds = array<i64: 32, 32>}, {transform_indices = @transform_2, window_bounds = array<i64: 1, 32>}, {transform_indices = @transform_3, window_bounds = array<i64: 1, 2, 32>}]} {
    %c0 = arith.constant 0 : index
    %c0_0 = arith.constant 0 : index
    %c0_1 = arith.constant 0 : index
    %0 = vector.load %arg4[%c0, %c0_0, %c0_1] : memref<1x2x32xbf16, #tpu.memory_space<vmem>>, vector<1x2x32xbf16>
    %1 = vector.shape_cast %0 : vector<1x2x32xbf16> to vector<2x32xbf16>
    %c0_2 = arith.constant 0 : index
    %c0_3 = arith.constant 0 : index
    %2 = vector.load %arg5[%c0_2, %c0_3] : memref<32x32xbf16, #tpu.memory_space<vmem>>, vector<32x32xbf16>
    %cst = arith.constant dense<0.000000e+00> : vector<2x32xf32>
    %3 = tpu.matmul %1, %2, %cst {dimension_numbers = #tpu.dot_dimension_numbers<[1], [0], [0], [1], [0, 0, 1, 1], [], []>} : vector<2x32xbf16>, vector<32x32xbf16>, vector<2x32xf32> -> vector<2x32xf32>
    %c0_4 = arith.constant 0 : index
    %c0_5 = arith.constant 0 : index
    %4 = vector.load %arg6[%c0_4, %c0_5] : memref<1x32xf32, #tpu.memory_space<vmem>>, vector<1x32xf32>
    %5 = vector.broadcast %4 : vector<1x32xf32> to vector<2x32xf32>
    %6 = arith.addf %3, %5 : vector<2x32xf32>
    %7 = arith.negf %6 : vector<2x32xf32>
    %8 = math.exp %7 : vector<2x32xf32>
    %cst_6 = arith.constant 1.000000e+00 : f32
    %9 = vector.broadcast %cst_6 : f32 to vector<2x32xf32>
    %10 = arith.addf %9, %8 : vector<2x32xf32>
    %11 = arith.divf %9, %10 : vector<2x32xf32>
    %12 = arith.mulf %6, %11 : vector<2x32xf32>
    %13 = arith.truncf %12 : vector<2x32xf32> to vector<2x32xbf16>
    %c0_7 = arith.constant 0 : index
    %c0_8 = arith.constant 0 : index
    %c0_9 = arith.constant 0 : index
    %14 = vector.load %arg7[%c0_7, %c0_8, %c0_9] : memref<1x2x32xbf16, #tpu.memory_space<vmem>>, vector<1x2x32xbf16>
    %15 = vector.shape_cast %14 : vector<1x2x32xbf16> to vector<2x32xbf16>
    %16 = vector.shape_cast %13 : vector<2x32xbf16> to vector<1x2x32xbf16>
    tpu.vector_store %arg7[%c0_7, %c0_8, %c0_9], %16 {strides = array<i32>} : memref<1x2x32xbf16, #tpu.memory_space<vmem>>, vector<1x2x32xbf16>,
    return
  }
  func.func @transform_0(%arg0: i32, %arg1: i32, %arg2: i32, %arg3: i32) -> (i32, i32, i32) {
    %c0_i32 = arith.constant 0 : i32
    return %arg0, %arg1, %arg3 : i32, i32, i32
  }
  func.func @transform_1(%arg0: i32, %arg1: i32, %arg2: i32, %arg3: i32) -> (i32, i32) {
    %c0_i32 = arith.constant 0 : i32
    return %arg3, %arg2 : i32, i32
  }
  func.func @transform_2(%arg0: i32, %arg1: i32, %arg2: i32, %arg3: i32) -> (i32, i32) {
    %c0_i32 = arith.constant 0 : i32
    %c0_i32_0 = arith.constant 0 : i32
    return %c0_i32, %arg2 : i32, i32
  }
  func.func @transform_3(%arg0: i32, %arg1: i32, %arg2: i32, %arg3: i32) -> (i32, i32, i32) {
    %c0_i32 = arith.constant 0 : i32
    return %arg0, %arg1, %arg2 : i32, i32, i32
  }
}

module attributes {stable_mosaic.version = 11 : i64} {
  func.func @_fused_linear_kernel(%arg0: i32, %arg1: i32, %arg2: i32, %arg3: i32, %arg4: memref<1x2x32xbf16, #tpu.memory_space<vmem>>, %arg5: memref<32x448xbf16, #tpu.memory_space<vmem>>, %arg6: memref<1x448xf32, #tpu.memory_space<vmem>>, %arg7: memref<1x2x448xbf16, #tpu.memory_space<vmem>>) attributes {dimension_semantics = [#tpu.dimension_semantics<parallel>, #tpu.dimension_semantics<parallel>, #tpu.dimension_semantics<parallel>, #tpu.dimension_semantics<arbitrary>], iteration_bounds = array<i64: 1, 1, 1, 1>, scalar_prefetch = 0 : i64, scratch_operands = 0 : i64, tpu.core_type = #tpu.core_type<tc>, window_params = [{transform_indices = @transform_0, window_bounds = array<i64: 1, 2, 32>}, {transform_indices = @transform_1, window_bounds = array<i64: 32, 448>}, {transform_indices = @transform_2, window_bounds = array<i64: 1, 448>}, {transform_indices = @transform_3, window_bounds = array<i64: 1, 2, 448>}]} {
    %c0 = arith.constant 0 : index
    %c0_0 = arith.constant 0 : index
    %c0_1 = arith.constant 0 : index
    %0 = vector.load %arg4[%c0, %c0_0, %c0_1] : memref<1x2x32xbf16, #tpu.memory_space<vmem>>, vector<1x2x32xbf16>
    %1 = vector.shape_cast %0 : vector<1x2x32xbf16> to vector<2x32xbf16>
    %c0_2 = arith.constant 0 : index
    %c0_3 = arith.constant 0 : index
    %2 = vector.load %arg5[%c0_2, %c0_3] : memref<32x448xbf16, #tpu.memory_space<vmem>>, vector<32x448xbf16>
    %cst = arith.constant dense<0.000000e+00> : vector<2x448xf32>
    %3 = tpu.matmul %1, %2, %cst {dimension_numbers = #tpu.dot_dimension_numbers<[1], [0], [0], [1], [0, 0, 1, 1], [], []>} : vector<2x32xbf16>, vector<32x448xbf16>, vector<2x448xf32> -> vector<2x448xf32>
    %c0_4 = arith.constant 0 : index
    %c0_5 = arith.constant 0 : index
    %4 = vector.load %arg6[%c0_4, %c0_5] : memref<1x448xf32, #tpu.memory_space<vmem>>, vector<1x448xf32>
    %5 = vector.broadcast %4 : vector<1x448xf32> to vector<2x448xf32>
    %6 = arith.addf %3, %5 : vector<2x448xf32>
    %7 = arith.truncf %6 : vector<2x448xf32> to vector<2x448xbf16>
    %c0_6 = arith.constant 0 : index
    %c0_7 = arith.constant 0 : index
    %c0_8 = arith.constant 0 : index
    %8 = vector.load %arg7[%c0_6, %c0_7, %c0_8] : memref<1x2x448xbf16, #tpu.memory_space<vmem>>, vector<1x2x448xbf16>
    %9 = vector.shape_cast %8 : vector<1x2x448xbf16> to vector<2x448xbf16>
    %10 = vector.shape_cast %7 : vector<2x448xbf16> to vector<1x2x448xbf16>
    tpu.vector_store %arg7[%c0_6, %c0_7, %c0_8], %10 {strides = array<i32>} : memref<1x2x448xbf16, #tpu.memory_space<vmem>>, vector<1x2x448xbf16>,
    return
  }
  func.func @transform_0(%arg0: i32, %arg1: i32, %arg2: i32, %arg3: i32) -> (i32, i32, i32) {
    %c0_i32 = arith.constant 0 : i32
    return %arg0, %arg1, %arg3 : i32, i32, i32
  }
  func.func @transform_1(%arg0: i32, %arg1: i32, %arg2: i32, %arg3: i32) -> (i32, i32) {
    %c0_i32 = arith.constant 0 : i32
    return %arg3, %arg2 : i32, i32
  }
  func.func @transform_2(%arg0: i32, %arg1: i32, %arg2: i32, %arg3: i32) -> (i32, i32) {
    %c0_i32 = arith.constant 0 : i32
    %c0_i32_0 = arith.constant 0 : i32
    return %c0_i32, %arg2 : i32, i32
  }
  func.func @transform_3(%arg0: i32, %arg1: i32, %arg2: i32, %arg3: i32) -> (i32, i32, i32) {
    %c0_i32 = arith.constant 0 : i32
    return %arg0, %arg1, %arg2 : i32, i32, i32
  }
}

module attributes {stable_mosaic.version = 11 : i64} {
  func.func @_fused_linear_kernel(%arg0: i32, %arg1: i32, %arg2: i32, %arg3: i32, %arg4: memref<1x8x5xbf16, #tpu.memory_space<vmem>>, %arg5: memref<5x32xbf16, #tpu.memory_space<vmem>>, %arg6: memref<1x32xf32, #tpu.memory_space<vmem>>, %arg7: memref<1x8x32xbf16, #tpu.memory_space<vmem>>, %arg8: memref<1x8x32xbf16, #tpu.memory_space<vmem>>) attributes {dimension_semantics = [#tpu.dimension_semantics<parallel>, #tpu.dimension_semantics<parallel>, #tpu.dimension_semantics<parallel>, #tpu.dimension_semantics<arbitrary>], iteration_bounds = array<i64: 2, 1, 1, 1>, scalar_prefetch = 0 : i64, scratch_operands = 0 : i64, tpu.core_type = #tpu.core_type<tc>, window_params = [{transform_indices = @transform_0, window_bounds = array<i64: 1, 8, 5>}, {transform_indices = @transform_1, window_bounds = array<i64: 5, 32>}, {transform_indices = @transform_2, window_bounds = array<i64: 1, 32>}, {transform_indices = @transform_3, window_bounds = array<i64: 1, 8, 32>}, {transform_indices = @transform_4, window_bounds = array<i64: 1, 8, 32>}]} {
    %c0 = arith.constant 0 : index
    %c0_0 = arith.constant 0 : index
    %c0_1 = arith.constant 0 : index
    %0 = vector.load %arg4[%c0, %c0_0, %c0_1] : memref<1x8x5xbf16, #tpu.memory_space<vmem>>, vector<1x8x5xbf16>
    %1 = vector.shape_cast %0 : vector<1x8x5xbf16> to vector<8x5xbf16>
    %c0_2 = arith.constant 0 : index
    %c0_3 = arith.constant 0 : index
    %2 = vector.load %arg5[%c0_2, %c0_3] : memref<5x32xbf16, #tpu.memory_space<vmem>>, vector<5x32xbf16>
    %cst = arith.constant dense<0.000000e+00> : vector<8x32xf32>
    %3 = tpu.matmul %1, %2, %cst {dimension_numbers = #tpu.dot_dimension_numbers<[1], [0], [0], [1], [0, 0, 1, 1], [], []>} : vector<8x5xbf16>, vector<5x32xbf16>, vector<8x32xf32> -> vector<8x32xf32>
    %c0_4 = arith.constant 0 : index
    %c0_5 = arith.constant 0 : index
    %4 = vector.load %arg6[%c0_4, %c0_5] : memref<1x32xf32, #tpu.memory_space<vmem>>, vector<1x32xf32>
    %5 = vector.broadcast %4 : vector<1x32xf32> to vector<8x32xf32>
    %6 = arith.addf %3, %5 : vector<8x32xf32>
    %c0_6 = arith.constant 0 : index
    %c0_7 = arith.constant 0 : index
    %c0_8 = arith.constant 0 : index
    %7 = vector.load %arg7[%c0_6, %c0_7, %c0_8] : memref<1x8x32xbf16, #tpu.memory_space<vmem>>, vector<1x8x32xbf16>
    %8 = vector.shape_cast %7 : vector<1x8x32xbf16> to vector<8x32xbf16>
    %9 = arith.extf %8 : vector<8x32xbf16> to vector<8x32xf32>
    %10 = arith.addf %6, %9 : vector<8x32xf32>
    %11 = arith.truncf %10 : vector<8x32xf32> to vector<8x32xbf16>
    %c0_9 = arith.constant 0 : index
    %c0_10 = arith.constant 0 : index
    %c0_11 = arith.constant 0 : index
    %12 = vector.load %arg8[%c0_9, %c0_10, %c0_11] : memref<1x8x32xbf16, #tpu.memory_space<vmem>>, vector<1x8x32xbf16>
    %13 = vector.shape_cast %12 : vector<1x8x32xbf16> to vector<8x32xbf16>
    %14 = vector.shape_cast %11 : vector<8x32xbf16> to vector<1x8x32xbf16>
    tpu.vector_store %arg8[%c0_9, %c0_10, %c0_11], %14 {strides = array<i32>} : memref<1x8x32xbf16, #tpu.memory_space<vmem>>, vector<1x8x32xbf16>,
    return
  }
  func.func @transform_0(%arg0: i32, %arg1: i32, %arg2: i32, %arg3: i32) -> (i32, i32, i32) {
    %c0_i32 = arith.constant 0 : i32
    return %arg0, %arg1, %arg3 : i32, i32, i32
  }
  func.func @transform_1(%arg0: i32, %arg1: i32, %arg2: i32, %arg3: i32) -> (i32, i32) {
    %c0_i32 = arith.constant 0 : i32
    return %arg3, %arg2 : i32, i32
  }
  func.func @transform_2(%arg0: i32, %arg1: i32, %arg2: i32, %arg3: i32) -> (i32, i32) {
    %c0_i32 = arith.constant 0 : i32
    %c0_i32_0 = arith.constant 0 : i32
    return %c0_i32, %arg2 : i32, i32
  }
  func.func @transform_3(%arg0: i32, %arg1: i32, %arg2: i32, %arg3: i32) -> (i32, i32, i32) {
    %c0_i32 = arith.constant 0 : i32
    %c0_i32_0 = arith.constant 0 : i32
    return %c0_i32, %arg1, %arg2 : i32, i32, i32
  }
  func.func @transform_4(%arg0: i32, %arg1: i32, %arg2: i32, %arg3: i32) -> (i32, i32, i32) {
    %c0_i32 = arith.constant 0 : i32
    return %arg0, %arg1, %arg2 : i32, i32, i32
  }
}

module attributes {stable_mosaic.version = 11 : i64} {
  func.func @_qkv_kernel(%arg0: i32, %arg1: i32, %arg2: i32, %arg3: memref<1x8x32xbf16, #tpu.memory_space<vmem>>, %arg4: memref<1x1x32xbf16, #tpu.memory_space<vmem>>, %arg5: memref<1x1x32xbf16, #tpu.memory_space<vmem>>, %arg6: memref<1x32x48xbf16, #tpu.memory_space<vmem>>, %arg7: memref<1x1x48xf32, #tpu.memory_space<vmem>>, %arg8: memref<1x1x8x16xbf16, #tpu.memory_space<vmem>>, %arg9: memref<1x1x8x16xbf16, #tpu.memory_space<vmem>>, %arg10: memref<1x1x8x16xbf16, #tpu.memory_space<vmem>>, %arg11: memref<8x32xbf16, #tpu.memory_space<vmem>>) attributes {dimension_semantics = [#tpu.dimension_semantics<parallel>, #tpu.dimension_semantics<parallel>, #tpu.dimension_semantics<arbitrary>], iteration_bounds = array<i64: 2, 1, 2>, scalar_prefetch = 0 : i64, scratch_operands = 1 : i64, tpu.core_type = #tpu.core_type<tc>, window_params = [{transform_indices = @transform_0, window_bounds = array<i64: 1, 8, 32>}, {transform_indices = @transform_1, window_bounds = array<i64: 1, 1, 32>}, {transform_indices = @transform_2, window_bounds = array<i64: 1, 1, 32>}, {transform_indices = @transform_3, window_bounds = array<i64: 1, 32, 48>}, {transform_indices = @transform_4, window_bounds = array<i64: 1, 1, 48>}, {transform_indices = @transform_5, window_bounds = array<i64: 1, 1, 8, 16>}, {transform_indices = @transform_6, window_bounds = array<i64: 1, 1, 8, 16>}, {transform_indices = @transform_7, window_bounds = array<i64: 1, 1, 8, 16>}]} {
    %c0_i32 = arith.constant 0 : i32
    %0 = arith.cmpi eq, %arg2, %c0_i32 : i32
    %1 = arith.extui %0 : i1 to i32
    %c0_i32_0 = arith.constant 0 : i32
    %2 = arith.cmpi ne, %1, %c0_i32_0 : i32
    scf.if %2 {
      %c0_21 = arith.constant 0 : index
      %c0_22 = arith.constant 0 : index
      %c0_23 = arith.constant 0 : index
      %28 = vector.load %arg3[%c0_21, %c0_22, %c0_23] : memref<1x8x32xbf16, #tpu.memory_space<vmem>>, vector<1x8x32xbf16>
      %29 = vector.shape_cast %28 : vector<1x8x32xbf16> to vector<8x32xbf16>
      %30 = arith.extf %29 : vector<8x32xbf16> to vector<8x32xf32>
      %cst_24 = arith.constant dense<0.000000e+00> : vector<8xf32>
      %31 = vector.multi_reduction <add>, %30, %cst_24 [1] : vector<8x32xf32> to vector<8xf32>
      %32 = vector.shape_cast %31 : vector<8xf32> to vector<8x1xf32>
      %cst_25 = arith.constant 3.200000e+01 : f32
      %33 = vector.broadcast %cst_25 : f32 to vector<8x1xf32>
      %34 = arith.divf %32, %33 : vector<8x1xf32>
      %35 = vector.broadcast %34 : vector<8x1xf32> to vector<8x32xf32>
      %36 = arith.subf %30, %35 : vector<8x32xf32>
      %37 = arith.mulf %36, %36 : vector<8x32xf32>
      %cst_26 = arith.constant dense<0.000000e+00> : vector<8xf32>
      %38 = vector.multi_reduction <add>, %37, %cst_26 [1] : vector<8x32xf32> to vector<8xf32>
      %39 = vector.shape_cast %38 : vector<8xf32> to vector<8x1xf32>
      %cst_27 = arith.constant 3.200000e+01 : f32
      %40 = vector.broadcast %cst_27 : f32 to vector<8x1xf32>
      %41 = arith.divf %39, %40 : vector<8x1xf32>
      %cst_28 = arith.constant 9.99999997E-7 : f32
      %42 = vector.broadcast %cst_28 : f32 to vector<8x1xf32>
      %43 = arith.addf %41, %42 : vector<8x1xf32>
      %44 = math.rsqrt %43 : vector<8x1xf32>
      %45 = vector.broadcast %44 : vector<8x1xf32> to vector<8x32xf32>
      %46 = arith.mulf %36, %45 : vector<8x32xf32>
      %c0_29 = arith.constant 0 : index
      %c0_30 = arith.constant 0 : index
      %c0_31 = arith.constant 0 : index
      %47 = vector.load %arg5[%c0_29, %c0_30, %c0_31] : memref<1x1x32xbf16, #tpu.memory_space<vmem>>, vector<1x1x32xbf16>
      %48 = vector.shape_cast %47 : vector<1x1x32xbf16> to vector<1x32xbf16>
      %49 = arith.extf %48 : vector<1x32xbf16> to vector<1x32xf32>
      %cst_32 = arith.constant 1.000000e+00 : f32
      %50 = vector.broadcast %cst_32 : f32 to vector<1x32xf32>
      %51 = arith.addf %50, %49 : vector<1x32xf32>
      %52 = vector.broadcast %51 : vector<1x32xf32> to vector<8x32xf32>
      %53 = arith.mulf %46, %52 : vector<8x32xf32>
      %c0_33 = arith.constant 0 : index
      %c0_34 = arith.constant 0 : index
      %c0_35 = arith.constant 0 : index
      %54 = vector.load %arg4[%c0_33, %c0_34, %c0_35] : memref<1x1x32xbf16, #tpu.memory_space<vmem>>, vector<1x1x32xbf16>
      %55 = vector.shape_cast %54 : vector<1x1x32xbf16> to vector<1x32xbf16>
      %56 = arith.extf %55 : vector<1x32xbf16> to vector<1x32xf32>
      %57 = vector.broadcast %56 : vector<1x32xf32> to vector<8x32xf32>
      %58 = arith.addf %53, %57 : vector<8x32xf32>
      %59 = arith.truncf %58 : vector<8x32xf32> to vector<8x32xbf16>
      %c0_36 = arith.constant 0 : index
      %c0_37 = arith.constant 0 : index
      %60 = vector.load %arg11[%c0_36, %c0_37] : memref<8x32xbf16, #tpu.memory_space<vmem>>, vector<8x32xbf16>
      tpu.vector_store %arg11[%c0_36, %c0_37], %59 {strides = array<i32>} : memref<8x32xbf16, #tpu.memory_space<vmem>>, vector<8x32xbf16>,
    } else {
    }
    %c0 = arith.constant 0 : index
    %c0_1 = arith.constant 0 : index
    %3 = vector.load %arg11[%c0, %c0_1] : memref<8x32xbf16, #tpu.memory_space<vmem>>, vector<8x32xbf16>
    %c0_2 = arith.constant 0 : index
    %c0_3 = arith.constant 0 : index
    %c0_4 = arith.constant 0 : index
    %4 = vector.load %arg6[%c0_2, %c0_3, %c0_4] : memref<1x32x48xbf16, #tpu.memory_space<vmem>>, vector<1x32x48xbf16>
    %5 = vector.shape_cast %4 : vector<1x32x48xbf16> to vector<32x48xbf16>
    %cst = arith.constant dense<0.000000e+00> : vector<8x48xf32>
    %6 = tpu.matmul %3, %5, %cst {dimension_numbers = #tpu.dot_dimension_numbers<[1], [0], [0], [1], [0, 0, 1, 1], [], []>} : vector<8x32xbf16>, vector<32x48xbf16>, vector<8x48xf32> -> vector<8x48xf32>
    %c0_5 = arith.constant 0 : index
    %c0_6 = arith.constant 0 : index
    %c0_7 = arith.constant 0 : index
    %7 = vector.load %arg7[%c0_5, %c0_6, %c0_7] : memref<1x1x48xf32, #tpu.memory_space<vmem>>, vector<1x1x48xf32>
    %8 = vector.shape_cast %7 : vector<1x1x48xf32> to vector<1x48xf32>
    %9 = vector.broadcast %8 : vector<1x48xf32> to vector<8x48xf32>
    %10 = arith.addf %6, %9 : vector<8x48xf32>
    %11 = vector.extract_strided_slice %10 {offsets = [0, 0], sizes = [8, 16], strides = [1, 1]} : vector<8x48xf32> to vector<8x16xf32>
    %cst_8 = arith.constant 2.500000e-01 : f32
    %12 = vector.broadcast %cst_8 : f32 to vector<8x16xf32>
    %13 = arith.mulf %11, %12 : vector<8x16xf32>
    %14 = arith.truncf %13 : vector<8x16xf32> to vector<8x16xbf16>
    %c0_9 = arith.constant 0 : index
    %c0_10 = arith.constant 0 : index
    %c0_11 = arith.constant 0 : index
    %c0_12 = arith.constant 0 : index
    %15 = vector.load %arg8[%c0_9, %c0_10, %c0_11, %c0_12] : memref<1x1x8x16xbf16, #tpu.memory_space<vmem>>, vector<1x1x8x16xbf16>
    %16 = vector.shape_cast %15 : vector<1x1x8x16xbf16> to vector<8x16xbf16>
    %17 = vector.shape_cast %14 : vector<8x16xbf16> to vector<1x1x8x16xbf16>
    tpu.vector_store %arg8[%c0_9, %c0_10, %c0_11, %c0_12], %17 {strides = array<i32>} : memref<1x1x8x16xbf16, #tpu.memory_space<vmem>>, vector<1x1x8x16xbf16>,
    %18 = vector.extract_strided_slice %10 {offsets = [0, 16], sizes = [8, 16], strides = [1, 1]} : vector<8x48xf32> to vector<8x16xf32>
    %19 = arith.truncf %18 : vector<8x16xf32> to vector<8x16xbf16>
    %c0_13 = arith.constant 0 : index
    %c0_14 = arith.constant 0 : index
    %c0_15 = arith.constant 0 : index
    %c0_16 = arith.constant 0 : index
    %20 = vector.load %arg9[%c0_13, %c0_14, %c0_15, %c0_16] : memref<1x1x8x16xbf16, #tpu.memory_space<vmem>>, vector<1x1x8x16xbf16>
    %21 = vector.shape_cast %20 : vector<1x1x8x16xbf16> to vector<8x16xbf16>
    %22 = vector.shape_cast %19 : vector<8x16xbf16> to vector<1x1x8x16xbf16>
    tpu.vector_store %arg9[%c0_13, %c0_14, %c0_15, %c0_16], %22 {strides = array<i32>} : memref<1x1x8x16xbf16, #tpu.memory_space<vmem>>, vector<1x1x8x16xbf16>,
    %23 = vector.extract_strided_slice %10 {offsets = [0, 32], sizes = [8, 16], strides = [1, 1]} : vector<8x48xf32> to vector<8x16xf32>
    %24 = arith.truncf %23 : vector<8x16xf32> to vector<8x16xbf16>
    %c0_17 = arith.constant 0 : index
    %c0_18 = arith.constant 0 : index
    %c0_19 = arith.constant 0 : index
    %c0_20 = arith.constant 0 : index
    %25 = vector.load %arg10[%c0_17, %c0_18, %c0_19, %c0_20] : memref<1x1x8x16xbf16, #tpu.memory_space<vmem>>, vector<1x1x8x16xbf16>
    %26 = vector.shape_cast %25 : vector<1x1x8x16xbf16> to vector<8x16xbf16>
    %27 = vector.shape_cast %24 : vector<8x16xbf16> to vector<1x1x8x16xbf16>
    tpu.vector_store %arg10[%c0_17, %c0_18, %c0_19, %c0_20], %27 {strides = array<i32>} : memref<1x1x8x16xbf16, #tpu.memory_space<vmem>>, vector<1x1x8x16xbf16>,
    return
  }
  func.func @transform_0(%arg0: i32, %arg1: i32, %arg2: i32) -> (i32, i32, i32) {
    %c0_i32 = arith.constant 0 : i32
    %c0_i32_0 = arith.constant 0 : i32
    return %arg0, %arg1, %c0_i32 : i32, i32, i32
  }
  func.func @transform_1(%arg0: i32, %arg1: i32, %arg2: i32) -> (i32, i32, i32) {
    %c0_i32 = arith.constant 0 : i32
    %c0_i32_0 = arith.constant 0 : i32
    %c0_i32_1 = arith.constant 0 : i32
    return %arg0, %c0_i32, %c0_i32_0 : i32, i32, i32
  }
  func.func @transform_2(%arg0: i32, %arg1: i32, %arg2: i32) -> (i32, i32, i32) {
    %c0_i32 = arith.constant 0 : i32
    %c0_i32_0 = arith.constant 0 : i32
    %c0_i32_1 = arith.constant 0 : i32
    return %arg0, %c0_i32, %c0_i32_0 : i32, i32, i32
  }
  func.func @transform_3(%arg0: i32, %arg1: i32, %arg2: i32) -> (i32, i32, i32) {
    %c0_i32 = arith.constant 0 : i32
    %c0_i32_0 = arith.constant 0 : i32
    %c0_i32_1 = arith.constant 0 : i32
    return %arg2, %c0_i32, %c0_i32_0 : i32, i32, i32
  }
  func.func @transform_4(%arg0: i32, %arg1: i32, %arg2: i32) -> (i32, i32, i32) {
    %c0_i32 = arith.constant 0 : i32
    %c0_i32_0 = arith.constant 0 : i32
    %c0_i32_1 = arith.constant 0 : i32
    return %arg2, %c0_i32, %c0_i32_0 : i32, i32, i32
  }
  func.func @transform_5(%arg0: i32, %arg1: i32, %arg2: i32) -> (i32, i32, i32, i32) {
    %c0_i32 = arith.constant 0 : i32
    %c0_i32_0 = arith.constant 0 : i32
    return %arg0, %arg2, %arg1, %c0_i32 : i32, i32, i32, i32
  }
  func.func @transform_6(%arg0: i32, %arg1: i32, %arg2: i32) -> (i32, i32, i32, i32) {
    %c0_i32 = arith.constant 0 : i32
    %c0_i32_0 = arith.constant 0 : i32
    return %arg0, %arg2, %arg1, %c0_i32 : i32, i32, i32, i32
  }
  func.func @transform_7(%arg0: i32, %arg1: i32, %arg2: i32) -> (i32, i32, i32, i32) {
    %c0_i32 = arith.constant 0 : i32
    %c0_i32_0 = arith.constant 0 : i32
    return %arg0, %arg2, %arg1, %c0_i32 : i32, i32, i32, i32
  }
}

module attributes {stable_mosaic.version = 11 : i64} {
  func.func @_fused_linear_kernel(%arg0: i32, %arg1: i32, %arg2: i32, %arg3: i32, %arg4: memref<1x8x32xbf16, #tpu.memory_space<vmem>>, %arg5: memref<32x32xbf16, #tpu.memory_space<vmem>>, %arg6: memref<1x32xf32, #tpu.memory_space<vmem>>, %arg7: memref<1x1x32xbf16, #tpu.memory_space<vmem>>, %arg8: memref<1x8x32xbf16, #tpu.memory_space<vmem>>, %arg9: memref<1x8x32xbf16, #tpu.memory_space<vmem>>) attributes {dimension_semantics = [#tpu.dimension_semantics<parallel>, #tpu.dimension_semantics<parallel>, #tpu.dimension_semantics<parallel>, #tpu.dimension_semantics<arbitrary>], iteration_bounds = array<i64: 2, 1, 1, 1>, scalar_prefetch = 0 : i64, scratch_operands = 0 : i64, tpu.core_type = #tpu.core_type<tc>, window_params = [{transform_indices = @transform_0, window_bounds = array<i64: 1, 8, 32>}, {transform_indices = @transform_1, window_bounds = array<i64: 32, 32>}, {transform_indices = @transform_2, window_bounds = array<i64: 1, 32>}, {transform_indices = @transform_3, window_bounds = array<i64: 1, 1, 32>}, {transform_indices = @transform_4, window_bounds = array<i64: 1, 8, 32>}, {transform_indices = @transform_5, window_bounds = array<i64: 1, 8, 32>}]} {
    %c0 = arith.constant 0 : index
    %c0_0 = arith.constant 0 : index
    %c0_1 = arith.constant 0 : index
    %0 = vector.load %arg4[%c0, %c0_0, %c0_1] : memref<1x8x32xbf16, #tpu.memory_space<vmem>>, vector<1x8x32xbf16>
    %1 = vector.shape_cast %0 : vector<1x8x32xbf16> to vector<8x32xbf16>
    %c0_2 = arith.constant 0 : index
    %c0_3 = arith.constant 0 : index
    %2 = vector.load %arg5[%c0_2, %c0_3] : memref<32x32xbf16, #tpu.memory_space<vmem>>, vector<32x32xbf16>
    %cst = arith.constant dense<0.000000e+00> : vector<8x32xf32>
    %3 = tpu.matmul %1, %2, %cst {dimension_numbers = #tpu.dot_dimension_numbers<[1], [0], [0], [1], [0, 0, 1, 1], [], []>} : vector<8x32xbf16>, vector<32x32xbf16>, vector<8x32xf32> -> vector<8x32xf32>
    %c0_4 = arith.constant 0 : index
    %c0_5 = arith.constant 0 : index
    %4 = vector.load %arg6[%c0_4, %c0_5] : memref<1x32xf32, #tpu.memory_space<vmem>>, vector<1x32xf32>
    %5 = vector.broadcast %4 : vector<1x32xf32> to vector<8x32xf32>
    %6 = arith.addf %3, %5 : vector<8x32xf32>
    %c0_6 = arith.constant 0 : index
    %c0_7 = arith.constant 0 : index
    %c0_8 = arith.constant 0 : index
    %7 = vector.load %arg7[%c0_6, %c0_7, %c0_8] : memref<1x1x32xbf16, #tpu.memory_space<vmem>>, vector<1x1x32xbf16>
    %8 = vector.shape_cast %7 : vector<1x1x32xbf16> to vector<1x32xbf16>
    %9 = arith.extf %8 : vector<1x32xbf16> to vector<1x32xf32>
    %10 = vector.broadcast %9 : vector<1x32xf32> to vector<8x32xf32>
    %11 = arith.mulf %6, %10 : vector<8x32xf32>
    %c0_9 = arith.constant 0 : index
    %c0_10 = arith.constant 0 : index
    %c0_11 = arith.constant 0 : index
    %12 = vector.load %arg8[%c0_9, %c0_10, %c0_11] : memref<1x8x32xbf16, #tpu.memory_space<vmem>>, vector<1x8x32xbf16>
    %13 = vector.shape_cast %12 : vector<1x8x32xbf16> to vector<8x32xbf16>
    %14 = arith.extf %13 : vector<8x32xbf16> to vector<8x32xf32>
    %15 = arith.addf %11, %14 : vector<8x32xf32>
    %16 = arith.truncf %15 : vector<8x32xf32> to vector<8x32xbf16>
    %c0_12 = arith.constant 0 : index
    %c0_13 = arith.constant 0 : index
    %c0_14 = arith.constant 0 : index
    %17 = vector.load %arg9[%c0_12, %c0_13, %c0_14] : memref<1x8x32xbf16, #tpu.memory_space<vmem>>, vector<1x8x32xbf16>
    %18 = vector.shape_cast %17 : vector<1x8x32xbf16> to vector<8x32xbf16>
    %19 = vector.shape_cast %16 : vector<8x32xbf16> to vector<1x8x32xbf16>
    tpu.vector_store %arg9[%c0_12, %c0_13, %c0_14], %19 {strides = array<i32>} : memref<1x8x32xbf16, #tpu.memory_space<vmem>>, vector<1x8x32xbf16>,
    return
  }
  func.func @transform_0(%arg0: i32, %arg1: i32, %arg2: i32, %arg3: i32) -> (i32, i32, i32) {
    %c0_i32 = arith.constant 0 : i32
    return %arg0, %arg1, %arg3 : i32, i32, i32
  }
  func.func @transform_1(%arg0: i32, %arg1: i32, %arg2: i32, %arg3: i32) -> (i32, i32) {
    %c0_i32 = arith.constant 0 : i32
    return %arg3, %arg2 : i32, i32
  }
  func.func @transform_2(%arg0: i32, %arg1: i32, %arg2: i32, %arg3: i32) -> (i32, i32) {
    %c0_i32 = arith.constant 0 : i32
    %c0_i32_0 = arith.constant 0 : i32
    return %c0_i32, %arg2 : i32, i32
  }
  func.func @transform_3(%arg0: i32, %arg1: i32, %arg2: i32, %arg3: i32) -> (i32, i32, i32) {
    %c0_i32 = arith.constant 0 : i32
    %c0_i32_0 = arith.constant 0 : i32
    return %arg0, %c0_i32, %arg2 : i32, i32, i32
  }
  func.func @transform_4(%arg0: i32, %arg1: i32, %arg2: i32, %arg3: i32) -> (i32, i32, i32) {
    %c0_i32 = arith.constant 0 : i32
    return %arg0, %arg1, %arg2 : i32, i32, i32
  }
  func.func @transform_5(%arg0: i32, %arg1: i32, %arg2: i32, %arg3: i32) -> (i32, i32, i32) {
    %c0_i32 = arith.constant 0 : i32
    return %arg0, %arg1, %arg2 : i32, i32, i32
  }
}

module attributes {stable_mosaic.version = 11 : i64} {
  func.func @_flash_kernel(%arg0: i32, %arg1: i32, %arg2: i32, %arg3: memref<1x2x8x16xbf16, #tpu.memory_space<vmem>>, %arg4: memref<1x2x8x16xbf16, #tpu.memory_space<vmem>>, %arg5: memref<1x2x8x16xbf16, #tpu.memory_space<vmem>>, %arg6: memref<1x1x8xf32, #tpu.memory_space<vmem>>, %arg7: memref<1x8x32xbf16, #tpu.memory_space<vmem>>, %arg8: memref<2x8x1xf32, #tpu.memory_space<vmem>>, %arg9: memref<2x8x1xf32, #tpu.memory_space<vmem>>, %arg10: memref<2x8x16xf32, #tpu.memory_space<vmem>>) attributes {dimension_semantics = [#tpu.dimension_semantics<parallel>, #tpu.dimension_semantics<parallel>, #tpu.dimension_semantics<arbitrary>], iteration_bounds = array<i64: 2, 1, 1>, scalar_prefetch = 0 : i64, scratch_operands = 3 : i64, tpu.core_type = #tpu.core_type<tc>, window_params = [{transform_indices = @transform_0, window_bounds = array<i64: 1, 2, 8, 16>}, {transform_indices = @transform_1, window_bounds = array<i64: 1, 2, 8, 16>}, {transform_indices = @transform_2, window_bounds = array<i64: 1, 2, 8, 16>}, {transform_indices = @transform_3, window_bounds = array<i64: 1, 1, 8>}, {transform_indices = @transform_4, window_bounds = array<i64: 1, 8, 32>}]} {
    %c0_i32 = arith.constant 0 : i32
    %0 = arith.cmpi eq, %arg2, %c0_i32 : i32
    %1 = arith.extui %0 : i1 to i32
    %c0_i32_0 = arith.constant 0 : i32
    %2 = arith.cmpi ne, %1, %c0_i32_0 : i32
    scf.if %2 {
      %cst_43 = arith.constant 0xFF800000 : f32
      %44 = vector.broadcast %cst_43 : f32 to vector<2x8x1xf32>
      %c0_44 = arith.constant 0 : index
      %c0_45 = arith.constant 0 : index
      %c0_46 = arith.constant 0 : index
      %45 = vector.load %arg8[%c0_44, %c0_45, %c0_46] : memref<2x8x1xf32, #tpu.memory_space<vmem>>, vector<2x8x1xf32>
      tpu.vector_store %arg8[%c0_44, %c0_45, %c0_46], %44 {strides = array<i32>} : memref<2x8x1xf32, #tpu.memory_space<vmem>>, vector<2x8x1xf32>,
      %cst_47 = arith.constant 0.000000e+00 : f32
      %46 = vector.broadcast %cst_47 : f32 to vector<2x8x1xf32>
      %c0_48 = arith.constant 0 : index
      %c0_49 = arith.constant 0 : index
      %c0_50 = arith.constant 0 : index
      %47 = vector.load %arg9[%c0_48, %c0_49, %c0_50] : memref<2x8x1xf32, #tpu.memory_space<vmem>>, vector<2x8x1xf32>
      tpu.vector_store %arg9[%c0_48, %c0_49, %c0_50], %46 {strides = array<i32>} : memref<2x8x1xf32, #tpu.memory_space<vmem>>, vector<2x8x1xf32>,
      %cst_51 = arith.constant 0.000000e+00 : f32
      %48 = vector.broadcast %cst_51 : f32 to vector<2x8x16xf32>
      %c0_52 = arith.constant 0 : index
      %c0_53 = arith.constant 0 : index
      %c0_54 = arith.constant 0 : index
      %49 = vector.load %arg10[%c0_52, %c0_53, %c0_54] : memref<2x8x16xf32, #tpu.memory_space<vmem>>, vector<2x8x16xf32>
      tpu.vector_store %arg10[%c0_52, %c0_53, %c0_54], %48 {strides = array<i32>} : memref<2x8x16xf32, #tpu.memory_space<vmem>>, vector<2x8x16xf32>,
    } else {
    }
    %c0 = arith.constant 0 : index
    %c0_1 = arith.constant 0 : index
    %c0_2 = arith.constant 0 : index
    %c0_3 = arith.constant 0 : index
    %3 = vector.load %arg3[%c0, %c0_1, %c0_2, %c0_3] : memref<1x2x8x16xbf16, #tpu.memory_space<vmem>>, vector<1x2x8x16xbf16>
    %4 = vector.shape_cast %3 : vector<1x2x8x16xbf16> to vector<2x8x16xbf16>
    %c0_4 = arith.constant 0 : index
    %c0_5 = arith.constant 0 : index
    %c0_6 = arith.constant 0 : index
    %c0_7 = arith.constant 0 : index
    %5 = vector.load %arg4[%c0_4, %c0_5, %c0_6, %c0_7] : memref<1x2x8x16xbf16, #tpu.memory_space<vmem>>, vector<1x2x8x16xbf16>
    %6 = vector.shape_cast %5 : vector<1x2x8x16xbf16> to vector<2x8x16xbf16>
    %c0_8 = arith.constant 0 : index
    %c0_9 = arith.constant 0 : index
    %c0_10 = arith.constant 0 : index
    %c0_11 = arith.constant 0 : index
    %7 = vector.load %arg5[%c0_8, %c0_9, %c0_10, %c0_11] : memref<1x2x8x16xbf16, #tpu.memory_space<vmem>>, vector<1x2x8x16xbf16>
    %8 = vector.shape_cast %7 : vector<1x2x8x16xbf16> to vector<2x8x16xbf16>
    "tpu.trace_start"() <{level = 10 : i32, message = "hqd,hkd->hqk"}> : () -> ()
    %cst = arith.constant dense<0.000000e+00> : vector<2x8x8xf32>
    %9 = tpu.matmul %4, %6, %cst {dimension_numbers = #tpu.dot_dimension_numbers<[2], [2], [1], [1], [0, 0, 0, 1, 1, 1], [0], [0]>} : vector<2x8x16xbf16>, vector<2x8x16xbf16>, vector<2x8x8xf32> -> vector<2x8x8xf32>
    "tpu.trace_stop"() : () -> ()
    %c0_12 = arith.constant 0 : index
    %c0_13 = arith.constant 0 : index
    %c0_14 = arith.constant 0 : index
    %10 = vector.load %arg6[%c0_12, %c0_13, %c0_14] : memref<1x1x8xf32, #tpu.memory_space<vmem>>, vector<1x1x8xf32>
    %cst_15 = arith.constant 0.000000e+00 : f32
    %11 = vector.broadcast %cst_15 : f32 to vector<1x1x8xf32>
    %12 = arith.cmpf ogt, %10, %11 : vector<1x1x8xf32>
    %cst_16 = arith.constant -1.000000e+30 : f32
    %13 = vector.shape_cast %12 : vector<1x1x8xi1> to vector<1x1x8xi1>
    %14 = vector.broadcast %13 : vector<1x1x8xi1> to vector<2x8x8xi1>
    %15 = vector.broadcast %cst_16 : f32 to vector<2x8x8xf32>
    %16 = arith.select %14, %9, %15 : vector<2x8x8xi1>, vector<2x8x8xf32>
    %c0_17 = arith.constant 0 : index
    %c0_18 = arith.constant 0 : index
    %c0_19 = arith.constant 0 : index
    %17 = vector.load %arg8[%c0_17, %c0_18, %c0_19] : memref<2x8x1xf32, #tpu.memory_space<vmem>>, vector<2x8x1xf32>
    %cst_20 = arith.constant dense<0xFF800000> : vector<2x8xf32>
    %18 = vector.multi_reduction <maximumf>, %16, %cst_20 [2] : vector<2x8x8xf32> to vector<2x8xf32>
    %19 = vector.shape_cast %18 : vector<2x8xf32> to vector<2x8x1xf32>
    %20 = arith.maximumf %17, %19 : vector<2x8x1xf32>
    %c0_21 = arith.constant 0 : index
    %c0_22 = arith.constant 0 : index
    %c0_23 = arith.constant 0 : index
    %21 = vector.load %arg8[%c0_21, %c0_22, %c0_23] : memref<2x8x1xf32, #tpu.memory_space<vmem>>, vector<2x8x1xf32>
    %22 = arith.subf %21, %20 : vector<2x8x1xf32>
    %23 = math.exp %22 : vector<2x8x1xf32>
    %24 = vector.broadcast %20 : vector<2x8x1xf32> to vector<2x8x8xf32>
    %25 = arith.subf %16, %24 : vector<2x8x8xf32>
    %26 = math.exp %25 : vector<2x8x8xf32>
    %c0_24 = arith.constant 0 : index
    %c0_25 = arith.constant 0 : index
    %c0_26 = arith.constant 0 : index
    %27 = vector.load %arg9[%c0_24, %c0_25, %c0_26] : memref<2x8x1xf32, #tpu.memory_space<vmem>>, vector<2x8x1xf32>
    %28 = arith.mulf %23, %27 : vector<2x8x1xf32>
    %cst_27 = arith.constant dense<0.000000e+00> : vector<2x8xf32>
    %29 = vector.multi_reduction <add>, %26, %cst_27 [2] : vector<2x8x8xf32> to vector<2x8xf32>
    %30 = vector.shape_cast %29 : vector<2x8xf32> to vector<2x8x1xf32>
    %31 = arith.addf %28, %30 : vector<2x8x1xf32>
    %c0_28 = arith.constant 0 : index
    %c0_29 = arith.constant 0 : index
    %c0_30 = arith.constant 0 : index
    %32 = vector.load %arg9[%c0_28, %c0_29, %c0_30] : memref<2x8x1xf32, #tpu.memory_space<vmem>>, vector<2x8x1xf32>
    tpu.vector_store %arg9[%c0_28, %c0_29, %c0_30], %31 {strides = array<i32>} : memref<2x8x1xf32, #tpu.memory_space<vmem>>, vector<2x8x1xf32>,
    %c0_31 = arith.constant 0 : index
    %c0_32 = arith.constant 0 : index
    %c0_33 = arith.constant 0 : index
    %33 = vector.load %arg10[%c0_31, %c0_32, %c0_33] : memref<2x8x16xf32, #tpu.memory_space<vmem>>, vector<2x8x16xf32>
    %34 = vector.broadcast %23 : vector<2x8x1xf32> to vector<2x8x16xf32>
    %35 = arith.mulf %34, %33 : vector<2x8x16xf32>
    %36 = arith.truncf %26 : vector<2x8x8xf32> to vector<2x8x8xbf16>
    "tpu.trace_start"() <{level = 10 : i32, message = "hqk,hkd->hqd"}> : () -> ()
    %cst_34 = arith.constant dense<0.000000e+00> : vector<2x8x16xf32>
    %37 = tpu.matmul %36, %8, %cst_34 {dimension_numbers = #tpu.dot_dimension_numbers<[2], [1], [1], [2], [0, 0, 0, 1, 1, 2], [0], [0]>} : vector<2x8x8xbf16>, vector<2x8x16xbf16>, vector<2x8x16xf32> -> vector<2x8x16xf32>
    "tpu.trace_stop"() : () -> ()
    %38 = arith.addf %35, %37 : vector<2x8x16xf32>
    %c0_35 = arith.constant 0 : index
    %c0_36 = arith.constant 0 : index
    %c0_37 = arith.constant 0 : index
    %39 = vector.load %arg10[%c0_35, %c0_36, %c0_37] : memref<2x8x16xf32, #tpu.memory_space<vmem>>, vector<2x8x16xf32>
    tpu.vector_store %arg10[%c0_35, %c0_36, %c0_37], %38 {strides = array<i32>} : memref<2x8x16xf32, #tpu.memory_space<vmem>>, vector<2x8x16xf32>,
    %c0_38 = arith.constant 0 : index
    %c0_39 = arith.constant 0 : index
    %c0_40 = arith.constant 0 : index
    %40 = vector.load %arg8[%c0_38, %c0_39, %c0_40] : memref<2x8x1xf32, #tpu.memory_space<vmem>>, vector<2x8x1xf32>
    tpu.vector_store %arg8[%c0_38, %c0_39, %c0_40], %20 {strides = array<i32>} : memref<2x8x1xf32, #tpu.memory_space<vmem>>, vector<2x8x1xf32>,
    %c0_i32_41 = arith.constant 0 : i32
    %41 = arith.cmpi eq, %arg2, %c0_i32_41 : i32
    %42 = arith.extui %41 : i1 to i32
    %c0_i32_42 = arith.constant 0 : i32
    %43 = arith.cmpi ne, %42, %c0_i32_42 : i32
    scf.if %43 {
      %c0_43 = arith.constant 0 : index
      %c0_44 = arith.constant 0 : index
      %c0_45 = arith.constant 0 : index
      %44 = vector.load %arg10[%c0_43, %c0_44, %c0_45] : memref<2x8x16xf32, #tpu.memory_space<vmem>>, vector<1x8x16xf32>
      %45 = vector.shape_cast %44 : vector<1x8x16xf32> to vector<8x16xf32>
      %c0_46 = arith.constant 0 : index
      %c0_47 = arith.constant 0 : index
      %c0_48 = arith.constant 0 : index
      %46 = vector.load %arg9[%c0_46, %c0_47, %c0_48] : memref<2x8x1xf32, #tpu.memory_space<vmem>>, vector<1x8x1xf32>
      %47 = vector.shape_cast %46 : vector<1x8x1xf32> to vector<8x1xf32>
      %48 = vector.broadcast %47 : vector<8x1xf32> to vector<8x16xf32>
      %49 = arith.divf %45, %48 : vector<8x16xf32>
      %50 = arith.truncf %49 : vector<8x16xf32> to vector<8x16xbf16>
      %c0_49 = arith.constant 0 : index
      %c0_50 = arith.constant 0 : index
      %c0_51 = arith.constant 0 : index
      %51 = vector.load %arg7[%c0_49, %c0_50, %c0_51] : memref<1x8x32xbf16, #tpu.memory_space<vmem>>, vector<1x8x16xbf16>
      %52 = vector.shape_cast %51 : vector<1x8x16xbf16> to vector<8x16xbf16>
      %53 = vector.shape_cast %50 : vector<8x16xbf16> to vector<1x8x16xbf16>
      tpu.vector_store %arg7[%c0_49, %c0_50, %c0_51], %53 {strides = array<i32>} : memref<1x8x32xbf16, #tpu.memory_space<vmem>>, vector<1x8x16xbf16>,
      %c1 = arith.constant 1 : index
      %c0_52 = arith.constant 0 : index
      %c0_53 = arith.constant 0 : index
      %54 = vector.load %arg10[%c1, %c0_52, %c0_53] : memref<2x8x16xf32, #tpu.memory_space<vmem>>, vector<1x8x16xf32>
      %55 = vector.shape_cast %54 : vector<1x8x16xf32> to vector<8x16xf32>
      %c1_54 = arith.constant 1 : index
      %c0_55 = arith.constant 0 : index
      %c0_56 = arith.constant 0 : index
      %56 = vector.load %arg9[%c1_54, %c0_55, %c0_56] : memref<2x8x1xf32, #tpu.memory_space<vmem>>, vector<1x8x1xf32>
      %57 = vector.shape_cast %56 : vector<1x8x1xf32> to vector<8x1xf32>
      %58 = vector.broadcast %57 : vector<8x1xf32> to vector<8x16xf32>
      %59 = arith.divf %55, %58 : vector<8x16xf32>
      %60 = arith.truncf %59 : vector<8x16xf32> to vector<8x16xbf16>
      %c0_57 = arith.constant 0 : index
      %c0_58 = arith.constant 0 : index
      %c16 = arith.constant 16 : index
      %61 = vector.load %arg7[%c0_57, %c0_58, %c16] : memref<1x8x32xbf16, #tpu.memory_space<vmem>>, vector<1x8x16xbf16>
      %62 = vector.shape_cast %61 : vector<1x8x16xbf16> to vector<8x16xbf16>
      %63 = vector.shape_cast %60 : vector<8x16xbf16> to vector<1x8x16xbf16>
      tpu.vector_store %arg7[%c0_57, %c0_58, %c16], %63 {strides = array<i32>} : memref<1x8x32xbf16, #tpu.memory_space<vmem>>, vector<1x8x16xbf16>,
    } else {
    }
    return
  }
  func.func @transform_0(%arg0: i32, %arg1: i32, %arg2: i32) -> (i32, i32, i32, i32) {
    %c0_i32 = arith.constant 0 : i32
    %c0_i32_0 = arith.constant 0 : i32
    %c0_i32_1 = arith.constant 0 : i32
    return %arg0, %c0_i32, %arg1, %c0_i32_0 : i32, i32, i32, i32
  }
  func.func @transform_1(%arg0: i32, %arg1: i32, %arg2: i32) -> (i32, i32, i32, i32) {
    %c0_i32 = arith.constant 0 : i32
    %c0_i32_0 = arith.constant 0 : i32
    %c0_i32_1 = arith.constant 0 : i32
    return %arg0, %c0_i32, %arg2, %c0_i32_0 : i32, i32, i32, i32
  }
  func.func @transform_2(%arg0: i32, %arg1: i32, %arg2: i32) -> (i32, i32, i32, i32) {
    %c0_i32 = arith.constant 0 : i32
    %c0_i32_0 = arith.constant 0 : i32
    %c0_i32_1 = arith.constant 0 : i32
    return %arg0, %c0_i32, %arg2, %c0_i32_0 : i32, i32, i32, i32
  }
  func.func @transform_3(%arg0: i32, %arg1: i32, %arg2: i32) -> (i32, i32, i32) {
    %c0_i32 = arith.constant 0 : i32
    %c0_i32_0 = arith.constant 0 : i32
    return %arg0, %c0_i32, %arg2 : i32, i32, i32
  }
  func.func @transform_4(%arg0: i32, %arg1: i32, %arg2: i32) -> (i32, i32, i32) {
    %c0_i32 = arith.constant 0 : i32
    %c0_i32_0 = arith.constant 0 : i32
    return %arg0, %arg1, %c0_i32 : i32, i32, i32
  }
}

module attributes {stable_mosaic.version = 11 : i64} {
  func.func @_fused_linear_kernel(%arg0: i32, %arg1: i32, %arg2: i32, %arg3: i32, %arg4: memref<1x8x32xbf16, #tpu.memory_space<vmem>>, %arg5: memref<32x128xbf16, #tpu.memory_space<vmem>>, %arg6: memref<1x128xf32, #tpu.memory_space<vmem>>, %arg7: memref<1x1x32xbf16, #tpu.memory_space<vmem>>, %arg8: memref<1x1x32xbf16, #tpu.memory_space<vmem>>, %arg9: memref<1x8x128xbf16, #tpu.memory_space<vmem>>, %arg10: memref<8x32xbf16, #tpu.memory_space<vmem>>) attributes {dimension_semantics = [#tpu.dimension_semantics<parallel>, #tpu.dimension_semantics<parallel>, #tpu.dimension_semantics<arbitrary>, #tpu.dimension_semantics<arbitrary>], iteration_bounds = array<i64: 2, 1, 1, 1>, scalar_prefetch = 0 : i64, scratch_operands = 1 : i64, tpu.core_type = #tpu.core_type<tc>, window_params = [{transform_indices = @transform_0, window_bounds = array<i64: 1, 8, 32>}, {transform_indices = @transform_1, window_bounds = array<i64: 32, 128>}, {transform_indices = @transform_2, window_bounds = array<i64: 1, 128>}, {transform_indices = @transform_3, window_bounds = array<i64: 1, 1, 32>}, {transform_indices = @transform_4, window_bounds = array<i64: 1, 1, 32>}, {transform_indices = @transform_5, window_bounds = array<i64: 1, 8, 128>}]} {
    %c0_i32 = arith.constant 0 : i32
    %0 = arith.cmpi eq, %arg2, %c0_i32 : i32
    %1 = arith.extui %0 : i1 to i32
    %c0_i32_0 = arith.constant 0 : i32
    %2 = arith.cmpi ne, %1, %c0_i32_0 : i32
    scf.if %2 {
      %c0_13 = arith.constant 0 : index
      %c0_14 = arith.constant 0 : index
      %c0_15 = arith.constant 0 : index
      %26 = vector.load %arg4[%c0_13, %c0_14, %c0_15] : memref<1x8x32xbf16, #tpu.memory_space<vmem>>, vector<1x8x32xbf16>
      %27 = vector.shape_cast %26 : vector<1x8x32xbf16> to vector<8x32xbf16>
      %28 = arith.extf %27 : vector<8x32xbf16> to vector<8x32xf32>
      %cst_16 = arith.constant dense<0.000000e+00> : vector<8xf32>
      %29 = vector.multi_reduction <add>, %28, %cst_16 [1] : vector<8x32xf32> to vector<8xf32>
      %30 = vector.shape_cast %29 : vector<8xf32> to vector<8x1xf32>
      %cst_17 = arith.constant 3.200000e+01 : f32
      %31 = vector.broadcast %cst_17 : f32 to vector<8x1xf32>
      %32 = arith.divf %30, %31 : vector<8x1xf32>
      %33 = vector.broadcast %32 : vector<8x1xf32> to vector<8x32xf32>
      %34 = arith.subf %28, %33 : vector<8x32xf32>
      %35 = arith.mulf %34, %34 : vector<8x32xf32>
      %cst_18 = arith.constant dense<0.000000e+00> : vector<8xf32>
      %36 = vector.multi_reduction <add>, %35, %cst_18 [1] : vector<8x32xf32> to vector<8xf32>
      %37 = vector.shape_cast %36 : vector<8xf32> to vector<8x1xf32>
      %cst_19 = arith.constant 3.200000e+01 : f32
      %38 = vector.broadcast %cst_19 : f32 to vector<8x1xf32>
      %39 = arith.divf %37, %38 : vector<8x1xf32>
      %cst_20 = arith.constant 9.99999997E-7 : f32
      %40 = vector.broadcast %cst_20 : f32 to vector<8x1xf32>
      %41 = arith.addf %39, %40 : vector<8x1xf32>
      %42 = math.rsqrt %41 : vector<8x1xf32>
      %43 = vector.broadcast %42 : vector<8x1xf32> to vector<8x32xf32>
      %44 = arith.mulf %34, %43 : vector<8x32xf32>
      %c0_21 = arith.constant 0 : index
      %c0_22 = arith.constant 0 : index
      %c0_23 = arith.constant 0 : index
      %45 = vector.load %arg8[%c0_21, %c0_22, %c0_23] : memref<1x1x32xbf16, #tpu.memory_space<vmem>>, vector<1x1x32xbf16>
      %46 = vector.shape_cast %45 : vector<1x1x32xbf16> to vector<1x32xbf16>
      %47 = arith.extf %46 : vector<1x32xbf16> to vector<1x32xf32>
      %cst_24 = arith.constant 1.000000e+00 : f32
      %48 = vector.broadcast %cst_24 : f32 to vector<1x32xf32>
      %49 = arith.addf %48, %47 : vector<1x32xf32>
      %50 = vector.broadcast %49 : vector<1x32xf32> to vector<8x32xf32>
      %51 = arith.mulf %44, %50 : vector<8x32xf32>
      %c0_25 = arith.constant 0 : index
      %c0_26 = arith.constant 0 : index
      %c0_27 = arith.constant 0 : index
      %52 = vector.load %arg7[%c0_25, %c0_26, %c0_27] : memref<1x1x32xbf16, #tpu.memory_space<vmem>>, vector<1x1x32xbf16>
      %53 = vector.shape_cast %52 : vector<1x1x32xbf16> to vector<1x32xbf16>
      %54 = arith.extf %53 : vector<1x32xbf16> to vector<1x32xf32>
      %55 = vector.broadcast %54 : vector<1x32xf32> to vector<8x32xf32>
      %56 = arith.addf %51, %55 : vector<8x32xf32>
      %57 = arith.truncf %56 : vector<8x32xf32> to vector<8x32xbf16>
      %c0_28 = arith.constant 0 : index
      %c0_29 = arith.constant 0 : index
      %58 = vector.load %arg10[%c0_28, %c0_29] : memref<8x32xbf16, #tpu.memory_space<vmem>>, vector<8x32xbf16>
      tpu.vector_store %arg10[%c0_28, %c0_29], %57 {strides = array<i32>} : memref<8x32xbf16, #tpu.memory_space<vmem>>, vector<8x32xbf16>,
    } else {
    }
    %c0 = arith.constant 0 : index
    %c0_1 = arith.constant 0 : index
    %3 = vector.load %arg10[%c0, %c0_1] : memref<8x32xbf16, #tpu.memory_space<vmem>>, vector<8x32xbf16>
    %c0_2 = arith.constant 0 : index
    %c0_3 = arith.constant 0 : index
    %4 = vector.load %arg5[%c0_2, %c0_3] : memref<32x128xbf16, #tpu.memory_space<vmem>>, vector<32x128xbf16>
    %cst = arith.constant dense<0.000000e+00> : vector<8x128xf32>
    %5 = tpu.matmul %3, %4, %cst {dimension_numbers = #tpu.dot_dimension_numbers<[1], [0], [0], [1], [0, 0, 1, 1], [], []>} : vector<8x32xbf16>, vector<32x128xbf16>, vector<8x128xf32> -> vector<8x128xf32>
    %c0_4 = arith.constant 0 : index
    %c0_5 = arith.constant 0 : index
    %6 = vector.load %arg6[%c0_4, %c0_5] : memref<1x128xf32, #tpu.memory_space<vmem>>, vector<1x128xf32>
    %7 = vector.broadcast %6 : vector<1x128xf32> to vector<8x128xf32>
    %8 = arith.addf %5, %7 : vector<8x128xf32>
    %9 = arith.mulf %8, %8 : vector<8x128xf32>
    %10 = arith.mulf %8, %9 : vector<8x128xf32>
    %cst_6 = arith.constant 4.471500e-02 : f32
    %11 = vector.broadcast %cst_6 : f32 to vector<8x128xf32>
    %12 = arith.mulf %11, %10 : vector<8x128xf32>
    %13 = arith.addf %8, %12 : vector<8x128xf32>
    %cst_7 = arith.constant 0.797884583 : f32
    %14 = vector.broadcast %cst_7 : f32 to vector<8x128xf32>
    %15 = arith.mulf %14, %13 : vector<8x128xf32>
    %16 = math.tanh %15 : vector<8x128xf32>
    %cst_8 = arith.constant 1.000000e+00 : f32
    %17 = vector.broadcast %cst_8 : f32 to vector<8x128xf32>
    %18 = arith.addf %17, %16 : vector<8x128xf32>
    %cst_9 = arith.constant 5.000000e-01 : f32
    %19 = vector.broadcast %cst_9 : f32 to vector<8x128xf32>
    %20 = arith.mulf %19, %18 : vector<8x128xf32>
    %21 = arith.mulf %8, %20 : vector<8x128xf32>
    %22 = arith.truncf %21 : vector<8x128xf32> to vector<8x128xbf16>
    %c0_10 = arith.constant 0 : index
    %c0_11 = arith.constant 0 : index
    %c0_12 = arith.constant 0 : index
    %23 = vector.load %arg9[%c0_10, %c0_11, %c0_12] : memref<1x8x128xbf16, #tpu.memory_space<vmem>>, vector<1x8x128xbf16>
    %24 = vector.shape_cast %23 : vector<1x8x128xbf16> to vector<8x128xbf16>
    %25 = vector.shape_cast %22 : vector<8x128xbf16> to vector<1x8x128xbf16>
    tpu.vector_store %arg9[%c0_10, %c0_11, %c0_12], %25 {strides = array<i32>} : memref<1x8x128xbf16, #tpu.memory_space<vmem>>, vector<1x8x128xbf16>,
    return
  }
  func.func @transform_0(%arg0: i32, %arg1: i32, %arg2: i32, %arg3: i32) -> (i32, i32, i32) {
    %c0_i32 = arith.constant 0 : i32
    return %arg0, %arg1, %arg3 : i32, i32, i32
  }
  func.func @transform_1(%arg0: i32, %arg1: i32, %arg2: i32, %arg3: i32) -> (i32, i32) {
    %c0_i32 = arith.constant 0 : i32
    return %arg3, %arg2 : i32, i32
  }
  func.func @transform_2(%arg0: i32, %arg1: i32, %arg2: i32, %arg3: i32) -> (i32, i32) {
    %c0_i32 = arith.constant 0 : i32
    %c0_i32_0 = arith.constant 0 : i32
    return %c0_i32, %arg2 : i32, i32
  }
  func.func @transform_3(%arg0: i32, %arg1: i32, %arg2: i32, %arg3: i32) -> (i32, i32, i32) {
    %c0_i32 = arith.constant 0 : i32
    %c0_i32_0 = arith.constant 0 : i32
    %c0_i32_1 = arith.constant 0 : i32
    return %arg0, %c0_i32, %c0_i32_0 : i32, i32, i32
  }
  func.func @transform_4(%arg0: i32, %arg1: i32, %arg2: i32, %arg3: i32) -> (i32, i32, i32) {
    %c0_i32 = arith.constant 0 : i32
    %c0_i32_0 = arith.constant 0 : i32
    %c0_i32_1 = arith.constant 0 : i32
    return %arg0, %c0_i32, %c0_i32_0 : i32, i32, i32
  }
  func.func @transform_5(%arg0: i32, %arg1: i32, %arg2: i32, %arg3: i32) -> (i32, i32, i32) {
    %c0_i32 = arith.constant 0 : i32
    return %arg0, %arg1, %arg2 : i32, i32, i32
  }
}

module attributes {stable_mosaic.version = 11 : i64} {
  func.func @_fused_linear_kernel(%arg0: i32, %arg1: i32, %arg2: i32, %arg3: i32, %arg4: memref<1x8x128xbf16, #tpu.memory_space<vmem>>, %arg5: memref<128x32xbf16, #tpu.memory_space<vmem>>, %arg6: memref<1x32xf32, #tpu.memory_space<vmem>>, %arg7: memref<1x1x32xbf16, #tpu.memory_space<vmem>>, %arg8: memref<1x8x32xbf16, #tpu.memory_space<vmem>>, %arg9: memref<1x8x32xbf16, #tpu.memory_space<vmem>>) attributes {dimension_semantics = [#tpu.dimension_semantics<parallel>, #tpu.dimension_semantics<parallel>, #tpu.dimension_semantics<parallel>, #tpu.dimension_semantics<arbitrary>], iteration_bounds = array<i64: 2, 1, 1, 1>, scalar_prefetch = 0 : i64, scratch_operands = 0 : i64, tpu.core_type = #tpu.core_type<tc>, window_params = [{transform_indices = @transform_0, window_bounds = array<i64: 1, 8, 128>}, {transform_indices = @transform_1, window_bounds = array<i64: 128, 32>}, {transform_indices = @transform_2, window_bounds = array<i64: 1, 32>}, {transform_indices = @transform_3, window_bounds = array<i64: 1, 1, 32>}, {transform_indices = @transform_4, window_bounds = array<i64: 1, 8, 32>}, {transform_indices = @transform_5, window_bounds = array<i64: 1, 8, 32>}]} {
    %c0 = arith.constant 0 : index
    %c0_0 = arith.constant 0 : index
    %c0_1 = arith.constant 0 : index
    %0 = vector.load %arg4[%c0, %c0_0, %c0_1] : memref<1x8x128xbf16, #tpu.memory_space<vmem>>, vector<1x8x128xbf16>
    %1 = vector.shape_cast %0 : vector<1x8x128xbf16> to vector<8x128xbf16>
    %c0_2 = arith.constant 0 : index
    %c0_3 = arith.constant 0 : index
    %2 = vector.load %arg5[%c0_2, %c0_3] : memref<128x32xbf16, #tpu.memory_space<vmem>>, vector<128x32xbf16>
    %cst = arith.constant dense<0.000000e+00> : vector<8x32xf32>
    %3 = tpu.matmul %1, %2, %cst {dimension_numbers = #tpu.dot_dimension_numbers<[1], [0], [0], [1], [0, 0, 1, 1], [], []>} : vector<8x128xbf16>, vector<128x32xbf16>, vector<8x32xf32> -> vector<8x32xf32>
    %c0_4 = arith.constant 0 : index
    %c0_5 = arith.constant 0 : index
    %4 = vector.load %arg6[%c0_4, %c0_5] : memref<1x32xf32, #tpu.memory_space<vmem>>, vector<1x32xf32>
    %5 = vector.broadcast %4 : vector<1x32xf32> to vector<8x32xf32>
    %6 = arith.addf %3, %5 : vector<8x32xf32>
    %c0_6 = arith.constant 0 : index
    %c0_7 = arith.constant 0 : index
    %c0_8 = arith.constant 0 : index
    %7 = vector.load %arg7[%c0_6, %c0_7, %c0_8] : memref<1x1x32xbf16, #tpu.memory_space<vmem>>, vector<1x1x32xbf16>
    %8 = vector.shape_cast %7 : vector<1x1x32xbf16> to vector<1x32xbf16>
    %9 = arith.extf %8 : vector<1x32xbf16> to vector<1x32xf32>
    %10 = vector.broadcast %9 : vector<1x32xf32> to vector<8x32xf32>
    %11 = arith.mulf %6, %10 : vector<8x32xf32>
    %c0_9 = arith.constant 0 : index
    %c0_10 = arith.constant 0 : index
    %c0_11 = arith.constant 0 : index
    %12 = vector.load %arg8[%c0_9, %c0_10, %c0_11] : memref<1x8x32xbf16, #tpu.memory_space<vmem>>, vector<1x8x32xbf16>
    %13 = vector.shape_cast %12 : vector<1x8x32xbf16> to vector<8x32xbf16>
    %14 = arith.extf %13 : vector<8x32xbf16> to vector<8x32xf32>
    %15 = arith.addf %11, %14 : vector<8x32xf32>
    %16 = arith.truncf %15 : vector<8x32xf32> to vector<8x32xbf16>
    %c0_12 = arith.constant 0 : index
    %c0_13 = arith.constant 0 : index
    %c0_14 = arith.constant 0 : index
    %17 = vector.load %arg9[%c0_12, %c0_13, %c0_14] : memref<1x8x32xbf16, #tpu.memory_space<vmem>>, vector<1x8x32xbf16>
    %18 = vector.shape_cast %17 : vector<1x8x32xbf16> to vector<8x32xbf16>
    %19 = vector.shape_cast %16 : vector<8x32xbf16> to vector<1x8x32xbf16>
    tpu.vector_store %arg9[%c0_12, %c0_13, %c0_14], %19 {strides = array<i32>} : memref<1x8x32xbf16, #tpu.memory_space<vmem>>, vector<1x8x32xbf16>,
    return
  }
  func.func @transform_0(%arg0: i32, %arg1: i32, %arg2: i32, %arg3: i32) -> (i32, i32, i32) {
    %c0_i32 = arith.constant 0 : i32
    return %arg0, %arg1, %arg3 : i32, i32, i32
  }
  func.func @transform_1(%arg0: i32, %arg1: i32, %arg2: i32, %arg3: i32) -> (i32, i32) {
    %c0_i32 = arith.constant 0 : i32
    return %arg3, %arg2 : i32, i32
  }
  func.func @transform_2(%arg0: i32, %arg1: i32, %arg2: i32, %arg3: i32) -> (i32, i32) {
    %c0_i32 = arith.constant 0 : i32
    %c0_i32_0 = arith.constant 0 : i32
    return %c0_i32, %arg2 : i32, i32
  }
  func.func @transform_3(%arg0: i32, %arg1: i32, %arg2: i32, %arg3: i32) -> (i32, i32, i32) {
    %c0_i32 = arith.constant 0 : i32
    %c0_i32_0 = arith.constant 0 : i32
    return %arg0, %c0_i32, %arg2 : i32, i32, i32
  }
  func.func @transform_4(%arg0: i32, %arg1: i32, %arg2: i32, %arg3: i32) -> (i32, i32, i32) {
    %c0_i32 = arith.constant 0 : i32
    return %arg0, %arg1, %arg2 : i32, i32, i32
  }
  func.func @transform_5(%arg0: i32, %arg1: i32, %arg2: i32, %arg3: i32) -> (i32, i32, i32) {
    %c0_i32 = arith.constant 0 : i32
    return %arg0, %arg1, %arg2 : i32, i32, i32
  }
}

module attributes {stable_mosaic.version = 11 : i64} {
  func.func @_final_kernel(%arg0: i32, %arg1: i32, %arg2: memref<1x8x32xbf16, #tpu.memory_space<vmem>>, %arg3: memref<1x1x32xbf16, #tpu.memory_space<vmem>>, %arg4: memref<1x1x32xbf16, #tpu.memory_space<vmem>>, %arg5: memref<1x32xf32, #tpu.memory_space<vmem>>, %arg6: memref<1x1xf32, #tpu.memory_space<vmem>>, %arg7: memref<1x8x1xf32, #tpu.memory_space<vmem>>) attributes {dimension_semantics = [#tpu.dimension_semantics<parallel>, #tpu.dimension_semantics<parallel>], iteration_bounds = array<i64: 2, 1>, scalar_prefetch = 0 : i64, scratch_operands = 0 : i64, tpu.core_type = #tpu.core_type<tc>, window_params = [{transform_indices = @transform_0, window_bounds = array<i64: 1, 8, 32>}, {transform_indices = @transform_1, window_bounds = array<i64: 1, 1, 32>}, {transform_indices = @transform_2, window_bounds = array<i64: 1, 1, 32>}, {pipeline_mode = #tpu.pipeline_mode<synchronous>, transform_indices = @transform_3, window_bounds = array<i64: 1, 32>}, {pipeline_mode = #tpu.pipeline_mode<synchronous>, transform_indices = @transform_4, window_bounds = array<i64: 1, 1>}, {transform_indices = @transform_5, window_bounds = array<i64: 1, 8, 1>}]} {
    %c0 = arith.constant 0 : index
    %c0_0 = arith.constant 0 : index
    %c0_1 = arith.constant 0 : index
    %0 = vector.load %arg2[%c0, %c0_0, %c0_1] : memref<1x8x32xbf16, #tpu.memory_space<vmem>>, vector<1x8x32xbf16>
    %1 = vector.shape_cast %0 : vector<1x8x32xbf16> to vector<8x32xbf16>
    %2 = arith.extf %1 : vector<8x32xbf16> to vector<8x32xf32>
    %cst = arith.constant dense<0.000000e+00> : vector<8xf32>
    %3 = vector.multi_reduction <add>, %2, %cst [1] : vector<8x32xf32> to vector<8xf32>
    %4 = vector.shape_cast %3 : vector<8xf32> to vector<8x1xf32>
    %cst_2 = arith.constant 3.200000e+01 : f32
    %5 = vector.broadcast %cst_2 : f32 to vector<8x1xf32>
    %6 = arith.divf %4, %5 : vector<8x1xf32>
    %7 = vector.broadcast %6 : vector<8x1xf32> to vector<8x32xf32>
    %8 = arith.subf %2, %7 : vector<8x32xf32>
    %9 = arith.mulf %8, %8 : vector<8x32xf32>
    %cst_3 = arith.constant dense<0.000000e+00> : vector<8xf32>
    %10 = vector.multi_reduction <add>, %9, %cst_3 [1] : vector<8x32xf32> to vector<8xf32>
    %11 = vector.shape_cast %10 : vector<8xf32> to vector<8x1xf32>
    %cst_4 = arith.constant 3.200000e+01 : f32
    %12 = vector.broadcast %cst_4 : f32 to vector<8x1xf32>
    %13 = arith.divf %11, %12 : vector<8x1xf32>
    %cst_5 = arith.constant 9.99999997E-7 : f32
    %14 = vector.broadcast %cst_5 : f32 to vector<8x1xf32>
    %15 = arith.addf %13, %14 : vector<8x1xf32>
    %16 = math.rsqrt %15 : vector<8x1xf32>
    %17 = vector.broadcast %16 : vector<8x1xf32> to vector<8x32xf32>
    %18 = arith.mulf %8, %17 : vector<8x32xf32>
    %c0_6 = arith.constant 0 : index
    %c0_7 = arith.constant 0 : index
    %c0_8 = arith.constant 0 : index
    %19 = vector.load %arg4[%c0_6, %c0_7, %c0_8] : memref<1x1x32xbf16, #tpu.memory_space<vmem>>, vector<1x1x32xbf16>
    %20 = vector.shape_cast %19 : vector<1x1x32xbf16> to vector<1x32xbf16>
    %21 = arith.extf %20 : vector<1x32xbf16> to vector<1x32xf32>
    %cst_9 = arith.constant 1.000000e+00 : f32
    %22 = vector.broadcast %cst_9 : f32 to vector<1x32xf32>
    %23 = arith.addf %22, %21 : vector<1x32xf32>
    %24 = vector.broadcast %23 : vector<1x32xf32> to vector<8x32xf32>
    %25 = arith.mulf %18, %24 : vector<8x32xf32>
    %c0_10 = arith.constant 0 : index
    %c0_11 = arith.constant 0 : index
    %c0_12 = arith.constant 0 : index
    %26 = vector.load %arg3[%c0_10, %c0_11, %c0_12] : memref<1x1x32xbf16, #tpu.memory_space<vmem>>, vector<1x1x32xbf16>
    %27 = vector.shape_cast %26 : vector<1x1x32xbf16> to vector<1x32xbf16>
    %28 = arith.extf %27 : vector<1x32xbf16> to vector<1x32xf32>
    %29 = vector.broadcast %28 : vector<1x32xf32> to vector<8x32xf32>
    %30 = arith.addf %25, %29 : vector<8x32xf32>
    %c0_13 = arith.constant 0 : index
    %c0_14 = arith.constant 0 : index
    %31 = vector.load %arg5[%c0_13, %c0_14] : memref<1x32xf32, #tpu.memory_space<vmem>>, vector<1x32xf32>
    %32 = vector.broadcast %31 : vector<1x32xf32> to vector<8x32xf32>
    %33 = arith.mulf %30, %32 : vector<8x32xf32>
    %cst_15 = arith.constant dense<0.000000e+00> : vector<8xf32>
    %34 = vector.multi_reduction <add>, %33, %cst_15 [1] : vector<8x32xf32> to vector<8xf32>
    %35 = vector.shape_cast %34 : vector<8xf32> to vector<8x1xf32>
    %c0_16 = arith.constant 0 : index
    %c0_17 = arith.constant 0 : index
    %36 = vector.load %arg6[%c0_16, %c0_17] : memref<1x1xf32, #tpu.memory_space<vmem>>, vector<1x1xf32>
    %37 = vector.extract %36[0, 0] : f32 from vector<1x1xf32>
    %38 = vector.broadcast %37 : f32 to vector<8x1xf32>
    %39 = arith.addf %35, %38 : vector<8x1xf32>
    %c0_18 = arith.constant 0 : index
    %c0_19 = arith.constant 0 : index
    %c0_20 = arith.constant 0 : index
    %40 = vector.load %arg7[%c0_18, %c0_19, %c0_20] : memref<1x8x1xf32, #tpu.memory_space<vmem>>, vector<1x8x1xf32>
    %41 = vector.shape_cast %40 : vector<1x8x1xf32> to vector<8x1xf32>
    %42 = vector.shape_cast %39 : vector<8x1xf32> to vector<1x8x1xf32>
    tpu.vector_store %arg7[%c0_18, %c0_19, %c0_20], %42 {strides = array<i32>} : memref<1x8x1xf32, #tpu.memory_space<vmem>>, vector<1x8x1xf32>,
    return
  }
  func.func @transform_0(%arg0: i32, %arg1: i32) -> (i32, i32, i32) {
    %c0_i32 = arith.constant 0 : i32
    %c0_i32_0 = arith.constant 0 : i32
    return %arg0, %arg1, %c0_i32 : i32, i32, i32
  }
  func.func @transform_1(%arg0: i32, %arg1: i32) -> (i32, i32, i32) {
    %c0_i32 = arith.constant 0 : i32
    %c0_i32_0 = arith.constant 0 : i32
    %c0_i32_1 = arith.constant 0 : i32
    return %arg0, %c0_i32, %c0_i32_0 : i32, i32, i32
  }
  func.func @transform_2(%arg0: i32, %arg1: i32) -> (i32, i32, i32) {
    %c0_i32 = arith.constant 0 : i32
    %c0_i32_0 = arith.constant 0 : i32
    %c0_i32_1 = arith.constant 0 : i32
    return %arg0, %c0_i32, %c0_i32_0 : i32, i32, i32
  }
  func.func @transform_3(%arg0: i32, %arg1: i32) -> (i32, i32) {
    %c0_i32 = arith.constant 0 : i32
    %c0_i32_0 = arith.constant 0 : i32
    %c0_i32_1 = arith.constant 0 : i32
    return %c0_i32, %c0_i32_0 : i32, i32
  }
  func.func @transform_4(%arg0: i32, %arg1: i32) -> (i32, i32) {
    %c0_i32 = arith.constant 0 : i32
    %c0_i32_0 = arith.constant 0 : i32
    %c0_i32_1 = arith.constant 0 : i32
    return %c0_i32, %c0_i32_0 : i32, i32
  }
  func.func @transform_5(%arg0: i32, %arg1: i32) -> (i32, i32, i32) {
    %c0_i32 = arith.constant 0 : i32
    %c0_i32_0 = arith.constant 0 : i32
    return %arg0, %arg1, %c0_i32 : i32, i32, i32
  }
}

</mosaic_0001>

<llo_original>
// kernel: dit_predictor_forward.16
$region0: #{dit_predictor_forward.16}
  #allocation0 [shape = 'u32[]', space=smem, size = 0x4, offset = 0x4, fixed_abs, tag = 'smem constant byte address 0x4 - core index']
  #allocation1 [shape = 'u32[144,128]{1,0:T(1,128)}', space=vmem, size = 0x12000, scoped, tag = 'internal scratch']
  %s0 = inlined_call_operand.vmem [shape: bf16[1,2,32], index: 0, kind: input, shape index: {}]
  %s1 = inlined_call_operand.vmem [shape: bf16[32,32], index: 1, kind: input, shape index: {}]
  %s2 = inlined_call_operand.vmem [shape: f32[1,32], index: 2, kind: input, shape index: {}]
  %s3 = inlined_call_operand.vmem [shape: bf16[1,2,32], index: 3, kind: output, shape index: {}]
  %s4 = sld [smem:[#allocation0]]
  $region22: #{dit_predictor_forward.16} parent=0
    _
  %s6 = ssub.s32 1, %s4
  %s7 = scalar_select 0, %s6, %s4
  // Predicated region
  $region2: #{dit_predictor_forward.16} parent=0 // pred_check
    _
  $region3: #{dit_predictor_forward.16} parent=0 // pred_check_branch
    %9 = sbr.rel (0) target = $region5
  $region4: #{dit_predictor_forward.16} parent=0 // pred_region
    _
  $region5: #{dit_predictor_forward.16} parent=0 // pred_fallthru
    _
  // Predicated region
  $region6: #{dit_predictor_forward.16} parent=0 // pred_check
    _
  $region7: #{dit_predictor_forward.16} parent=0 // pred_check_branch
    %11 = sbr.rel (0) target = $region9
  $region8: #{dit_predictor_forward.16} parent=0 // pred_region
    _
  $region9: #{dit_predictor_forward.16} parent=0 // pred_fallthru
    _
  // Predicated region
  $region10: #{dit_predictor_forward.16} parent=0 // pred_check
    _
  $region11: #{dit_predictor_forward.16} parent=0 // pred_check_branch
    %13 = sbr.rel (0) target = $region13
  $region12: #{dit_predictor_forward.16} parent=0 // pred_region
    _
  $region13: #{dit_predictor_forward.16} parent=0 // pred_fallthru
    _
  %v15 = vld [vmem:[%s0] sm:$0x1]
  %v16 = vld [vmem:[%s1] sm:$0xf]
  %v17 = vld [vmem:[%s1 + $0x4] sm:$0xf]
  %v18 = vld [vmem:[%s1 + $0x8] sm:$0xf]
  %v19 = vld [vmem:[%s1 + $0xc] sm:$0xf]
  %v20 = vld [vmem:[%s2] sm:$0x1]
  %v22 = vlaneseq
  %v23 = vshrl.u32 %v22, 7
  %v24 = vsub.s32 0, %v23
  %v25 = vrot.slane %v20, %v24
  %v31 = vunpack.c.l.b16 %v16
  %v32 = vunpack.c.l.b16 %v17
  %v33 = vunpack.c.l.b16 %v18
  %v34 = vunpack.c.l.b16 %v19
  %v35 = vpack.c.b16 %v32, %v31
  %v36 = vpack.c.b16 %v34, %v33
  %vm39 = vcmask 261120
  %v41 = vsel %vm39, %v15, 0
  %43 = vmatprep.subr.bf16.mxu0 0
  %44 = vmatpush1.bf16.msra.mxu0 %v35
  %45 = vmatprep.subr.bf16.mxu0 0
  %46 = vmatpush1.bf16.msra.mxu0 %v36
  %47 = vmatprep.subr.bf16.mxu0 0
  %48 = vmatpush1.bf16.msra.mxu0 0
  %49 = vmatprep.subr.bf16.mxu0 0
  %50 = vmatpush1.bf16.msra.mxu0 0
  %51 = vmatprep.subr.bf16.mxu0 0
  %52 = vmatpush1.bf16.msra.mxu0 0
  %53 = vmatprep.subr.bf16.mxu0 0
  %54 = vmatpush1.bf16.msra.mxu0 0
  %55 = vmatprep.subr.bf16.mxu0 0
  %56 = vmatpush1.bf16.msra.mxu0 0
  %57 = vmatprep.subr.bf16.mxu0 0
  %58 = vmatpush1.bf16.msra.mxu0 0
  %59 = vmatprep.subr.bf16.mxu0 0
  %60 = vmatpush1.bf16.msra.mxu0 0
  %61 = vmatprep.subr.bf16.mxu0 0
  %62 = vmatpush1.bf16.msra.mxu0 0
  %63 = vmatprep.subr.bf16.mxu0 0
  %64 = vmatpush1.bf16.msra.mxu0 0
  %65 = vmatprep.subr.bf16.mxu0 0
  %66 = vmatpush1.bf16.msra.mxu0 0
  %67 = vmatprep.subr.bf16.mxu0 0
  %68 = vmatpush1.bf16.msra.mxu0 0
  %69 = vmatprep.subr.bf16.mxu0 0
  %70 = vmatpush1.bf16.msra.mxu0 0
  %71 = vmatprep.subr.bf16.mxu0 0
  %72 = vmatpush1.bf16.msra.mxu0 0
  %73 = vmatprep.subr.bf16.mxu0 0
  %74 = vmatpush1.bf16.msra.mxu0 0
  %75 = vmatprep.mubr.bf16.mxu0 0
  %76 = vmatmul.mubr.bf16.gmra.mrb[0].mxu0 %v41
  %v77 = vpop.f32.mrb[0].mxu0
  %v78 = vadd.f32 %v25, %v77
  %v79 = vpop.f32.mrb[0].mxu0
  %v80 = vpop.f32.mrb[0].mxu0
  %v81 = vpop.f32.mrb[0].mxu0
  %82 = vdwg.mxu0
  %v83 = vxor.u32 %v78, 2147483648
  %v84 = vmul.f32 %v83, 1.442695
  %v85 = vpow.pop %v84
  %v86 = vadd.f32 %v85, 1.0
  %v87 = vrcp.pop %v86
  %v88 = vmul.f32 1.0, %v87
  %v89 = vmul.f32 %v78, %v88
  %v90 = vpack.c.bf16 %v89, %v89
  %vm91 = vcmask 253952
  %92 = vst.msk [vmem:[%s3] sm:$0x1] %vm91, %v90
  // Predicated region
  $region14: #{dit_predictor_forward.16} parent=0 // pred_check
    _
  $region15: #{dit_predictor_forward.16} parent=0 // pred_check_branch
    %94 = sbr.rel (0) target = $region17
  $region16: #{dit_predictor_forward.16} parent=0 // pred_region
    _
  $region17: #{dit_predictor_forward.16} parent=0 // pred_fallthru
    _
  // Predicated region
  $region18: #{dit_predictor_forward.16} parent=0 // pred_check
    _
  $region19: #{dit_predictor_forward.16} parent=0 // pred_check_branch
    %96 = sbr.rel (0) target = $region21
  $region20: #{dit_predictor_forward.16} parent=0 // pred_region
    _
  $region21: #{dit_predictor_forward.16} parent=0 // pred_fallthru
    _

// kernel: dit_predictor_forward.18
$region0: #{dit_predictor_forward.18}
  #allocation0 [shape = 'u32[]', space=smem, size = 0x4, offset = 0x4, fixed_abs, tag = 'smem constant byte address 0x4 - core index']
  #allocation1 [shape = 'u32[144,128]{1,0:T(1,128)}', space=vmem, size = 0x12000, scoped, tag = 'internal scratch']
  %s0 = inlined_call_operand.vmem [shape: bf16[1,2,32], index: 0, kind: input, shape index: {}]
  %s1 = inlined_call_operand.vmem [shape: bf16[32,448], index: 1, kind: input, shape index: {}]
  %s2 = inlined_call_operand.vmem [shape: f32[1,448], index: 2, kind: input, shape index: {}]
  %s3 = inlined_call_operand.vmem [shape: bf16[1,2,448], index: 3, kind: output, shape index: {}]
  %s4 = sld [smem:[#allocation0]]
  $region22: #{dit_predictor_forward.18} parent=0
    _
  %s6 = ssub.s32 1, %s4
  %s7 = scalar_select 0, %s6, %s4
  // Predicated region
  $region2: #{dit_predictor_forward.18} parent=0 // pred_check
    _
  $region3: #{dit_predictor_forward.18} parent=0 // pred_check_branch
    %9 = sbr.rel (0) target = $region5
  $region4: #{dit_predictor_forward.18} parent=0 // pred_region
    _
  $region5: #{dit_predictor_forward.18} parent=0 // pred_fallthru
    _
  // Predicated region
  $region6: #{dit_predictor_forward.18} parent=0 // pred_check
    _
  $region7: #{dit_predictor_forward.18} parent=0 // pred_check_branch
    %11 = sbr.rel (0) target = $region9
  $region8: #{dit_predictor_forward.18} parent=0 // pred_region
    _
  $region9: #{dit_predictor_forward.18} parent=0 // pred_fallthru
    _
  // Predicated region
  $region10: #{dit_predictor_forward.18} parent=0 // pred_check
    _
  $region11: #{dit_predictor_forward.18} parent=0 // pred_check_branch
    %13 = sbr.rel (0) target = $region13
  $region12: #{dit_predictor_forward.18} parent=0 // pred_region
    _
  $region13: #{dit_predictor_forward.18} parent=0 // pred_fallthru
    _
  %v15 = vld [vmem:[%s0] sm:$0x1]
  %v16 = vld [vmem:[%s1] sm:$0xff]
  %v17 = vld [vmem:[%s1 + $0x8] sm:$0xff]
  %v18 = vld [vmem:[%s1 + $0x10] sm:$0xff]
  %v19 = vld [vmem:[%s1 + $0x18] sm:$0xff]
  %v20 = vld [vmem:[%s1 + $0x20] sm:$0xff]
  %v21 = vld [vmem:[%s1 + $0x28] sm:$0xff]
  %v22 = vld [vmem:[%s1 + $0x30] sm:$0xff]
  %v23 = vld [vmem:[%s1 + $0x38] sm:$0xff]
  %v24 = vld [vmem:[%s2] sm:$0xf]
  %v26 = vlaneseq
  %v27 = vshrl.u32 %v26, 7
  %v28 = vsub.s32 0, %v27
  %v29 = vrot.slane %v24, %v28
  %v30 = vlaneseq
  %v31 = vshrl.u32 %v30, 7
  %v32 = vsub.s32 1, %v31
  %v33 = vrot.slane %v24, %v32
  %v34 = vlaneseq
  %v35 = vshrl.u32 %v34, 7
  %v36 = vsub.s32 2, %v35
  %v37 = vrot.slane %v24, %v36
  %v38 = vlaneseq
  %v39 = vshrl.u32 %v38, 7
  %v40 = vsub.s32 3, %v39
  %v41 = vrot.slane %v24, %v40
  %v54 = vunpack.c.l.b16 %v16
  %v55 = vunpack.c.h.b16 %v16
  %v56 = vunpack.c.l.b16 %v17
  %v57 = vunpack.c.h.b16 %v17
  %v58 = vunpack.c.l.b16 %v18
  %v59 = vunpack.c.h.b16 %v18
  %v60 = vunpack.c.l.b16 %v19
  %v61 = vunpack.c.h.b16 %v19
  %v62 = vunpack.c.l.b16 %v20
  %v63 = vunpack.c.h.b16 %v20
  %v64 = vunpack.c.l.b16 %v21
  %v65 = vunpack.c.h.b16 %v21
  %v66 = vunpack.c.l.b16 %v22
  %v67 = vunpack.c.h.b16 %v22
  %v68 = vunpack.c.l.b16 %v23
  %v69 = vunpack.c.h.b16 %v23
  %v70 = vpack.c.b16 %v58, %v54
  %v71 = vpack.c.b16 %v59, %v55
  %v72 = vpack.c.b16 %v60, %v56
  %v73 = vpack.c.b16 %v61, %v57
  %v74 = vpack.c.b16 %v66, %v62
  %v75 = vpack.c.b16 %v67, %v63
  %v76 = vpack.c.b16 %v68, %v64
  %v77 = vpack.c.b16 %v69, %v65
  %vm86 = vcmask 261120
  %v88 = vsel %vm86, %v15, 0
  %90 = vmatprep.subr.bf16.mxu0 %v71
  %91 = vmatpush1.bf16.msra.mxu0 %v70
  %92 = vmatprep.subr.bf16.mxu0 %v75
  %93 = vmatpush1.bf16.msra.mxu0 %v74
  %94 = vmatprep.subr.bf16.mxu0 0
  %95 = vmatpush1.bf16.msra.mxu0 0
  %96 = vmatprep.subr.bf16.mxu0 0
  %97 = vmatpush1.bf16.msra.mxu0 0
  %98 = vmatprep.subr.bf16.mxu0 0
  %99 = vmatpush1.bf16.msra.mxu0 0
  %100 = vmatprep.subr.bf16.mxu0 0
  %101 = vmatpush1.bf16.msra.mxu0 0
  %102 = vmatprep.subr.bf16.mxu0 0
  %103 = vmatpush1.bf16.msra.mxu0 0
  %104 = vmatprep.subr.bf16.mxu0 0
  %105 = vmatpush1.bf16.msra.mxu0 0
  %106 = vmatprep.subr.bf16.mxu0 0
  %107 = vmatpush1.bf16.msra.mxu0 0
  %108 = vmatprep.subr.bf16.mxu0 0
  %109 = vmatpush1.bf16.msra.mxu0 0
  %110 = vmatprep.subr.bf16.mxu0 0
  %111 = vmatpush1.bf16.msra.mxu0 0
  %112 = vmatprep.subr.bf16.mxu0 0
  %113 = vmatpush1.bf16.msra.mxu0 0
  %114 = vmatprep.subr.bf16.mxu0 0
  %115 = vmatpush1.bf16.msra.mxu0 0
  %116 = vmatprep.subr.bf16.mxu0 0
  %117 = vmatpush1.bf16.msra.mxu0 0
  %118 = vmatprep.subr.bf16.mxu0 0
  %119 = vmatpush1.bf16.msra.mxu0 0
  %120 = vmatprep.subr.bf16.mxu0 0
  %121 = vmatpush1.bf16.msra.mxu0 0
  %122 = vmatprep.mubr.bf16.mxu0 0
  %123 = vmatmul.mubr.bf16.gmra.mrb[0].mxu0 %v88
  %v124 = vpop.f32.mrb[0].mxu0
  %v125 = vadd.f32 %v29, %v124
  %v126 = vpop.f32.mrb[0].mxu0
  %v127 = vadd.f32 %v33, %v126
  %v128 = vpop.f32.mrb[0].mxu0
  %v129 = vpop.f32.mrb[0].mxu0
  %130 = vdwg.mxu0
  %131 = vmatprep.subr.bf16.mxu0 %v73
  %132 = vmatpush1.bf16.msra.mxu0 %v72
  %133 = vmatprep.subr.bf16.mxu0 %v77
  %134 = vmatpush1.bf16.msra.mxu0 %v76
  %135 = vmatprep.subr.bf16.mxu0 0
  %136 = vmatpush1.bf16.msra.mxu0 0
  %137 = vmatprep.subr.bf16.mxu0 0
  %138 = vmatpush1.bf16.msra.mxu0 0
  %139 = vmatprep.subr.bf16.mxu0 0
  %140 = vmatpush1.bf16.msra.mxu0 0
  %141 = vmatprep.subr.bf16.mxu0 0
  %142 = vmatpush1.bf16.msra.mxu0 0
  %143 = vmatprep.subr.bf16.mxu0 0
  %144 = vmatpush1.bf16.msra.mxu0 0
  %145 = vmatprep.subr.bf16.mxu0 0
  %146 = vmatpush1.bf16.msra.mxu0 0
  %147 = vmatprep.subr.bf16.mxu0 0
  %148 = vmatpush1.bf16.msra.mxu0 0
  %149 = vmatprep.subr.bf16.mxu0 0
  %150 = vmatpush1.bf16.msra.mxu0 0
  %151 = vmatprep.subr.bf16.mxu0 0
  %152 = vmatpush1.bf16.msra.mxu0 0
  %153 = vmatprep.subr.bf16.mxu0 0
  %154 = vmatpush1.bf16.msra.mxu0 0
  %155 = vmatprep.subr.bf16.mxu0 0
  %156 = vmatpush1.bf16.msra.mxu0 0
  %157 = vmatprep.subr.bf16.mxu0 0
  %158 = vmatpush1.bf16.msra.mxu0 0
  %159 = vmatprep.subr.bf16.mxu0 0
  %160 = vmatpush1.bf16.msra.mxu0 0
  %161 = vmatprep.subr.bf16.mxu0 0
  %162 = vmatpush1.bf16.msra.mxu0 0
  %163 = vmatprep.mubr.bf16.mxu0 0
  %164 = vmatmul.mubr.bf16.gmra.mrb[0].mxu0 %v88
  %v165 = vpop.f32.mrb[0].mxu0
  %v166 = vadd.f32 %v37, %v165
  %v167 = vpop.f32.mrb[0].mxu0
  %v168 = vadd.f32 %v41, %v167
  %v169 = vpop.f32.mrb[0].mxu0
  %v170 = vpop.f32.mrb[0].mxu0
  %171 = vdwg.mxu0
  %v172 = vpack.c.bf16 %v125, %v125
  %v173 = vpack.c.bf16 %v127, %v127
  %v174 = vpack.c.bf16 %v166, %v166
  %v175 = vpack.c.bf16 %v168, %v168
  %v180 = vcombine.low %v172, %v173
  %v181 = vcombine.low %v174, %v175
  %v183 = vunpack.c.l.s4 1966171168
  %v184 = vunpack.c.0.s8 %v183
  %v185 = vlaneseq
  %v186 = vshrl.u32 %v185, 7
  %v187 = vsub.s32 %v184, %v186
  %v188 = vrot.slane %v180, %v187
  %v190 = vunpack.c.l.s4 1966171168
  %v191 = vunpack.c.0.s8 %v190
  %v192 = vlaneseq
  %v193 = vshrl.u32 %v192, 7
  %v194 = vsub.s32 %v191, %v193
  %v195 = vrot.slane %v181, %v194
  %v196 = vcombine.low %v188, %v195
  %v198 = vunpack.c.l.s4 1966171168
  %v199 = vunpack.c.0.s8 %v198
  %v200 = vlaneseq
  %v201 = vshrl.u32 %v200, 7
  %v202 = vsub.s32 %v199, %v201
  %v203 = vrot.slane %v196, %v202
  %vm205 = vcmask 1040384
  %vm206 = vcmask 1041409
  %vm207 = vmor %vm206, %vm205
  %vm208 = vcmask 1042434
  %vm209 = vmor %vm208, %vm207
  %vm210 = vcmask 519171
  %vm211 = vmor %vm210, %vm209
  %212 = vst.msk [vmem:[%s3] sm:$0xf] %vm211, %v203
  // Predicated region
  $region14: #{dit_predictor_forward.18} parent=0 // pred_check
    _
  $region15: #{dit_predictor_forward.18} parent=0 // pred_check_branch
    %214 = sbr.rel (0) target = $region17
  $region16: #{dit_predictor_forward.18} parent=0 // pred_region
    _
  $region17: #{dit_predictor_forward.18} parent=0 // pred_fallthru
    _
  // Predicated region
  $region18: #{dit_predictor_forward.18} parent=0 // pred_check
    _
  $region19: #{dit_predictor_forward.18} parent=0 // pred_check_branch
    %216 = sbr.rel (0) target = $region21
  $region20: #{dit_predictor_forward.18} parent=0 // pred_region
    _
  $region21: #{dit_predictor_forward.18} parent=0 // pred_fallthru
    _

// kernel: dit_predictor_forward.15
$region0: #{dit_predictor_forward.15}
  #allocation0 [shape = 'u32[]', space=smem, size = 0x4, offset = 0x4, fixed_abs, tag = 'smem constant byte address 0x4 - core index']
  #allocation1 [shape = 'u32[144,128]{1,0:T(1,128)}', space=vmem, size = 0x12000, scoped, tag = 'internal scratch']
  %s0 = inlined_call_operand.vmem [shape: bf16[2,8,5], index: 0, kind: input, shape index: {}]
  %s1 = inlined_call_operand.vmem [shape: bf16[5,32], index: 1, kind: input, shape index: {}]
  %s2 = inlined_call_operand.vmem [shape: f32[1,32], index: 2, kind: input, shape index: {}]
  %s3 = inlined_call_operand.vmem [shape: bf16[1,8,32], index: 3, kind: input, shape index: {}]
  %s4 = inlined_call_operand.vmem [shape: bf16[2,8,32], index: 4, kind: output, shape index: {}]
  %s5 = sld [smem:[#allocation0]]
  $region49: #{dit_predictor_forward.15} parent=0
    _
  %s7 = ssub.s32 1, %s5
  %s8 = scalar_select 0, %s7, %s5
  loop: start=0, step=1, limit=4
  $region2: #{dit_predictor_forward.15} parent=0 // loop_pre_header
    _
  $region3: #{dit_predictor_forward.15} parent=0 // loop_header
    %s10 = sphi 0, %s14
    %p11 = scmp.ge.s32.totalorder %s10, 4
    %s17 = sphi 0, %s43
    %s18 = sphi 0, %s39
    %s19 = sphi 0, %s35
    %s20 = sphi 0, %s31
    %s21 = sphi 0, %s17
    %s22 = sphi 0, %s18
    %s23 = sphi 0, %s19
    %s24 = sphi 0, %s20
    %s25 = sphi 0, %s21
    %s26 = sphi 0, %s22
    %s27 = sphi 0, %s23
    %s28 = sphi 0, %s24
    %s50 = sphi 0, %s52
    %s53 = sphi 0, %s50
    %s54 = sphi 0, %s53
    %s70 = sphi 0, %s54
    %s78 = sphi 0, %s80
    %s81 = sphi 0, %s78
    %s82 = sphi 0, %s81
    %s98 = sphi 0, %s82
    %s104 = sphi 0, %s106
    %s107 = sphi 0, %s104
    %s108 = sphi 0, %s107
    %s124 = sphi 0, %s108
    %s132 = sphi 0, %s134
    %s135 = sphi 0, %s132
    %s136 = sphi 0, %s135
    %s152 = sphi 0, %s136
    %s162 = sphi 0, %s164
    %s165 = sphi 0, %s162
    %s166 = sphi 0, %s165
    %s182 = sphi 0, %s166
  $region4: #{dit_predictor_forward.15} parent=0 // loop_header_branch
    %13 = sbr.rel (%p11) target = $region8
  $region5: #{dit_predictor_forward.15} parent=0 // loop_body
    %s15 = ssub.s32 %s10, 1
    %s16 = ssub.s32 %s10, 2
    %s29 = sadd.s32 1, %s20
    %p30 = scmp.ge.s32.totalorder %s29, 1
    %s31 = scalar_select %p30, 0, %s29
    %s32 = sadd.s32 1, %s19
    %s33 = scalar_select %p30, %s32, %s19
    %p34 = scmp.ge.s32.totalorder %s33, 1
    %s35 = scalar_select %p34, 0, %s33
    %s36 = sadd.s32 1, %s18
    %s37 = scalar_select %p34, %s36, %s18
    %p38 = scmp.ge.s32.totalorder %s37, 1
    %s39 = scalar_select %p38, 0, %s37
    %s40 = sadd.s32 1, %s17
    %s41 = scalar_select %p38, %s40, %s17
    %p42 = scmp.ge.s32.totalorder %s41, 2
    %s43 = scalar_select %p42, 0, %s41
    %s44 = ssub.s32 %s17, %s43
    %s45 = ssub.s32 %s18, %s39
    %s46 = sor.u32 %s44, %s45
    %s47 = ssub.s32 %s20, %s31
    %s48 = sor.u32 %s46, %s47
    %p49 = scmp.eq.s32.totalorder %s48, 0
    %s51 = sadd.s32 %s50, 1
    %s52 = scalar_select %p49, %s50, %s51
    %p55 = pneg %p49
    %p56 = scmp.eq.s32.totalorder %s10, 1
    %p57 = por %p55, %p56
    %p58 = scmp.ne.s32.totalorder %s50, %s53
    %p59 = scmp.eq.s32.totalorder %s10, 0
    %p60 = por %p58, %p59
    %p61 = scmp.ne.s32.totalorder %s50, %s53
    %p62 = scmp.eq.s32.totalorder %s15, 1
    %p63 = por %p61, %p62
    %p64 = scmp.ne.s32.totalorder %s53, %s54
    %p65 = scmp.eq.s32.totalorder %s15, 0
    %p66 = por %p64, %p65
    %p67 = scmp.ne.s32.totalorder %s53, %s54
    %p68 = scmp.eq.s32.totalorder %s16, 1
    %p69 = por %p67, %p68
    %p71 = scmp.ne.s32.totalorder %s54, %s70
    %p72 = scmp.eq.s32.totalorder %s16, 0
    %p73 = por %p71, %p72
    %s74 = ssub.s32 %s20, %s31
    %s75 = ssub.s32 %s19, %s35
    %s76 = sor.u32 %s74, %s75
    %p77 = scmp.eq.s32.totalorder %s76, 0
    %s79 = sadd.s32 %s78, 1
    %s80 = scalar_select %p77, %s78, %s79
    %p83 = pneg %p77
    %p84 = scmp.eq.s32.totalorder %s10, 1
    %p85 = por %p83, %p84
    %p86 = scmp.ne.s32.totalorder %s78, %s81
    %p87 = scmp.eq.s32.totalorder %s10, 0
    %p88 = por %p86, %p87
    %p89 = scmp.ne.s32.totalorder %s78, %s81
    %p90 = scmp.eq.s32.totalorder %s15, 1
    %p91 = por %p89, %p90
    %p92 = scmp.ne.s32.totalorder %s81, %s82
    %p93 = scmp.eq.s32.totalorder %s15, 0
    %p94 = por %p92, %p93
    %p95 = scmp.ne.s32.totalorder %s81, %s82
    %p96 = scmp.eq.s32.totalorder %s16, 1
    %p97 = por %p95, %p96
    %p99 = scmp.ne.s32.totalorder %s82, %s98
    %p100 = scmp.eq.s32.totalorder %s16, 0
    %p101 = por %p99, %p100
    %s102 = ssub.s32 %s19, %s35
    %p103 = scmp.eq.s32.totalorder %s102, 0
    %s105 = sadd.s32 %s104, 1
    %s106 = scalar_select %p103, %s104, %s105
    %p109 = pneg %p103
    %p110 = scmp.eq.s32.totalorder %s10, 1
    %p111 = por %p109, %p110
    %p112 = scmp.ne.s32.totalorder %s104, %s107
    %p113 = scmp.eq.s32.totalorder %s10, 0
    %p114 = por %p112, %p113
    %p115 = scmp.ne.s32.totalorder %s104, %s107
    %p116 = scmp.eq.s32.totalorder %s15, 1
    %p117 = por %p115, %p116
    %p118 = scmp.ne.s32.totalorder %s107, %s108
    %p119 = scmp.eq.s32.totalorder %s15, 0
    %p120 = por %p118, %p119
    %p121 = scmp.ne.s32.totalorder %s107, %s108
    %p122 = scmp.eq.s32.totalorder %s16, 1
    %p123 = por %p121, %p122
    %p125 = scmp.ne.s32.totalorder %s108, %s124
    %p126 = scmp.eq.s32.totalorder %s16, 0
    %p127 = por %p125, %p126
    %s128 = ssub.s32 %s18, %s39
    %s129 = ssub.s32 %s19, %s35
    %s130 = sor.u32 %s128, %s129
    %p131 = scmp.eq.s32.totalorder %s130, 0
    %s133 = sadd.s32 %s132, 1
    %s134 = scalar_select %p131, %s132, %s133
    %p137 = pneg %p131
    %p138 = scmp.eq.s32.totalorder %s10, 1
    %p139 = por %p137, %p138
    %p140 = scmp.ne.s32.totalorder %s132, %s135
    %p141 = scmp.eq.s32.totalorder %s10, 0
    %p142 = por %p140, %p141
    %p143 = scmp.ne.s32.totalorder %s132, %s135
    %p144 = scmp.eq.s32.totalorder %s15, 1
    %p145 = por %p143, %p144
    %p146 = scmp.ne.s32.totalorder %s135, %s136
    %p147 = scmp.eq.s32.totalorder %s15, 0
    %p148 = por %p146, %p147
    %p149 = scmp.ne.s32.totalorder %s135, %s136
    %p150 = scmp.eq.s32.totalorder %s16, 1
    %p151 = por %p149, %p150
    %p153 = scmp.ne.s32.totalorder %s136, %s152
    %p154 = scmp.eq.s32.totalorder %s16, 0
    %p155 = por %p153, %p154
    %s156 = ssub.s32 %s17, %s43
    %s157 = ssub.s32 %s18, %s39
    %s158 = sor.u32 %s156, %s157
    %s159 = ssub.s32 %s19, %s35
    %s160 = sor.u32 %s158, %s159
    %p161 = scmp.eq.s32.totalorder %s160, 0
    %s163 = sadd.s32 %s162, 1
    %s164 = scalar_select %p161, %s162, %s163
    %p167 = pneg %p161
    %p168 = scmp.eq.s32.totalorder %s10, 1
    %p169 = por %p167, %p168
    %p170 = scmp.ne.s32.totalorder %s162, %s165
    %p171 = scmp.eq.s32.totalorder %s10, 0
    %p172 = por %p170, %p171
    %p173 = scmp.ne.s32.totalorder %s162, %s165
    %p174 = scmp.eq.s32.totalorder %s15, 1
    %p175 = por %p173, %p174
    %p176 = scmp.ne.s32.totalorder %s165, %s166
    %p177 = scmp.eq.s32.totalorder %s15, 0
    %p178 = por %p176, %p177
    %p179 = scmp.ne.s32.totalorder %s165, %s166
    %p180 = scmp.eq.s32.totalorder %s16, 1
    %p181 = por %p179, %p180
    %p183 = scmp.ne.s32.totalorder %s166, %s182
    %p184 = scmp.eq.s32.totalorder %s16, 0
    %p185 = por %p183, %p184
    %p186 = scmp.le.s32.totalorder 1, %s10
    %p187 = scmp.lt.s32.totalorder %s10, 3
    %p188 = pnand %p186, %p187
    %p189 = pneg %p188
    // Predicated region
    $region9: #{dit_predictor_forward.15} parent=5 // pred_check
      _
    $region10: #{dit_predictor_forward.15} parent=5 // pred_check_branch
      %191 = sbr.rel (%p188) target = $region12
    $region11: #{dit_predictor_forward.15} parent=5 // pred_region
      %s192 = ssub.s32 %s10, 1
      // Predicated region
      $region13: #{dit_predictor_forward.15} parent=11 // pred_check
        %p193 = pneg %p94
      $region14: #{dit_predictor_forward.15} parent=11 // pred_check_branch
        %195 = sbr.rel (%p193) target = $region16
      $region15: #{dit_predictor_forward.15} parent=11 // pred_region
        %p196 = scmp.lt.s32.totalorder %s24, 0
        %s197 = scalar_select %p196, %s24, 0
        %p198 = scmp.lt.s32.totalorder %s23, 0
        %s199 = scalar_select %p198, %s23, 0
        %s200 = sadd.s32 %s199, %s197
        %s201 = smul.addr %s200, 4
        %s202 = scalar_lea.vmem %s1, %s201
      $region16: #{dit_predictor_forward.15} parent=11 // pred_fallthru
        _
      // Predicated region
      $region17: #{dit_predictor_forward.15} parent=11 // pred_check
        %p203 = pneg %p120
      $region18: #{dit_predictor_forward.15} parent=11 // pred_check_branch
        %205 = sbr.rel (%p203) target = $region20
      $region19: #{dit_predictor_forward.15} parent=11 // pred_region
        %p206 = scmp.lt.s32.totalorder %s23, 0
        %s207 = scalar_select %p206, %s23, 0
        %s208 = scalar_lea.vmem %s2, %s207
      $region20: #{dit_predictor_forward.15} parent=11 // pred_fallthru
        _
      // Predicated region
      $region21: #{dit_predictor_forward.15} parent=11 // pred_check
        %p209 = pneg %p148
      $region22: #{dit_predictor_forward.15} parent=11 // pred_check_branch
        %211 = sbr.rel (%p209) target = $region24
      $region23: #{dit_predictor_forward.15} parent=11 // pred_region
        %p212 = scmp.lt.s32.totalorder %s22, 0
        %s213 = scalar_select %p212, %s22, 0
        %p214 = scmp.lt.s32.totalorder %s23, 0
        %s215 = scalar_select %p214, %s23, 0
        %s216 = sadd.s32 %s215, %s213
        %s217 = smul.addr %s216, 4
        %s218 = scalar_lea.vmem %s3, %s217
      $region24: #{dit_predictor_forward.15} parent=11 // pred_fallthru
        _
    $region12: #{dit_predictor_forward.15} parent=5 // pred_fallthru
      _
    %p219 = scmp.lt.s32.totalorder %s10, 2
    // Predicated region
    $region25: #{dit_predictor_forward.15} parent=5 // pred_check
      %p220 = pneg %p219
    $region26: #{dit_predictor_forward.15} parent=5 // pred_check_branch
      %222 = sbr.rel (%p220) target = $region28
    $region27: #{dit_predictor_forward.15} parent=5 // pred_region
      // Predicated region
      $region29: #{dit_predictor_forward.15} parent=27 // pred_check
        %p223 = pneg %p60
      $region30: #{dit_predictor_forward.15} parent=27 // pred_check_branch
        %225 = sbr.rel (%p223) target = $region32
      $region31: #{dit_predictor_forward.15} parent=27 // pred_region
        %p226 = scmp.lt.s32.totalorder %s17, 1
        %s227 = scalar_select %p226, %s17, 1
        %p228 = scmp.lt.s32.totalorder %s18, 0
        %s229 = scalar_select %p228, %s18, 0
        %p230 = scmp.lt.s32.totalorder %s20, 0
        %s231 = scalar_select %p230, %s20, 0
        %s232 = sadd.s32 %s231, %s229
        %s233 = sadd.s32 %s232, %s227
        %s234 = smul.addr %s233, 4
        %s235 = scalar_lea.vmem %s0, %s234
      $region32: #{dit_predictor_forward.15} parent=27 // pred_fallthru
        _
    $region28: #{dit_predictor_forward.15} parent=5 // pred_fallthru
      _
    %p236 = scmp.le.s32.totalorder 1, %s10
    %p237 = scmp.lt.s32.totalorder %s10, 3
    %p238 = pnand %p236, %p237
    %p239 = pneg %p238
    // Predicated region
    $region33: #{dit_predictor_forward.15} parent=5 // pred_check
      _
    $region34: #{dit_predictor_forward.15} parent=5 // pred_check_branch
      %241 = sbr.rel (%p238) target = $region36
    $region35: #{dit_predictor_forward.15} parent=5 // pred_region
      %s242 = ssub.s32 %s10, 1
      %p243 = scmp.lt.s32.totalorder %s21, 1
      %s244 = scalar_select %p243, %s21, 1
      %p245 = scmp.lt.s32.totalorder %s22, 0
      %s246 = scalar_select %p245, %s22, 0
      %p247 = scmp.lt.s32.totalorder %s24, 0
      %s248 = scalar_select %p247, %s24, 0
      %s249 = sadd.s32 %s248, %s246
      %s250 = sadd.s32 %s249, %s244
      %s251 = smul.addr %s250, 4
      %s252 = scalar_lea.vmem %s0, %s251
      %p253 = pneg %p66
      %p254 = pneg %p63
      %p255 = scmp.lt.s32.totalorder %s24, 0
      %s256 = scalar_select %p255, %s24, 0
      %p257 = scmp.lt.s32.totalorder %s23, 0
      %s258 = scalar_select %p257, %s23, 0
      %s259 = sadd.s32 %s258, %s256
      %s260 = smul.addr %s259, 4
      %s261 = scalar_lea.vmem %s1, %s260
      %p262 = pneg %p94
      %p263 = pneg %p91
      %p264 = scmp.lt.s32.totalorder %s23, 0
      %s265 = scalar_select %p264, %s23, 0
      %s266 = scalar_lea.vmem %s2, %s265
      %p267 = pneg %p120
      %p268 = pneg %p117
      %p269 = scmp.lt.s32.totalorder %s22, 0
      %s270 = scalar_select %p269, %s22, 0
      %p271 = scmp.lt.s32.totalorder %s23, 0
      %s272 = scalar_select %p271, %s23, 0
      %s273 = sadd.s32 %s272, %s270
      %s274 = smul.addr %s273, 4
      %s275 = scalar_lea.vmem %s3, %s274
      %p276 = pneg %p148
      %p277 = pneg %p145
      %p278 = pneg %p178
      %p279 = pneg %p175
      %p280 = scmp.lt.s32.totalorder %s21, 1
      %s281 = scalar_select %p280, %s21, 1
      %p282 = scmp.lt.s32.totalorder %s22, 0
      %s283 = scalar_select %p282, %s22, 0
      %p284 = scmp.lt.s32.totalorder %s23, 0
      %s285 = scalar_select %p284, %s23, 0
      %s286 = sadd.s32 %s285, %s283
      %s287 = sadd.s32 %s286, %s281
      %s288 = smul.addr %s287, 4
      %s289 = scalar_lea.vmem %s4, %s288
      %p290 = scmp.lt.s32.totalorder %s21, 1
      %s291 = scalar_select %p290, %s21, 1
      %p292 = scmp.lt.s32.totalorder %s22, 0
      %s293 = scalar_select %p292, %s22, 0
      %p294 = scmp.lt.s32.totalorder %s24, 0
      %s295 = scalar_select %p294, %s24, 0
      %s296 = sadd.s32 %s295, %s293
      %s297 = sadd.s32 %s296, %s291
      %s298 = smul.addr %s297, 4
      %s299 = scalar_lea.vmem %s0, %s298
      %p300 = scmp.lt.s32.totalorder %s24, 0
      %s301 = scalar_select %p300, %s24, 0
      %p302 = scmp.lt.s32.totalorder %s23, 0
      %s303 = scalar_select %p302, %s23, 0
      %s304 = sadd.s32 %s303, %s301
      %s305 = smul.addr %s304, 4
      %s306 = scalar_lea.vmem %s1, %s305
      %p307 = scmp.lt.s32.totalorder %s23, 0
      %s308 = scalar_select %p307, %s23, 0
      %s309 = scalar_lea.vmem %s2, %s308
      %p310 = scmp.lt.s32.totalorder %s22, 0
      %s311 = scalar_select %p310, %s22, 0
      %p312 = scmp.lt.s32.totalorder %s23, 0
      %s313 = scalar_select %p312, %s23, 0
      %s314 = sadd.s32 %s313, %s311
      %s315 = smul.addr %s314, 4
      %s316 = scalar_lea.vmem %s3, %s315
      %p317 = scmp.lt.s32.totalorder %s21, 1
      %s318 = scalar_select %p317, %s21, 1
      %p319 = scmp.lt.s32.totalorder %s22, 0
      %s320 = scalar_select %p319, %s22, 0
      %p321 = scmp.lt.s32.totalorder %s23, 0
      %s322 = scalar_select %p321, %s23, 0
      %s323 = sadd.s32 %s322, %s320
      %s324 = sadd.s32 %s323, %s318
      %s325 = smul.addr %s324, 4
      %s326 = scalar_lea.vmem %s4, %s325
      %v328 = vld [vmem:[%s299] sm:$0xf]
      %v329 = vld [vmem:[%s306] sm:$0x7]
      %v330 = vld [vmem:[%s309] sm:$0x1]
      %v332 = vlaneseq
      %v333 = vshrl.u32 %v332, 7
      %v334 = vsub.s32 0, %v333
      %v335 = vrot.slane %v330, %v334
      %vm337 = vcmask 39936
      %v339 = vsel %vm337, %v328, 0
      %vm341 = vcmask 1041408
      %vm342 = vcmask 1042432
      %v343 = vsel %vm341, 4294967295, 65535
      %v344 = vsel %vm342, %v343, 0
      %v346 = vand.u32 %v329, %v344
      %348 = vmatprep.subr.bf16.mxu0 0
      %349 = vmatpush1.bf16.msra.mxu0 %v346
      %350 = vmatprep.subr.bf16.mxu0 0
      %351 = vmatpush1.bf16.msra.mxu0 0
      %352 = vmatprep.subr.bf16.mxu0 0
      %353 = vmatpush1.bf16.msra.mxu0 0
      %354 = vmatprep.subr.bf16.mxu0 0
      %355 = vmatpush1.bf16.msra.mxu0 0
      %356 = vmatprep.subr.bf16.mxu0 0
      %357 = vmatpush1.bf16.msra.mxu0 0
      %358 = vmatprep.subr.bf16.mxu0 0
      %359 = vmatpush1.bf16.msra.mxu0 0
      %360 = vmatprep.subr.bf16.mxu0 0
      %361 = vmatpush1.bf16.msra.mxu0 0
      %362 = vmatprep.subr.bf16.mxu0 0
      %363 = vmatpush1.bf16.msra.mxu0 0
      %364 = vmatprep.subr.bf16.mxu0 0
      %365 = vmatpush1.bf16.msra.mxu0 0
      %366 = vmatprep.subr.bf16.mxu0 0
      %367 = vmatpush1.bf16.msra.mxu0 0
      %368 = vmatprep.subr.bf16.mxu0 0
      %369 = vmatpush1.bf16.msra.mxu0 0
      %370 = vmatprep.subr.bf16.mxu0 0
      %371 = vmatpush1.bf16.msra.mxu0 0
      %372 = vmatprep.subr.bf16.mxu0 0
      %373 = vmatpush1.bf16.msra.mxu0 0
      %374 = vmatprep.subr.bf16.mxu0 0
      %375 = vmatpush1.bf16.msra.mxu0 0
      %376 = vmatprep.subr.bf16.mxu0 0
      %377 = vmatpush1.bf16.msra.mxu0 0
      %378 = vmatprep.subr.bf16.mxu0 0
      %379 = vmatpush1.bf16.msra.mxu0 0
      %380 = vmatprep.mubr.bf16.mxu0 0
      %381 = vmatmul.mubr.bf16.gmra.mrb[0].mxu0 %v339
      %v382 = vpop.f32.mrb[0].mxu0
      %v383 = vadd.f32 %v335, %v382
      %v384 = vpop.f32.mrb[0].mxu0
      %v385 = vpop.f32.mrb[0].mxu0
      %v386 = vpop.f32.mrb[0].mxu0
      %387 = vdwg.mxu0
      %v388 = vld [vmem:[%s316] sm:$0xf]
      %v389 = vunpack.c.l.bf16 %v388
      %v390 = vadd.f32 %v383, %v389
      %v391 = vpack.c.bf16 %v390, %v390
      %vm392 = vcmask 257024
      %393 = vst.msk [vmem:[%s326] sm:$0xf] %vm392, %v391
      %p394 = scmp.lt.s32.totalorder %s21, 1
      %s395 = scalar_select %p394, %s21, 1
      %p396 = scmp.lt.s32.totalorder %s22, 0
      %s397 = scalar_select %p396, %s22, 0
      %p398 = scmp.lt.s32.totalorder %s23, 0
      %s399 = scalar_select %p398, %s23, 0
      %s400 = sadd.s32 %s399, %s397
      %s401 = sadd.s32 %s400, %s395
      %s402 = smul.addr %s401, 4
      %s403 = scalar_lea.vmem %s4, %s402
      // Predicated region
      $region37: #{dit_predictor_forward.15} parent=35 // pred_check
        %p404 = pneg %p175
      $region38: #{dit_predictor_forward.15} parent=35 // pred_check_branch
        %406 = sbr.rel (%p404) target = $region40
      $region39: #{dit_predictor_forward.15} parent=35 // pred_region
        _
      $region40: #{dit_predictor_forward.15} parent=35 // pred_fallthru
        _
    $region36: #{dit_predictor_forward.15} parent=5 // pred_fallthru
      _
    %p407 = scmp.le.s32.totalorder 2, %s10
    // Predicated region
    $region41: #{dit_predictor_forward.15} parent=5 // pred_check
      %p408 = pneg %p407
    $region42: #{dit_predictor_forward.15} parent=5 // pred_check_branch
      %410 = sbr.rel (%p408) target = $region44
    $region43: #{dit_predictor_forward.15} parent=5 // pred_region
      %s411 = ssub.s32 %s10, 2
      // Predicated region
      $region45: #{dit_predictor_forward.15} parent=43 // pred_check
        %p412 = pneg %p181
      $region46: #{dit_predictor_forward.15} parent=43 // pred_check_branch
        %414 = sbr.rel (%p412) target = $region48
      $region47: #{dit_predictor_forward.15} parent=43 // pred_region
        %p415 = scmp.lt.s32.totalorder %s25, 1
        %s416 = scalar_select %p415, %s25, 1
        %p417 = scmp.lt.s32.totalorder %s26, 0
        %s418 = scalar_select %p417, %s26, 0
        %p419 = scmp.lt.s32.totalorder %s27, 0
        %s420 = scalar_select %p419, %s27, 0
        %s421 = sadd.s32 %s420, %s418
        %s422 = sadd.s32 %s421, %s416
        %s423 = smul.addr %s422, 4
        %s424 = scalar_lea.vmem %s4, %s423
      $region48: #{dit_predictor_forward.15} parent=43 // pred_fallthru
        _
    $region44: #{dit_predictor_forward.15} parent=5 // pred_fallthru
      _
  $region6: #{dit_predictor_forward.15} parent=0 // loop_footer
    %s14 = sadd.s32 1, %s10
  $region7: #{dit_predictor_forward.15} parent=0 // loop_footer_branch
    %9 = sbr.rel target = $region3
  $region8: #{dit_predictor_forward.15} parent=0 // loop_exit
    _

// kernel: dit_predictor_forward.19
$region0: #{dit_predictor_forward.19}
  #allocation0 [shape = 'u32[]', space=smem, size = 0x4, offset = 0x4, fixed_abs, tag = 'smem constant byte address 0x4 - core index']
  #allocation1 [shape = 'u32[144,128]{1,0:T(1,128)}', space=vmem, size = 0x12000, scoped, tag = 'internal scratch']
  #allocation2 [shape = 'bf16[8,32]{1,0:T(8,128)(2,1)}', space=vmem, size = 0x800, scoped, tag = 'scratch operand']
  %s0 = inlined_call_operand.vmem [shape: bf16[2,8,32], index: 0, kind: input, shape index: {}]
  %s1 = inlined_call_operand.vmem [shape: bf16[2,1,32], index: 1, kind: input, shape index: {}]
  %s2 = inlined_call_operand.vmem [shape: bf16[2,1,32], index: 2, kind: input, shape index: {}]
  %s3 = inlined_call_operand.vmem [shape: bf16[2,32,48], index: 3, kind: input, shape index: {}]
  %s4 = inlined_call_operand.vmem [shape: f32[2,1,48], index: 4, kind: input, shape index: {}]
  %s5 = inlined_call_operand.vmem [shape: bf16[2,2,8,16], index: 5, kind: output, shape index: {0}]
  %s6 = inlined_call_operand.vmem [shape: bf16[2,2,8,16], index: 6, kind: output, shape index: {1}]
  %s7 = inlined_call_operand.vmem [shape: bf16[2,2,8,16], index: 7, kind: output, shape index: {2}]
  %8 = xla_tuple %s5, %s6, %s7
  %s9 = sld [smem:[#allocation0]]
  $region73: #{dit_predictor_forward.19} parent=0
    _
  %s11 = ssub.s32 1, %s9
  %s12 = scalar_select 0, %s11, %s9
  loop: start=0, step=1, limit=6
  $region2: #{dit_predictor_forward.19} parent=0 // loop_pre_header
    _
  $region3: #{dit_predictor_forward.19} parent=0 // loop_header
    %s14 = sphi 0, %s18
    %p15 = scmp.ge.s32.totalorder %s14, 6
    %s21 = sphi 0, %s40
    %s22 = sphi 0, %s36
    %s23 = sphi 0, %s32
    %s24 = sphi 0, %s21
    %s25 = sphi 0, %s22
    %s26 = sphi 0, %s23
    %s27 = sphi 0, %s24
    %s28 = sphi 0, %s25
    %s29 = sphi 0, %s26
    %s45 = sphi 0, %s47
    %s48 = sphi 0, %s45
    %s49 = sphi 0, %s48
    %s65 = sphi 0, %s49
    %s71 = sphi 0, %s73
    %s74 = sphi 0, %s71
    %s75 = sphi 0, %s74
    %s91 = sphi 0, %s75
    %s97 = sphi 0, %s99
    %s100 = sphi 0, %s97
    %s101 = sphi 0, %s100
    %s117 = sphi 0, %s101
    %s123 = sphi 0, %s125
    %s126 = sphi 0, %s123
    %s127 = sphi 0, %s126
    %s143 = sphi 0, %s127
    %s149 = sphi 0, %s151
    %s152 = sphi 0, %s149
    %s153 = sphi 0, %s152
    %s169 = sphi 0, %s153
    %s179 = sphi 0, %s181
    %s182 = sphi 0, %s179
    %s183 = sphi 0, %s182
    %s199 = sphi 0, %s183
    %s209 = sphi 0, %s211
    %s212 = sphi 0, %s209
    %s213 = sphi 0, %s212
    %s229 = sphi 0, %s213
    %s239 = sphi 0, %s241
    %s242 = sphi 0, %s239
    %s243 = sphi 0, %s242
    %s259 = sphi 0, %s243
  $region4: #{dit_predictor_forward.19} parent=0 // loop_header_branch
    %17 = sbr.rel (%p15) target = $region8
  $region5: #{dit_predictor_forward.19} parent=0 // loop_body
    %s19 = ssub.s32 %s14, 1
    %s20 = ssub.s32 %s14, 2
    %s30 = sadd.s32 1, %s23
    %p31 = scmp.ge.s32.totalorder %s30, 2
    %s32 = scalar_select %p31, 0, %s30
    %s33 = sadd.s32 1, %s22
    %s34 = scalar_select %p31, %s33, %s22
    %p35 = scmp.ge.s32.totalorder %s34, 1
    %s36 = scalar_select %p35, 0, %s34
    %s37 = sadd.s32 1, %s21
    %s38 = scalar_select %p35, %s37, %s21
    %p39 = scmp.ge.s32.totalorder %s38, 2
    %s40 = scalar_select %p39, 0, %s38
    %s41 = ssub.s32 %s21, %s40
    %s42 = ssub.s32 %s22, %s36
    %s43 = sor.u32 %s41, %s42
    %p44 = scmp.eq.s32.totalorder %s43, 0
    %s46 = sadd.s32 %s45, 1
    %s47 = scalar_select %p44, %s45, %s46
    %p50 = pneg %p44
    %p51 = scmp.eq.s32.totalorder %s14, 3
    %p52 = por %p50, %p51
    %p53 = scmp.ne.s32.totalorder %s45, %s48
    %p54 = scmp.eq.s32.totalorder %s14, 0
    %p55 = por %p53, %p54
    %p56 = scmp.ne.s32.totalorder %s45, %s48
    %p57 = scmp.eq.s32.totalorder %s19, 3
    %p58 = por %p56, %p57
    %p59 = scmp.ne.s32.totalorder %s48, %s49
    %p60 = scmp.eq.s32.totalorder %s19, 0
    %p61 = por %p59, %p60
    %p62 = scmp.ne.s32.totalorder %s48, %s49
    %p63 = scmp.eq.s32.totalorder %s20, 3
    %p64 = por %p62, %p63
    %p66 = scmp.ne.s32.totalorder %s49, %s65
    %p67 = scmp.eq.s32.totalorder %s20, 0
    %p68 = por %p66, %p67
    %s69 = ssub.s32 %s21, %s40
    %p70 = scmp.eq.s32.totalorder %s69, 0
    %s72 = sadd.s32 %s71, 1
    %s73 = scalar_select %p70, %s71, %s72
    %p76 = pneg %p70
    %p77 = scmp.eq.s32.totalorder %s14, 3
    %p78 = por %p76, %p77
    %p79 = scmp.ne.s32.totalorder %s71, %s74
    %p80 = scmp.eq.s32.totalorder %s14, 0
    %p81 = por %p79, %p80
    %p82 = scmp.ne.s32.totalorder %s71, %s74
    %p83 = scmp.eq.s32.totalorder %s19, 3
    %p84 = por %p82, %p83
    %p85 = scmp.ne.s32.totalorder %s74, %s75
    %p86 = scmp.eq.s32.totalorder %s19, 0
    %p87 = por %p85, %p86
    %p88 = scmp.ne.s32.totalorder %s74, %s75
    %p89 = scmp.eq.s32.totalorder %s20, 3
    %p90 = por %p88, %p89
    %p92 = scmp.ne.s32.totalorder %s75, %s91
    %p93 = scmp.eq.s32.totalorder %s20, 0
    %p94 = por %p92, %p93
    %s95 = ssub.s32 %s21, %s40
    %p96 = scmp.eq.s32.totalorder %s95, 0
    %s98 = sadd.s32 %s97, 1
    %s99 = scalar_select %p96, %s97, %s98
    %p102 = pneg %p96
    %p103 = scmp.eq.s32.totalorder %s14, 3
    %p104 = por %p102, %p103
    %p105 = scmp.ne.s32.totalorder %s97, %s100
    %p106 = scmp.eq.s32.totalorder %s14, 0
    %p107 = por %p105, %p106
    %p108 = scmp.ne.s32.totalorder %s97, %s100
    %p109 = scmp.eq.s32.totalorder %s19, 3
    %p110 = por %p108, %p109
    %p111 = scmp.ne.s32.totalorder %s100, %s101
    %p112 = scmp.eq.s32.totalorder %s19, 0
    %p113 = por %p111, %p112
    %p114 = scmp.ne.s32.totalorder %s100, %s101
    %p115 = scmp.eq.s32.totalorder %s20, 3
    %p116 = por %p114, %p115
    %p118 = scmp.ne.s32.totalorder %s101, %s117
    %p119 = scmp.eq.s32.totalorder %s20, 0
    %p120 = por %p118, %p119
    %s121 = ssub.s32 %s23, %s32
    %p122 = scmp.eq.s32.totalorder %s121, 0
    %s124 = sadd.s32 %s123, 1
    %s125 = scalar_select %p122, %s123, %s124
    %p128 = pneg %p122
    %p129 = scmp.eq.s32.totalorder %s14, 3
    %p130 = por %p128, %p129
    %p131 = scmp.ne.s32.totalorder %s123, %s126
    %p132 = scmp.eq.s32.totalorder %s14, 0
    %p133 = por %p131, %p132
    %p134 = scmp.ne.s32.totalorder %s123, %s126
    %p135 = scmp.eq.s32.totalorder %s19, 3
    %p136 = por %p134, %p135
    %p137 = scmp.ne.s32.totalorder %s126, %s127
    %p138 = scmp.eq.s32.totalorder %s19, 0
    %p139 = por %p137, %p138
    %p140 = scmp.ne.s32.totalorder %s126, %s127
    %p141 = scmp.eq.s32.totalorder %s20, 3
    %p142 = por %p140, %p141
    %p144 = scmp.ne.s32.totalorder %s127, %s143
    %p145 = scmp.eq.s32.totalorder %s20, 0
    %p146 = por %p144, %p145
    %s147 = ssub.s32 %s23, %s32
    %p148 = scmp.eq.s32.totalorder %s147, 0
    %s150 = sadd.s32 %s149, 1
    %s151 = scalar_select %p148, %s149, %s150
    %p154 = pneg %p148
    %p155 = scmp.eq.s32.totalorder %s14, 3
    %p156 = por %p154, %p155
    %p157 = scmp.ne.s32.totalorder %s149, %s152
    %p158 = scmp.eq.s32.totalorder %s14, 0
    %p159 = por %p157, %p158
    %p160 = scmp.ne.s32.totalorder %s149, %s152
    %p161 = scmp.eq.s32.totalorder %s19, 3
    %p162 = por %p160, %p161
    %p163 = scmp.ne.s32.totalorder %s152, %s153
    %p164 = scmp.eq.s32.totalorder %s19, 0
    %p165 = por %p163, %p164
    %p166 = scmp.ne.s32.totalorder %s152, %s153
    %p167 = scmp.eq.s32.totalorder %s20, 3
    %p168 = por %p166, %p167
    %p170 = scmp.ne.s32.totalorder %s153, %s169
    %p171 = scmp.eq.s32.totalorder %s20, 0
    %p172 = por %p170, %p171
    %s173 = ssub.s32 %s21, %s40
    %s174 = ssub.s32 %s23, %s32
    %s175 = sor.u32 %s173, %s174
    %s176 = ssub.s32 %s22, %s36
    %s177 = sor.u32 %s175, %s176
    %p178 = scmp.eq.s32.totalorder %s177, 0
    %s180 = sadd.s32 %s179, 1
    %s181 = scalar_select %p178, %s179, %s180
    %p184 = pneg %p178
    %p185 = scmp.eq.s32.totalorder %s14, 3
    %p186 = por %p184, %p185
    %p187 = scmp.ne.s32.totalorder %s179, %s182
    %p188 = scmp.eq.s32.totalorder %s14, 0
    %p189 = por %p187, %p188
    %p190 = scmp.ne.s32.totalorder %s179, %s182
    %p191 = scmp.eq.s32.totalorder %s19, 3
    %p192 = por %p190, %p191
    %p193 = scmp.ne.s32.totalorder %s182, %s183
    %p194 = scmp.eq.s32.totalorder %s19, 0
    %p195 = por %p193, %p194
    %p196 = scmp.ne.s32.totalorder %s182, %s183
    %p197 = scmp.eq.s32.totalorder %s20, 3
    %p198 = por %p196, %p197
    %p200 = scmp.ne.s32.totalorder %s183, %s199
    %p201 = scmp.eq.s32.totalorder %s20, 0
    %p202 = por %p200, %p201
    %s203 = ssub.s32 %s21, %s40
    %s204 = ssub.s32 %s23, %s32
    %s205 = sor.u32 %s203, %s204
    %s206 = ssub.s32 %s22, %s36
    %s207 = sor.u32 %s205, %s206
    %p208 = scmp.eq.s32.totalorder %s207, 0
    %s210 = sadd.s32 %s209, 1
    %s211 = scalar_select %p208, %s209, %s210
    %p214 = pneg %p208
    %p215 = scmp.eq.s32.totalorder %s14, 3
    %p216 = por %p214, %p215
    %p217 = scmp.ne.s32.totalorder %s209, %s212
    %p218 = scmp.eq.s32.totalorder %s14, 0
    %p219 = por %p217, %p218
    %p220 = scmp.ne.s32.totalorder %s209, %s212
    %p221 = scmp.eq.s32.totalorder %s19, 3
    %p222 = por %p220, %p221
    %p223 = scmp.ne.s32.totalorder %s212, %s213
    %p224 = scmp.eq.s32.totalorder %s19, 0
    %p225 = por %p223, %p224
    %p226 = scmp.ne.s32.totalorder %s212, %s213
    %p227 = scmp.eq.s32.totalorder %s20, 3
    %p228 = por %p226, %p227
    %p230 = scmp.ne.s32.totalorder %s213, %s229
    %p231 = scmp.eq.s32.totalorder %s20, 0
    %p232 = por %p230, %p231
    %s233 = ssub.s32 %s21, %s40
    %s234 = ssub.s32 %s23, %s32
    %s235 = sor.u32 %s233, %s234
    %s236 = ssub.s32 %s22, %s36
    %s237 = sor.u32 %s235, %s236
    %p238 = scmp.eq.s32.totalorder %s237, 0
    %s240 = sadd.s32 %s239, 1
    %s241 = scalar_select %p238, %s239, %s240
    %p244 = pneg %p238
    %p245 = scmp.eq.s32.totalorder %s14, 3
    %p246 = por %p244, %p245
    %p247 = scmp.ne.s32.totalorder %s239, %s242
    %p248 = scmp.eq.s32.totalorder %s14, 0
    %p249 = por %p247, %p248
    %p250 = scmp.ne.s32.totalorder %s239, %s242
    %p251 = scmp.eq.s32.totalorder %s19, 3
    %p252 = por %p250, %p251
    %p253 = scmp.ne.s32.totalorder %s242, %s243
    %p254 = scmp.eq.s32.totalorder %s19, 0
    %p255 = por %p253, %p254
    %p256 = scmp.ne.s32.totalorder %s242, %s243
    %p257 = scmp.eq.s32.totalorder %s20, 3
    %p258 = por %p256, %p257
    %p260 = scmp.ne.s32.totalorder %s243, %s259
    %p261 = scmp.eq.s32.totalorder %s20, 0
    %p262 = por %p260, %p261
    %p263 = scmp.le.s32.totalorder 1, %s14
    %p264 = scmp.lt.s32.totalorder %s14, 5
    %p265 = pnand %p263, %p264
    %p266 = pneg %p265
    // Predicated region
    $region9: #{dit_predictor_forward.19} parent=5 // pred_check
      _
    $region10: #{dit_predictor_forward.19} parent=5 // pred_check_branch
      %268 = sbr.rel (%p265) target = $region12
    $region11: #{dit_predictor_forward.19} parent=5 // pred_region
      %s269 = ssub.s32 %s14, 1
    $region12: #{dit_predictor_forward.19} parent=5 // pred_fallthru
      _
    %p270 = scmp.lt.s32.totalorder %s14, 4
    // Predicated region
    $region13: #{dit_predictor_forward.19} parent=5 // pred_check
      %p271 = pneg %p270
    $region14: #{dit_predictor_forward.19} parent=5 // pred_check_branch
      %273 = sbr.rel (%p271) target = $region16
    $region15: #{dit_predictor_forward.19} parent=5 // pred_region
      // Predicated region
      $region17: #{dit_predictor_forward.19} parent=15 // pred_check
        %p274 = pneg %p55
      $region18: #{dit_predictor_forward.19} parent=15 // pred_check_branch
        %276 = sbr.rel (%p274) target = $region20
      $region19: #{dit_predictor_forward.19} parent=15 // pred_region
        %p277 = scmp.lt.s32.totalorder %s21, 1
        %s278 = scalar_select %p277, %s21, 1
        %p279 = scmp.lt.s32.totalorder %s22, 0
        %s280 = scalar_select %p279, %s22, 0
        %s281 = sadd.s32 %s280, %s278
        %s282 = smul.addr %s281, 4
        %s283 = scalar_lea.vmem %s0, %s282
      $region20: #{dit_predictor_forward.19} parent=15 // pred_fallthru
        _
      // Predicated region
      $region21: #{dit_predictor_forward.19} parent=15 // pred_check
        %p284 = pneg %p81
      $region22: #{dit_predictor_forward.19} parent=15 // pred_check_branch
        %286 = sbr.rel (%p284) target = $region24
      $region23: #{dit_predictor_forward.19} parent=15 // pred_region
        %p287 = scmp.lt.s32.totalorder %s21, 1
        %s288 = scalar_select %p287, %s21, 1
        %s289 = scalar_lea.vmem %s1, %s288
      $region24: #{dit_predictor_forward.19} parent=15 // pred_fallthru
        _
      // Predicated region
      $region25: #{dit_predictor_forward.19} parent=15 // pred_check
        %p290 = pneg %p107
      $region26: #{dit_predictor_forward.19} parent=15 // pred_check_branch
        %292 = sbr.rel (%p290) target = $region28
      $region27: #{dit_predictor_forward.19} parent=15 // pred_region
        %p293 = scmp.lt.s32.totalorder %s21, 1
        %s294 = scalar_select %p293, %s21, 1
        %s295 = scalar_lea.vmem %s2, %s294
      $region28: #{dit_predictor_forward.19} parent=15 // pred_fallthru
        _
      // Predicated region
      $region29: #{dit_predictor_forward.19} parent=15 // pred_check
        %p296 = pneg %p133
      $region30: #{dit_predictor_forward.19} parent=15 // pred_check_branch
        %298 = sbr.rel (%p296) target = $region32
      $region31: #{dit_predictor_forward.19} parent=15 // pred_region
        %p299 = scmp.lt.s32.totalorder %s23, 1
        %s300 = scalar_select %p299, %s23, 1
        %s301 = smul.addr %s300, 4
        %s302 = smul.addr %s301, 4
        %s303 = scalar_lea.vmem %s3, %s302
      $region32: #{dit_predictor_forward.19} parent=15 // pred_fallthru
        _
      // Predicated region
      $region33: #{dit_predictor_forward.19} parent=15 // pred_check
        %p304 = pneg %p159
      $region34: #{dit_predictor_forward.19} parent=15 // pred_check_branch
        %306 = sbr.rel (%p304) target = $region36
      $region35: #{dit_predictor_forward.19} parent=15 // pred_region
        %p307 = scmp.lt.s32.totalorder %s23, 1
        %s308 = scalar_select %p307, %s23, 1
        %s309 = scalar_lea.vmem %s4, %s308
      $region36: #{dit_predictor_forward.19} parent=15 // pred_fallthru
        _
    $region16: #{dit_predictor_forward.19} parent=5 // pred_fallthru
      _
    %p310 = scmp.le.s32.totalorder 1, %s14
    %p311 = scmp.lt.s32.totalorder %s14, 5
    %p312 = pnand %p310, %p311
    %p313 = pneg %p312
    // Predicated region
    $region37: #{dit_predictor_forward.19} parent=5 // pred_check
      _
    $region38: #{dit_predictor_forward.19} parent=5 // pred_check_branch
      %315 = sbr.rel (%p312) target = $region40
    $region39: #{dit_predictor_forward.19} parent=5 // pred_region
      %s316 = ssub.s32 %s14, 1
      %p317 = scmp.lt.s32.totalorder %s24, 1
      %s318 = scalar_select %p317, %s24, 1
      %p319 = scmp.lt.s32.totalorder %s25, 0
      %s320 = scalar_select %p319, %s25, 0
      %s321 = sadd.s32 %s320, %s318
      %s322 = smul.addr %s321, 4
      %s323 = scalar_lea.vmem %s0, %s322
      %p324 = pneg %p61
      %p325 = pneg %p58
      %p326 = scmp.lt.s32.totalorder %s24, 1
      %s327 = scalar_select %p326, %s24, 1
      %s328 = scalar_lea.vmem %s1, %s327
      %p329 = pneg %p87
      %p330 = pneg %p84
      %p331 = scmp.lt.s32.totalorder %s24, 1
      %s332 = scalar_select %p331, %s24, 1
      %s333 = scalar_lea.vmem %s2, %s332
      %p334 = pneg %p113
      %p335 = pneg %p110
      %p336 = scmp.lt.s32.totalorder %s26, 1
      %s337 = scalar_select %p336, %s26, 1
      %s338 = smul.addr %s337, 4
      %s339 = smul.addr %s338, 4
      %s340 = scalar_lea.vmem %s3, %s339
      %p341 = pneg %p139
      %p342 = pneg %p136
      %p343 = scmp.lt.s32.totalorder %s26, 1
      %s344 = scalar_select %p343, %s26, 1
      %s345 = scalar_lea.vmem %s4, %s344
      %p346 = pneg %p165
      %p347 = pneg %p162
      %p348 = pneg %p195
      %p349 = pneg %p192
      %p350 = scmp.lt.s32.totalorder %s24, 1
      %s351 = scalar_select %p350, %s24, 1
      %p352 = scmp.lt.s32.totalorder %s26, 1
      %s353 = scalar_select %p352, %s26, 1
      %p354 = scmp.lt.s32.totalorder %s25, 0
      %s355 = scalar_select %p354, %s25, 0
      %s356 = sadd.s32 %s355, %s353
      %s357 = smul.addr %s351, 2
      %s358 = sadd.s32 %s356, %s357
      %s359 = smul.addr %s358, 4
      %s360 = scalar_lea.vmem %s5, %s359
      %p361 = pneg %p225
      %p362 = pneg %p222
      %p363 = scmp.lt.s32.totalorder %s24, 1
      %s364 = scalar_select %p363, %s24, 1
      %p365 = scmp.lt.s32.totalorder %s26, 1
      %s366 = scalar_select %p365, %s26, 1
      %p367 = scmp.lt.s32.totalorder %s25, 0
      %s368 = scalar_select %p367, %s25, 0
      %s369 = sadd.s32 %s368, %s366
      %s370 = smul.addr %s364, 2
      %s371 = sadd.s32 %s369, %s370
      %s372 = smul.addr %s371, 4
      %s373 = scalar_lea.vmem %s6, %s372
      %p374 = pneg %p255
      %p375 = pneg %p252
      %p376 = scmp.lt.s32.totalorder %s24, 1
      %s377 = scalar_select %p376, %s24, 1
      %p378 = scmp.lt.s32.totalorder %s26, 1
      %s379 = scalar_select %p378, %s26, 1
      %p380 = scmp.lt.s32.totalorder %s25, 0
      %s381 = scalar_select %p380, %s25, 0
      %s382 = sadd.s32 %s381, %s379
      %s383 = smul.addr %s377, 2
      %s384 = sadd.s32 %s382, %s383
      %s385 = smul.addr %s384, 4
      %s386 = scalar_lea.vmem %s7, %s385
      %p387 = scmp.lt.s32.totalorder %s24, 1
      %s388 = scalar_select %p387, %s24, 1
      %p389 = scmp.lt.s32.totalorder %s25, 0
      %s390 = scalar_select %p389, %s25, 0
      %s391 = sadd.s32 %s390, %s388
      %s392 = smul.addr %s391, 4
      %s393 = scalar_lea.vmem %s0, %s392
      %p394 = scmp.lt.s32.totalorder %s24, 1
      %s395 = scalar_select %p394, %s24, 1
      %s396 = scalar_lea.vmem %s1, %s395
      %p397 = scmp.lt.s32.totalorder %s24, 1
      %s398 = scalar_select %p397, %s24, 1
      %s399 = scalar_lea.vmem %s2, %s398
      %p400 = scmp.lt.s32.totalorder %s26, 1
      %s401 = scalar_select %p400, %s26, 1
      %s402 = smul.addr %s401, 4
      %s403 = smul.addr %s402, 4
      %s404 = scalar_lea.vmem %s3, %s403
      %p405 = scmp.lt.s32.totalorder %s26, 1
      %s406 = scalar_select %p405, %s26, 1
      %s407 = scalar_lea.vmem %s4, %s406
      %p408 = scmp.lt.s32.totalorder %s24, 1
      %s409 = scalar_select %p408, %s24, 1
      %p410 = scmp.lt.s32.totalorder %s26, 1
      %s411 = scalar_select %p410, %s26, 1
      %p412 = scmp.lt.s32.totalorder %s25, 0
      %s413 = scalar_select %p412, %s25, 0
      %s414 = sadd.s32 %s413, %s411
      %s415 = smul.addr %s409, 2
      %s416 = sadd.s32 %s414, %s415
      %s417 = smul.addr %s416, 4
      %s418 = scalar_lea.vmem %s5, %s417
      %p419 = scmp.lt.s32.totalorder %s24, 1
      %s420 = scalar_select %p419, %s24, 1
      %p421 = scmp.lt.s32.totalorder %s26, 1
      %s422 = scalar_select %p421, %s26, 1
      %p423 = scmp.lt.s32.totalorder %s25, 0
      %s424 = scalar_select %p423, %s25, 0
      %s425 = sadd.s32 %s424, %s422
      %s426 = smul.addr %s420, 2
      %s427 = sadd.s32 %s425, %s426
      %s428 = smul.addr %s427, 4
      %s429 = scalar_lea.vmem %s6, %s428
      %p430 = scmp.lt.s32.totalorder %s24, 1
      %s431 = scalar_select %p430, %s24, 1
      %p432 = scmp.lt.s32.totalorder %s26, 1
      %s433 = scalar_select %p432, %s26, 1
      %p434 = scmp.lt.s32.totalorder %s25, 0
      %s435 = scalar_select %p434, %s25, 0
      %s436 = sadd.s32 %s435, %s433
      %s437 = smul.addr %s431, 2
      %s438 = sadd.s32 %s436, %s437
      %s439 = smul.addr %s438, 4
      %s440 = scalar_lea.vmem %s7, %s439
      %p442 = scmp.eq.s32.totalorder %s26, 0
      // Predicated region
      $region41: #{dit_predictor_forward.19} parent=39 // pred_check
        %p443 = pneg %p442
      $region42: #{dit_predictor_forward.19} parent=39 // pred_check_branch
        %445 = sbr.rel (%p443) target = $region44
      $region43: #{dit_predictor_forward.19} parent=39 // pred_region
        %v446 = vld [vmem:[%s393] sm:$0xf]
        %v447 = vunpack.c.l.bf16 %v446
        %vm448 = vcmask 261120
        %v449 = vsel %vm448, %v447, 0.0
        %450 = vadd.xlane.f32.xlu0 %v449
        %v451 = vpop.xlane.xlu0 %450
        %v452 = vrcp.pop 32.0
        %v453 = vmul.f32 %v451, %v452
        %v454 = vsub.f32 %v447, %v453
        %v455 = vmul.f32 %v454, %v454
        %v456 = vsel %vm448, %v455, 0.0
        %457 = vadd.xlane.f32.xlu0 %v456
        %v458 = vpop.xlane.xlu0 %457
        %v459 = vmul.f32 %v458, %v452
        %v460 = vadd.f32 %v459, 1e-06
        %v461 = vrsqrt.pop %v460
        %v462 = vmul.f32 %v454, %v461
        %v463 = vld [vmem:[%s399] sm:$0x1]
        %v464 = vunpack.c.l.bf16 %v463
        %v465 = vadd.f32 %v464, 1.0
        %v466 = vlaneseq
        %v467 = vshrl.u32 %v466, 7
        %v468 = vsub.s32 0, %v467
        %v469 = vrot.slane %v465, %v468
        %v470 = vmul.f32 %v462, %v469
        %v471 = vld [vmem:[%s396] sm:$0x1]
        %v472 = vunpack.c.l.bf16 %v471
        %v473 = vlaneseq
        %v474 = vshrl.u32 %v473, 7
        %v475 = vsub.s32 0, %v474
        %v476 = vrot.slane %v472, %v475
        %v477 = vadd.f32 %v470, %v476
        %v478 = vpack.c.bf16 %v477, %v477
        %vm479 = vcmask 257024
        %480 = vst.msk [vmem:[#allocation2] sm:$0xf] %vm479, %v478
      $region44: #{dit_predictor_forward.19} parent=39 // pred_fallthru
        _
      %v481 = vld [vmem:[#allocation2] sm:$0xf]
      %v482 = vld [vmem:[%s404] sm:$0xf]
      %v483 = vld [vmem:[%s404 + $0x4] sm:$0xf]
      %v484 = vld [vmem:[%s404 + $0x8] sm:$0xf]
      %v485 = vld [vmem:[%s404 + $0xc] sm:$0xf]
      %v486 = vld [vmem:[%s407] sm:$0x1]
      %v488 = vlaneseq
      %v489 = vshrl.u32 %v488, 7
      %v490 = vsub.s32 0, %v489
      %v491 = vrot.slane %v486, %v490
      %v497 = vunpack.c.l.b16 %v482
      %v498 = vunpack.c.l.b16 %v483
      %v499 = vunpack.c.l.b16 %v484
      %v500 = vunpack.c.l.b16 %v485
      %v501 = vpack.c.b16 %v498, %v497
      %v502 = vpack.c.b16 %v500, %v499
      %vm505 = vcmask 261120
      %v507 = vsel %vm505, %v481, 0
      %509 = vmatprep.subr.bf16.mxu0 0
      %510 = vmatpush1.bf16.msra.mxu0 %v501
      %511 = vmatprep.subr.bf16.mxu0 0
      %512 = vmatpush1.bf16.msra.mxu0 %v502
      %513 = vmatprep.subr.bf16.mxu0 0
      %514 = vmatpush1.bf16.msra.mxu0 0
      %515 = vmatprep.subr.bf16.mxu0 0
      %516 = vmatpush1.bf16.msra.mxu0 0
      %517 = vmatprep.subr.bf16.mxu0 0
      %518 = vmatpush1.bf16.msra.mxu0 0
      %519 = vmatprep.subr.bf16.mxu0 0
      %520 = vmatpush1.bf16.msra.mxu0 0
      %521 = vmatprep.subr.bf16.mxu0 0
      %522 = vmatpush1.bf16.msra.mxu0 0
      %523 = vmatprep.subr.bf16.mxu0 0
      %524 = vmatpush1.bf16.msra.mxu0 0
      %525 = vmatprep.subr.bf16.mxu0 0
      %526 = vmatpush1.bf16.msra.mxu0 0
      %527 = vmatprep.subr.bf16.mxu0 0
      %528 = vmatpush1.bf16.msra.mxu0 0
      %529 = vmatprep.subr.bf16.mxu0 0
      %530 = vmatpush1.bf16.msra.mxu0 0
      %531 = vmatprep.subr.bf16.mxu0 0
      %532 = vmatpush1.bf16.msra.mxu0 0
      %533 = vmatprep.subr.bf16.mxu0 0
      %534 = vmatpush1.bf16.msra.mxu0 0
      %535 = vmatprep.subr.bf16.mxu0 0
      %536 = vmatpush1.bf16.msra.mxu0 0
      %537 = vmatprep.subr.bf16.mxu0 0
      %538 = vmatpush1.bf16.msra.mxu0 0
      %539 = vmatprep.subr.bf16.mxu0 0
      %540 = vmatpush1.bf16.msra.mxu0 0
      %541 = vmatprep.mubr.bf16.mxu0 0
      %542 = vmatmul.mubr.bf16.gmra.mrb[0].mxu0 %v507
      %v543 = vpop.f32.mrb[0].mxu0
      %v544 = vadd.f32 %v491, %v543
      %v545 = vpop.f32.mrb[0].mxu0
      %v546 = vpop.f32.mrb[0].mxu0
      %v547 = vpop.f32.mrb[0].mxu0
      %548 = vdwg.mxu0
      %v549 = vmul.f32 %v544, 0.25
      %v550 = vpack.c.bf16 %v549, %v549
      %vm551 = vcmask 125952
      %552 = vst.msk [vmem:[%s418] sm:$0xf] %vm551, %v550
      %v553 = vpack.c.bf16 %v544, %v544
      %v555 = vunpack.c.l.b16 %v553
      %v556 = vpack.c.b16 %v555, %v555
      %557 = vrot.lane.b32.xlu0 %v556, 112
      %v558 = vpop.permute.xlu0 %557
      %560 = vst.msk [vmem:[%s429] sm:$0xf] %vm551, %v558
      %561 = vrot.lane.b32.xlu0 %v556, 96
      %v562 = vpop.permute.xlu0 %561
      %564 = vst.msk [vmem:[%s440] sm:$0xf] %vm551, %v562
      %p565 = scmp.lt.s32.totalorder %s24, 1
      %s566 = scalar_select %p565, %s24, 1
      %p567 = scmp.lt.s32.totalorder %s26, 1
      %s568 = scalar_select %p567, %s26, 1
      %p569 = scmp.lt.s32.totalorder %s25, 0
      %s570 = scalar_select %p569, %s25, 0
      %s571 = sadd.s32 %s570, %s568
      %s572 = smul.addr %s566, 2
      %s573 = sadd.s32 %s571, %s572
      %s574 = smul.addr %s573, 4
      %s575 = scalar_lea.vmem %s5, %s574
      %p576 = scmp.lt.s32.totalorder %s24, 1
      %s577 = scalar_select %p576, %s24, 1
      %p578 = scmp.lt.s32.totalorder %s26, 1
      %s579 = scalar_select %p578, %s26, 1
      %p580 = scmp.lt.s32.totalorder %s25, 0
      %s581 = scalar_select %p580, %s25, 0
      %s582 = sadd.s32 %s581, %s579
      %s583 = smul.addr %s577, 2
      %s584 = sadd.s32 %s582, %s583
      %s585 = smul.addr %s584, 4
      %s586 = scalar_lea.vmem %s6, %s585
      %p587 = scmp.lt.s32.totalorder %s24, 1
      %s588 = scalar_select %p587, %s24, 1
      %p589 = scmp.lt.s32.totalorder %s26, 1
      %s590 = scalar_select %p589, %s26, 1
      %p591 = scmp.lt.s32.totalorder %s25, 0
      %s592 = scalar_select %p591, %s25, 0
      %s593 = sadd.s32 %s592, %s590
      %s594 = smul.addr %s588, 2
      %s595 = sadd.s32 %s593, %s594
      %s596 = smul.addr %s595, 4
      %s597 = scalar_lea.vmem %s7, %s596
      // Predicated region
      $region45: #{dit_predictor_forward.19} parent=39 // pred_check
        %p598 = pneg %p192
      $region46: #{dit_predictor_forward.19} parent=39 // pred_check_branch
        %600 = sbr.rel (%p598) target = $region48
      $region47: #{dit_predictor_forward.19} parent=39 // pred_region
        _
      $region48: #{dit_predictor_forward.19} parent=39 // pred_fallthru
        _
      // Predicated region
      $region49: #{dit_predictor_forward.19} parent=39 // pred_check
        %p601 = pneg %p222
      $region50: #{dit_predictor_forward.19} parent=39 // pred_check_branch
        %603 = sbr.rel (%p601) target = $region52
      $region51: #{dit_predictor_forward.19} parent=39 // pred_region
        _
      $region52: #{dit_predictor_forward.19} parent=39 // pred_fallthru
        _
      // Predicated region
      $region53: #{dit_predictor_forward.19} parent=39 // pred_check
        %p604 = pneg %p252
      $region54: #{dit_predictor_forward.19} parent=39 // pred_check_branch
        %606 = sbr.rel (%p604) target = $region56
      $region55: #{dit_predictor_forward.19} parent=39 // pred_region
        _
      $region56: #{dit_predictor_forward.19} parent=39 // pred_fallthru
        _
    $region40: #{dit_predictor_forward.19} parent=5 // pred_fallthru
      _
    %p607 = scmp.le.s32.totalorder 2, %s14
    // Predicated region
    $region57: #{dit_predictor_forward.19} parent=5 // pred_check
      %p608 = pneg %p607
    $region58: #{dit_predictor_forward.19} parent=5 // pred_check_branch
      %610 = sbr.rel (%p608) target = $region60
    $region59: #{dit_predictor_forward.19} parent=5 // pred_region
      %s611 = ssub.s32 %s14, 2
      // Predicated region
      $region61: #{dit_predictor_forward.19} parent=59 // pred_check
        %p612 = pneg %p198
      $region62: #{dit_predictor_forward.19} parent=59 // pred_check_branch
        %614 = sbr.rel (%p612) target = $region64
      $region63: #{dit_predictor_forward.19} parent=59 // pred_region
        %p615 = scmp.lt.s32.totalorder %s27, 1
        %s616 = scalar_select %p615, %s27, 1
        %p617 = scmp.lt.s32.totalorder %s29, 1
        %s618 = scalar_select %p617, %s29, 1
        %p619 = scmp.lt.s32.totalorder %s28, 0
        %s620 = scalar_select %p619, %s28, 0
        %s621 = sadd.s32 %s620, %s618
        %s622 = smul.addr %s616, 2
        %s623 = sadd.s32 %s621, %s622
        %s624 = smul.addr %s623, 4
        %s625 = scalar_lea.vmem %s5, %s624
      $region64: #{dit_predictor_forward.19} parent=59 // pred_fallthru
        _
      // Predicated region
      $region65: #{dit_predictor_forward.19} parent=59 // pred_check
        %p626 = pneg %p228
      $region66: #{dit_predictor_forward.19} parent=59 // pred_check_branch
        %628 = sbr.rel (%p626) target = $region68
      $region67: #{dit_predictor_forward.19} parent=59 // pred_region
        %p629 = scmp.lt.s32.totalorder %s27, 1
        %s630 = scalar_select %p629, %s27, 1
        %p631 = scmp.lt.s32.totalorder %s29, 1
        %s632 = scalar_select %p631, %s29, 1
        %p633 = scmp.lt.s32.totalorder %s28, 0
        %s634 = scalar_select %p633, %s28, 0
        %s635 = sadd.s32 %s634, %s632
        %s636 = smul.addr %s630, 2
        %s637 = sadd.s32 %s635, %s636
        %s638 = smul.addr %s637, 4
        %s639 = scalar_lea.vmem %s6, %s638
      $region68: #{dit_predictor_forward.19} parent=59 // pred_fallthru
        _
      // Predicated region
      $region69: #{dit_predictor_forward.19} parent=59 // pred_check
        %p640 = pneg %p258
      $region70: #{dit_predictor_forward.19} parent=59 // pred_check_branch
        %642 = sbr.rel (%p640) target = $region72
      $region71: #{dit_predictor_forward.19} parent=59 // pred_region
        %p643 = scmp.lt.s32.totalorder %s27, 1
        %s644 = scalar_select %p643, %s27, 1
        %p645 = scmp.lt.s32.totalorder %s29, 1
        %s646 = scalar_select %p645, %s29, 1
        %p647 = scmp.lt.s32.totalorder %s28, 0
        %s648 = scalar_select %p647, %s28, 0
        %s649 = sadd.s32 %s648, %s646
        %s650 = smul.addr %s644, 2
        %s651 = sadd.s32 %s649, %s650
        %s652 = smul.addr %s651, 4
        %s653 = scalar_lea.vmem %s7, %s652
      $region72: #{dit_predictor_forward.19} parent=59 // pred_fallthru
        _
    $region60: #{dit_predictor_forward.19} parent=5 // pred_fallthru
      _
  $region6: #{dit_predictor_forward.19} parent=0 // loop_footer
    %s18 = sadd.s32 1, %s14
  $region7: #{dit_predictor_forward.19} parent=0 // loop_footer_branch
    %13 = sbr.rel target = $region3
  $region8: #{dit_predictor_forward.19} parent=0 // loop_exit
    _

// kernel: dit_predictor_forward.21
$region0: #{dit_predictor_forward.21}
  #allocation0 [shape = 'u32[]', space=smem, size = 0x4, offset = 0x4, fixed_abs, tag = 'smem constant byte address 0x4 - core index']
  #allocation1 [shape = 'u32[144,128]{1,0:T(1,128)}', space=vmem, size = 0x12000, scoped, tag = 'internal scratch']
  %s0 = inlined_call_operand.vmem [shape: bf16[2,8,32], index: 0, kind: input, shape index: {}]
  %s1 = inlined_call_operand.vmem [shape: bf16[32,32], index: 1, kind: input, shape index: {}]
  %s2 = inlined_call_operand.vmem [shape: f32[1,32], index: 2, kind: input, shape index: {}]
  %s3 = inlined_call_operand.vmem [shape: bf16[2,1,32], index: 3, kind: input, shape index: {}]
  %s4 = inlined_call_operand.vmem [shape: bf16[2,8,32], index: 4, kind: input, shape index: {}]
  %s5 = inlined_call_operand.vmem [shape: bf16[2,8,32], index: 5, kind: output, shape index: {}]
  %s6 = sld [smem:[#allocation0]]
  $region53: #{dit_predictor_forward.21} parent=0
    _
  %s8 = ssub.s32 1, %s6
  %s9 = scalar_select 0, %s8, %s6
  loop: start=0, step=1, limit=4
  $region2: #{dit_predictor_forward.21} parent=0 // loop_pre_header
    _
  $region3: #{dit_predictor_forward.21} parent=0 // loop_header
    %s11 = sphi 0, %s15
    %p12 = scmp.ge.s32.totalorder %s11, 4
    %s18 = sphi 0, %s44
    %s19 = sphi 0, %s40
    %s20 = sphi 0, %s36
    %s21 = sphi 0, %s32
    %s22 = sphi 0, %s18
    %s23 = sphi 0, %s19
    %s24 = sphi 0, %s20
    %s25 = sphi 0, %s21
    %s26 = sphi 0, %s22
    %s27 = sphi 0, %s23
    %s28 = sphi 0, %s24
    %s29 = sphi 0, %s25
    %s51 = sphi 0, %s53
    %s54 = sphi 0, %s51
    %s55 = sphi 0, %s54
    %s71 = sphi 0, %s55
    %s79 = sphi 0, %s81
    %s82 = sphi 0, %s79
    %s83 = sphi 0, %s82
    %s99 = sphi 0, %s83
    %s105 = sphi 0, %s107
    %s108 = sphi 0, %s105
    %s109 = sphi 0, %s108
    %s125 = sphi 0, %s109
    %s133 = sphi 0, %s135
    %s136 = sphi 0, %s133
    %s137 = sphi 0, %s136
    %s153 = sphi 0, %s137
    %s163 = sphi 0, %s165
    %s166 = sphi 0, %s163
    %s167 = sphi 0, %s166
    %s183 = sphi 0, %s167
    %s193 = sphi 0, %s195
    %s196 = sphi 0, %s193
    %s197 = sphi 0, %s196
    %s213 = sphi 0, %s197
  $region4: #{dit_predictor_forward.21} parent=0 // loop_header_branch
    %14 = sbr.rel (%p12) target = $region8
  $region5: #{dit_predictor_forward.21} parent=0 // loop_body
    %s16 = ssub.s32 %s11, 1
    %s17 = ssub.s32 %s11, 2
    %s30 = sadd.s32 1, %s21
    %p31 = scmp.ge.s32.totalorder %s30, 1
    %s32 = scalar_select %p31, 0, %s30
    %s33 = sadd.s32 1, %s20
    %s34 = scalar_select %p31, %s33, %s20
    %p35 = scmp.ge.s32.totalorder %s34, 1
    %s36 = scalar_select %p35, 0, %s34
    %s37 = sadd.s32 1, %s19
    %s38 = scalar_select %p35, %s37, %s19
    %p39 = scmp.ge.s32.totalorder %s38, 1
    %s40 = scalar_select %p39, 0, %s38
    %s41 = sadd.s32 1, %s18
    %s42 = scalar_select %p39, %s41, %s18
    %p43 = scmp.ge.s32.totalorder %s42, 2
    %s44 = scalar_select %p43, 0, %s42
    %s45 = ssub.s32 %s18, %s44
    %s46 = ssub.s32 %s19, %s40
    %s47 = sor.u32 %s45, %s46
    %s48 = ssub.s32 %s21, %s32
    %s49 = sor.u32 %s47, %s48
    %p50 = scmp.eq.s32.totalorder %s49, 0
    %s52 = sadd.s32 %s51, 1
    %s53 = scalar_select %p50, %s51, %s52
    %p56 = pneg %p50
    %p57 = scmp.eq.s32.totalorder %s11, 1
    %p58 = por %p56, %p57
    %p59 = scmp.ne.s32.totalorder %s51, %s54
    %p60 = scmp.eq.s32.totalorder %s11, 0
    %p61 = por %p59, %p60
    %p62 = scmp.ne.s32.totalorder %s51, %s54
    %p63 = scmp.eq.s32.totalorder %s16, 1
    %p64 = por %p62, %p63
    %p65 = scmp.ne.s32.totalorder %s54, %s55
    %p66 = scmp.eq.s32.totalorder %s16, 0
    %p67 = por %p65, %p66
    %p68 = scmp.ne.s32.totalorder %s54, %s55
    %p69 = scmp.eq.s32.totalorder %s17, 1
    %p70 = por %p68, %p69
    %p72 = scmp.ne.s32.totalorder %s55, %s71
    %p73 = scmp.eq.s32.totalorder %s17, 0
    %p74 = por %p72, %p73
    %s75 = ssub.s32 %s21, %s32
    %s76 = ssub.s32 %s20, %s36
    %s77 = sor.u32 %s75, %s76
    %p78 = scmp.eq.s32.totalorder %s77, 0
    %s80 = sadd.s32 %s79, 1
    %s81 = scalar_select %p78, %s79, %s80
    %p84 = pneg %p78
    %p85 = scmp.eq.s32.totalorder %s11, 1
    %p86 = por %p84, %p85
    %p87 = scmp.ne.s32.totalorder %s79, %s82
    %p88 = scmp.eq.s32.totalorder %s11, 0
    %p89 = por %p87, %p88
    %p90 = scmp.ne.s32.totalorder %s79, %s82
    %p91 = scmp.eq.s32.totalorder %s16, 1
    %p92 = por %p90, %p91
    %p93 = scmp.ne.s32.totalorder %s82, %s83
    %p94 = scmp.eq.s32.totalorder %s16, 0
    %p95 = por %p93, %p94
    %p96 = scmp.ne.s32.totalorder %s82, %s83
    %p97 = scmp.eq.s32.totalorder %s17, 1
    %p98 = por %p96, %p97
    %p100 = scmp.ne.s32.totalorder %s83, %s99
    %p101 = scmp.eq.s32.totalorder %s17, 0
    %p102 = por %p100, %p101
    %s103 = ssub.s32 %s20, %s36
    %p104 = scmp.eq.s32.totalorder %s103, 0
    %s106 = sadd.s32 %s105, 1
    %s107 = scalar_select %p104, %s105, %s106
    %p110 = pneg %p104
    %p111 = scmp.eq.s32.totalorder %s11, 1
    %p112 = por %p110, %p111
    %p113 = scmp.ne.s32.totalorder %s105, %s108
    %p114 = scmp.eq.s32.totalorder %s11, 0
    %p115 = por %p113, %p114
    %p116 = scmp.ne.s32.totalorder %s105, %s108
    %p117 = scmp.eq.s32.totalorder %s16, 1
    %p118 = por %p116, %p117
    %p119 = scmp.ne.s32.totalorder %s108, %s109
    %p120 = scmp.eq.s32.totalorder %s16, 0
    %p121 = por %p119, %p120
    %p122 = scmp.ne.s32.totalorder %s108, %s109
    %p123 = scmp.eq.s32.totalorder %s17, 1
    %p124 = por %p122, %p123
    %p126 = scmp.ne.s32.totalorder %s109, %s125
    %p127 = scmp.eq.s32.totalorder %s17, 0
    %p128 = por %p126, %p127
    %s129 = ssub.s32 %s18, %s44
    %s130 = ssub.s32 %s20, %s36
    %s131 = sor.u32 %s129, %s130
    %p132 = scmp.eq.s32.totalorder %s131, 0
    %s134 = sadd.s32 %s133, 1
    %s135 = scalar_select %p132, %s133, %s134
    %p138 = pneg %p132
    %p139 = scmp.eq.s32.totalorder %s11, 1
    %p140 = por %p138, %p139
    %p141 = scmp.ne.s32.totalorder %s133, %s136
    %p142 = scmp.eq.s32.totalorder %s11, 0
    %p143 = por %p141, %p142
    %p144 = scmp.ne.s32.totalorder %s133, %s136
    %p145 = scmp.eq.s32.totalorder %s16, 1
    %p146 = por %p144, %p145
    %p147 = scmp.ne.s32.totalorder %s136, %s137
    %p148 = scmp.eq.s32.totalorder %s16, 0
    %p149 = por %p147, %p148
    %p150 = scmp.ne.s32.totalorder %s136, %s137
    %p151 = scmp.eq.s32.totalorder %s17, 1
    %p152 = por %p150, %p151
    %p154 = scmp.ne.s32.totalorder %s137, %s153
    %p155 = scmp.eq.s32.totalorder %s17, 0
    %p156 = por %p154, %p155
    %s157 = ssub.s32 %s18, %s44
    %s158 = ssub.s32 %s19, %s40
    %s159 = sor.u32 %s157, %s158
    %s160 = ssub.s32 %s20, %s36
    %s161 = sor.u32 %s159, %s160
    %p162 = scmp.eq.s32.totalorder %s161, 0
    %s164 = sadd.s32 %s163, 1
    %s165 = scalar_select %p162, %s163, %s164
    %p168 = pneg %p162
    %p169 = scmp.eq.s32.totalorder %s11, 1
    %p170 = por %p168, %p169
    %p171 = scmp.ne.s32.totalorder %s163, %s166
    %p172 = scmp.eq.s32.totalorder %s11, 0
    %p173 = por %p171, %p172
    %p174 = scmp.ne.s32.totalorder %s163, %s166
    %p175 = scmp.eq.s32.totalorder %s16, 1
    %p176 = por %p174, %p175
    %p177 = scmp.ne.s32.totalorder %s166, %s167
    %p178 = scmp.eq.s32.totalorder %s16, 0
    %p179 = por %p177, %p178
    %p180 = scmp.ne.s32.totalorder %s166, %s167
    %p181 = scmp.eq.s32.totalorder %s17, 1
    %p182 = por %p180, %p181
    %p184 = scmp.ne.s32.totalorder %s167, %s183
    %p185 = scmp.eq.s32.totalorder %s17, 0
    %p186 = por %p184, %p185
    %s187 = ssub.s32 %s18, %s44
    %s188 = ssub.s32 %s19, %s40
    %s189 = sor.u32 %s187, %s188
    %s190 = ssub.s32 %s20, %s36
    %s191 = sor.u32 %s189, %s190
    %p192 = scmp.eq.s32.totalorder %s191, 0
    %s194 = sadd.s32 %s193, 1
    %s195 = scalar_select %p192, %s193, %s194
    %p198 = pneg %p192
    %p199 = scmp.eq.s32.totalorder %s11, 1
    %p200 = por %p198, %p199
    %p201 = scmp.ne.s32.totalorder %s193, %s196
    %p202 = scmp.eq.s32.totalorder %s11, 0
    %p203 = por %p201, %p202
    %p204 = scmp.ne.s32.totalorder %s193, %s196
    %p205 = scmp.eq.s32.totalorder %s16, 1
    %p206 = por %p204, %p205
    %p207 = scmp.ne.s32.totalorder %s196, %s197
    %p208 = scmp.eq.s32.totalorder %s16, 0
    %p209 = por %p207, %p208
    %p210 = scmp.ne.s32.totalorder %s196, %s197
    %p211 = scmp.eq.s32.totalorder %s17, 1
    %p212 = por %p210, %p211
    %p214 = scmp.ne.s32.totalorder %s197, %s213
    %p215 = scmp.eq.s32.totalorder %s17, 0
    %p216 = por %p214, %p215
    %p217 = scmp.le.s32.totalorder 1, %s11
    %p218 = scmp.lt.s32.totalorder %s11, 3
    %p219 = pnand %p217, %p218
    %p220 = pneg %p219
    // Predicated region
    $region9: #{dit_predictor_forward.21} parent=5 // pred_check
      _
    $region10: #{dit_predictor_forward.21} parent=5 // pred_check_branch
      %222 = sbr.rel (%p219) target = $region12
    $region11: #{dit_predictor_forward.21} parent=5 // pred_region
      %s223 = ssub.s32 %s11, 1
      // Predicated region
      $region13: #{dit_predictor_forward.21} parent=11 // pred_check
        %p224 = pneg %p95
      $region14: #{dit_predictor_forward.21} parent=11 // pred_check_branch
        %226 = sbr.rel (%p224) target = $region16
      $region15: #{dit_predictor_forward.21} parent=11 // pred_region
        %s227 = smul.u32 4, %s25
        %p228 = scmp.lt.s32.totalorder %s227, 3
        %s229 = scalar_select %p228, %s227, 3
        %p230 = scmp.lt.s32.totalorder %s24, 0
        %s231 = scalar_select %p230, %s24, 0
        %s232 = sadd.s32 %s231, %s229
        %s233 = smul.addr %s232, 4
        %s234 = scalar_lea.vmem %s1, %s233
        %s235 = smul.u32 4, %s25
      $region16: #{dit_predictor_forward.21} parent=11 // pred_fallthru
        _
      // Predicated region
      $region17: #{dit_predictor_forward.21} parent=11 // pred_check
        %p236 = pneg %p121
      $region18: #{dit_predictor_forward.21} parent=11 // pred_check_branch
        %238 = sbr.rel (%p236) target = $region20
      $region19: #{dit_predictor_forward.21} parent=11 // pred_region
        %p239 = scmp.lt.s32.totalorder %s24, 0
        %s240 = scalar_select %p239, %s24, 0
        %s241 = scalar_lea.vmem %s2, %s240
      $region20: #{dit_predictor_forward.21} parent=11 // pred_fallthru
        _
    $region12: #{dit_predictor_forward.21} parent=5 // pred_fallthru
      _
    %p242 = scmp.lt.s32.totalorder %s11, 2
    // Predicated region
    $region21: #{dit_predictor_forward.21} parent=5 // pred_check
      %p243 = pneg %p242
    $region22: #{dit_predictor_forward.21} parent=5 // pred_check_branch
      %245 = sbr.rel (%p243) target = $region24
    $region23: #{dit_predictor_forward.21} parent=5 // pred_region
      // Predicated region
      $region25: #{dit_predictor_forward.21} parent=23 // pred_check
        %p246 = pneg %p61
      $region26: #{dit_predictor_forward.21} parent=23 // pred_check_branch
        %248 = sbr.rel (%p246) target = $region28
      $region27: #{dit_predictor_forward.21} parent=23 // pred_region
        %p249 = scmp.lt.s32.totalorder %s18, 1
        %s250 = scalar_select %p249, %s18, 1
        %p251 = scmp.lt.s32.totalorder %s19, 0
        %s252 = scalar_select %p251, %s19, 0
        %p253 = scmp.lt.s32.totalorder %s21, 0
        %s254 = scalar_select %p253, %s21, 0
        %s255 = sadd.s32 %s254, %s252
        %s256 = sadd.s32 %s255, %s250
        %s257 = smul.addr %s256, 4
        %s258 = scalar_lea.vmem %s0, %s257
      $region28: #{dit_predictor_forward.21} parent=23 // pred_fallthru
        _
      // Predicated region
      $region29: #{dit_predictor_forward.21} parent=23 // pred_check
        %p259 = pneg %p143
      $region30: #{dit_predictor_forward.21} parent=23 // pred_check_branch
        %261 = sbr.rel (%p259) target = $region32
      $region31: #{dit_predictor_forward.21} parent=23 // pred_region
        %p262 = scmp.lt.s32.totalorder %s18, 1
        %s263 = scalar_select %p262, %s18, 1
        %p264 = scmp.lt.s32.totalorder %s20, 0
        %s265 = scalar_select %p264, %s20, 0
        %s266 = sadd.s32 %s265, %s263
        %s267 = scalar_lea.vmem %s3, %s266
      $region32: #{dit_predictor_forward.21} parent=23 // pred_fallthru
        _
      // Predicated region
      $region33: #{dit_predictor_forward.21} parent=23 // pred_check
        %p268 = pneg %p173
      $region34: #{dit_predictor_forward.21} parent=23 // pred_check_branch
        %270 = sbr.rel (%p268) target = $region36
      $region35: #{dit_predictor_forward.21} parent=23 // pred_region
        %p271 = scmp.lt.s32.totalorder %s18, 1
        %s272 = scalar_select %p271, %s18, 1
        %p273 = scmp.lt.s32.totalorder %s19, 0
        %s274 = scalar_select %p273, %s19, 0
        %p275 = scmp.lt.s32.totalorder %s20, 0
        %s276 = scalar_select %p275, %s20, 0
        %s277 = sadd.s32 %s276, %s274
        %s278 = sadd.s32 %s277, %s272
        %s279 = smul.addr %s278, 4
        %s280 = scalar_lea.vmem %s4, %s279
      $region36: #{dit_predictor_forward.21} parent=23 // pred_fallthru
        _
    $region24: #{dit_predictor_forward.21} parent=5 // pred_fallthru
      _
    %p281 = scmp.le.s32.totalorder 1, %s11
    %p282 = scmp.lt.s32.totalorder %s11, 3
    %p283 = pnand %p281, %p282
    %p284 = pneg %p283
    // Predicated region
    $region37: #{dit_predictor_forward.21} parent=5 // pred_check
      _
    $region38: #{dit_predictor_forward.21} parent=5 // pred_check_branch
      %286 = sbr.rel (%p283) target = $region40
    $region39: #{dit_predictor_forward.21} parent=5 // pred_region
      %s287 = ssub.s32 %s11, 1
      %p288 = scmp.lt.s32.totalorder %s22, 1
      %s289 = scalar_select %p288, %s22, 1
      %p290 = scmp.lt.s32.totalorder %s23, 0
      %s291 = scalar_select %p290, %s23, 0
      %p292 = scmp.lt.s32.totalorder %s25, 0
      %s293 = scalar_select %p292, %s25, 0
      %s294 = sadd.s32 %s293, %s291
      %s295 = sadd.s32 %s294, %s289
      %s296 = smul.addr %s295, 4
      %s297 = scalar_lea.vmem %s0, %s296
      %p298 = pneg %p67
      %p299 = pneg %p64
      %s300 = smul.u32 4, %s25
      %p301 = scmp.lt.s32.totalorder %s300, 3
      %s302 = scalar_select %p301, %s300, 3
      %p303 = scmp.lt.s32.totalorder %s24, 0
      %s304 = scalar_select %p303, %s24, 0
      %s305 = sadd.s32 %s304, %s302
      %s306 = smul.addr %s305, 4
      %s307 = scalar_lea.vmem %s1, %s306
      %p308 = pneg %p95
      %p309 = pneg %p92
      %p310 = scmp.lt.s32.totalorder %s24, 0
      %s311 = scalar_select %p310, %s24, 0
      %s312 = scalar_lea.vmem %s2, %s311
      %p313 = pneg %p121
      %p314 = pneg %p118
      %p315 = scmp.lt.s32.totalorder %s22, 1
      %s316 = scalar_select %p315, %s22, 1
      %p317 = scmp.lt.s32.totalorder %s24, 0
      %s318 = scalar_select %p317, %s24, 0
      %s319 = sadd.s32 %s318, %s316
      %s320 = scalar_lea.vmem %s3, %s319
      %p321 = pneg %p149
      %p322 = pneg %p146
      %p323 = scmp.lt.s32.totalorder %s22, 1
      %s324 = scalar_select %p323, %s22, 1
      %p325 = scmp.lt.s32.totalorder %s23, 0
      %s326 = scalar_select %p325, %s23, 0
      %p327 = scmp.lt.s32.totalorder %s24, 0
      %s328 = scalar_select %p327, %s24, 0
      %s329 = sadd.s32 %s328, %s326
      %s330 = sadd.s32 %s329, %s324
      %s331 = smul.addr %s330, 4
      %s332 = scalar_lea.vmem %s4, %s331
      %p333 = pneg %p179
      %p334 = pneg %p176
      %p335 = pneg %p209
      %p336 = pneg %p206
      %p337 = scmp.lt.s32.totalorder %s22, 1
      %s338 = scalar_select %p337, %s22, 1
      %p339 = scmp.lt.s32.totalorder %s23, 0
      %s340 = scalar_select %p339, %s23, 0
      %p341 = scmp.lt.s32.totalorder %s24, 0
      %s342 = scalar_select %p341, %s24, 0
      %s343 = sadd.s32 %s342, %s340
      %s344 = sadd.s32 %s343, %s338
      %s345 = smul.addr %s344, 4
      %s346 = scalar_lea.vmem %s5, %s345
      %p347 = scmp.lt.s32.totalorder %s22, 1
      %s348 = scalar_select %p347, %s22, 1
      %p349 = scmp.lt.s32.totalorder %s23, 0
      %s350 = scalar_select %p349, %s23, 0
      %p351 = scmp.lt.s32.totalorder %s25, 0
      %s352 = scalar_select %p351, %s25, 0
      %s353 = sadd.s32 %s352, %s350
      %s354 = sadd.s32 %s353, %s348
      %s355 = smul.addr %s354, 4
      %s356 = scalar_lea.vmem %s0, %s355
      %s357 = smul.u32 4, %s25
      %p358 = scmp.lt.s32.totalorder %s357, 3
      %s359 = scalar_select %p358, %s357, 3
      %p360 = scmp.lt.s32.totalorder %s24, 0
      %s361 = scalar_select %p360, %s24, 0
      %s362 = sadd.s32 %s361, %s359
      %s363 = smul.addr %s362, 4
      %s364 = scalar_lea.vmem %s1, %s363
      %s365 = smul.u32 4, %s25
      %p366 = scmp.lt.s32.totalorder %s24, 0
      %s367 = scalar_select %p366, %s24, 0
      %s368 = scalar_lea.vmem %s2, %s367
      %p369 = scmp.lt.s32.totalorder %s22, 1
      %s370 = scalar_select %p369, %s22, 1
      %p371 = scmp.lt.s32.totalorder %s24, 0
      %s372 = scalar_select %p371, %s24, 0
      %s373 = sadd.s32 %s372, %s370
      %s374 = scalar_lea.vmem %s3, %s373
      %p375 = scmp.lt.s32.totalorder %s22, 1
      %s376 = scalar_select %p375, %s22, 1
      %p377 = scmp.lt.s32.totalorder %s23, 0
      %s378 = scalar_select %p377, %s23, 0
      %p379 = scmp.lt.s32.totalorder %s24, 0
      %s380 = scalar_select %p379, %s24, 0
      %s381 = sadd.s32 %s380, %s378
      %s382 = sadd.s32 %s381, %s376
      %s383 = smul.addr %s382, 4
      %s384 = scalar_lea.vmem %s4, %s383
      %p385 = scmp.lt.s32.totalorder %s22, 1
      %s386 = scalar_select %p385, %s22, 1
      %p387 = scmp.lt.s32.totalorder %s23, 0
      %s388 = scalar_select %p387, %s23, 0
      %p389 = scmp.lt.s32.totalorder %s24, 0
      %s390 = scalar_select %p389, %s24, 0
      %s391 = sadd.s32 %s390, %s388
      %s392 = sadd.s32 %s391, %s386
      %s393 = smul.addr %s392, 4
      %s394 = scalar_lea.vmem %s5, %s393
      %v396 = vld [vmem:[%s356] sm:$0xf]
      %v397 = vld [vmem:[%s364] sm:$0xf]
      %v398 = vld [vmem:[%s364 + $0x4] sm:$0xf]
      %v399 = vld [vmem:[%s364 + $0x8] sm:$0xf]
      %v400 = vld [vmem:[%s364 + $0xc] sm:$0xf]
      %v401 = vld [vmem:[%s368] sm:$0x1]
      %v403 = vlaneseq
      %v404 = vshrl.u32 %v403, 7
      %v405 = vsub.s32 0, %v404
      %v406 = vrot.slane %v401, %v405
      %v412 = vunpack.c.l.b16 %v397
      %v413 = vunpack.c.l.b16 %v398
      %v414 = vunpack.c.l.b16 %v399
      %v415 = vunpack.c.l.b16 %v400
      %v416 = vpack.c.b16 %v413, %v412
      %v417 = vpack.c.b16 %v415, %v414
      %vm420 = vcmask 261120
      %v422 = vsel %vm420, %v396, 0
      %424 = vmatprep.subr.bf16.mxu0 0
      %425 = vmatpush1.bf16.msra.mxu0 %v416
      %426 = vmatprep.subr.bf16.mxu0 0
      %427 = vmatpush1.bf16.msra.mxu0 %v417
      %428 = vmatprep.subr.bf16.mxu0 0
      %429 = vmatpush1.bf16.msra.mxu0 0
      %430 = vmatprep.subr.bf16.mxu0 0
      %431 = vmatpush1.bf16.msra.mxu0 0
      %432 = vmatprep.subr.bf16.mxu0 0
      %433 = vmatpush1.bf16.msra.mxu0 0
      %434 = vmatprep.subr.bf16.mxu0 0
      %435 = vmatpush1.bf16.msra.mxu0 0
      %436 = vmatprep.subr.bf16.mxu0 0
      %437 = vmatpush1.bf16.msra.mxu0 0
      %438 = vmatprep.subr.bf16.mxu0 0
      %439 = vmatpush1.bf16.msra.mxu0 0
      %440 = vmatprep.subr.bf16.mxu0 0
      %441 = vmatpush1.bf16.msra.mxu0 0
      %442 = vmatprep.subr.bf16.mxu0 0
      %443 = vmatpush1.bf16.msra.mxu0 0
      %444 = vmatprep.subr.bf16.mxu0 0
      %445 = vmatpush1.bf16.msra.mxu0 0
      %446 = vmatprep.subr.bf16.mxu0 0
      %447 = vmatpush1.bf16.msra.mxu0 0
      %448 = vmatprep.subr.bf16.mxu0 0
      %449 = vmatpush1.bf16.msra.mxu0 0
      %450 = vmatprep.subr.bf16.mxu0 0
      %451 = vmatpush1.bf16.msra.mxu0 0
      %452 = vmatprep.subr.bf16.mxu0 0
      %453 = vmatpush1.bf16.msra.mxu0 0
      %454 = vmatprep.subr.bf16.mxu0 0
      %455 = vmatpush1.bf16.msra.mxu0 0
      %456 = vmatprep.mubr.bf16.mxu0 0
      %457 = vmatmul.mubr.bf16.gmra.mrb[0].mxu0 %v422
      %v458 = vpop.f32.mrb[0].mxu0
      %v459 = vadd.f32 %v406, %v458
      %v460 = vpop.f32.mrb[0].mxu0
      %v461 = vpop.f32.mrb[0].mxu0
      %v462 = vpop.f32.mrb[0].mxu0
      %463 = vdwg.mxu0
      %v464 = vld [vmem:[%s374] sm:$0x1]
      %v465 = vunpack.c.l.bf16 %v464
      %v466 = vlaneseq
      %v467 = vshrl.u32 %v466, 7
      %v468 = vsub.s32 0, %v467
      %v469 = vrot.slane %v465, %v468
      %v470 = vmul.f32 %v459, %v469
      %v471 = vld [vmem:[%s384] sm:$0xf]
      %v472 = vunpack.c.l.bf16 %v471
      %v473 = vadd.f32 %v470, %v472
      %v474 = vpack.c.bf16 %v473, %v473
      %vm475 = vcmask 257024
      %476 = vst.msk [vmem:[%s394] sm:$0xf] %vm475, %v474
      %p477 = scmp.lt.s32.totalorder %s22, 1
      %s478 = scalar_select %p477, %s22, 1
      %p479 = scmp.lt.s32.totalorder %s23, 0
      %s480 = scalar_select %p479, %s23, 0
      %p481 = scmp.lt.s32.totalorder %s24, 0
      %s482 = scalar_select %p481, %s24, 0
      %s483 = sadd.s32 %s482, %s480
      %s484 = sadd.s32 %s483, %s478
      %s485 = smul.addr %s484, 4
      %s486 = scalar_lea.vmem %s5, %s485
      // Predicated region
      $region41: #{dit_predictor_forward.21} parent=39 // pred_check
        %p487 = pneg %p206
      $region42: #{dit_predictor_forward.21} parent=39 // pred_check_branch
        %489 = sbr.rel (%p487) target = $region44
      $region43: #{dit_predictor_forward.21} parent=39 // pred_region
        _
      $region44: #{dit_predictor_forward.21} parent=39 // pred_fallthru
        _
    $region40: #{dit_predictor_forward.21} parent=5 // pred_fallthru
      _
    %p490 = scmp.le.s32.totalorder 2, %s11
    // Predicated region
    $region45: #{dit_predictor_forward.21} parent=5 // pred_check
      %p491 = pneg %p490
    $region46: #{dit_predictor_forward.21} parent=5 // pred_check_branch
      %493 = sbr.rel (%p491) target = $region48
    $region47: #{dit_predictor_forward.21} parent=5 // pred_region
      %s494 = ssub.s32 %s11, 2
      // Predicated region
      $region49: #{dit_predictor_forward.21} parent=47 // pred_check
        %p495 = pneg %p212
      $region50: #{dit_predictor_forward.21} parent=47 // pred_check_branch
        %497 = sbr.rel (%p495) target = $region52
      $region51: #{dit_predictor_forward.21} parent=47 // pred_region
        %p498 = scmp.lt.s32.totalorder %s26, 1
        %s499 = scalar_select %p498, %s26, 1
        %p500 = scmp.lt.s32.totalorder %s27, 0
        %s501 = scalar_select %p500, %s27, 0
        %p502 = scmp.lt.s32.totalorder %s28, 0
        %s503 = scalar_select %p502, %s28, 0
        %s504 = sadd.s32 %s503, %s501
        %s505 = sadd.s32 %s504, %s499
        %s506 = smul.addr %s505, 4
        %s507 = scalar_lea.vmem %s5, %s506
      $region52: #{dit_predictor_forward.21} parent=47 // pred_fallthru
        _
    $region48: #{dit_predictor_forward.21} parent=5 // pred_fallthru
      _
  $region6: #{dit_predictor_forward.21} parent=0 // loop_footer
    %s15 = sadd.s32 1, %s11
  $region7: #{dit_predictor_forward.21} parent=0 // loop_footer_branch
    %10 = sbr.rel target = $region3
  $region8: #{dit_predictor_forward.21} parent=0 // loop_exit
    _

// kernel: dit_predictor_forward.22
$region0: #{dit_predictor_forward.22}
  #allocation0 [shape = 'u32[]', space=smem, size = 0x4, offset = 0x4, fixed_abs, tag = 'smem constant byte address 0x4 - core index']
  #allocation1 [shape = 'u32[144,128]{1,0:T(1,128)}', space=vmem, size = 0x12000, scoped, tag = 'internal scratch']
  #allocation2 [shape = 'bf16[8,32]{1,0:T(8,128)(2,1)}', space=vmem, size = 0x800, scoped, tag = 'scratch operand']
  %s0 = inlined_call_operand.vmem [shape: bf16[2,8,32], index: 0, kind: input, shape index: {}]
  %s1 = inlined_call_operand.vmem [shape: bf16[32,128], index: 1, kind: input, shape index: {}]
  %s2 = inlined_call_operand.vmem [shape: f32[1,128], index: 2, kind: input, shape index: {}]
  %s3 = inlined_call_operand.vmem [shape: bf16[2,1,32], index: 3, kind: input, shape index: {}]
  %s4 = inlined_call_operand.vmem [shape: bf16[2,1,32], index: 4, kind: input, shape index: {}]
  %s5 = inlined_call_operand.vmem [shape: bf16[2,8,128], index: 5, kind: output, shape index: {}]
  %s6 = sld [smem:[#allocation0]]
  $region57: #{dit_predictor_forward.22} parent=0
    _
  %s8 = ssub.s32 1, %s6
  %s9 = scalar_select 0, %s8, %s6
  loop: start=0, step=1, limit=4
  $region2: #{dit_predictor_forward.22} parent=0 // loop_pre_header
    _
  $region3: #{dit_predictor_forward.22} parent=0 // loop_header
    %s11 = sphi 0, %s15
    %p12 = scmp.ge.s32.totalorder %s11, 4
    %s18 = sphi 0, %s44
    %s19 = sphi 0, %s40
    %s20 = sphi 0, %s36
    %s21 = sphi 0, %s32
    %s22 = sphi 0, %s18
    %s23 = sphi 0, %s19
    %s24 = sphi 0, %s20
    %s25 = sphi 0, %s21
    %s26 = sphi 0, %s22
    %s27 = sphi 0, %s23
    %s28 = sphi 0, %s24
    %s29 = sphi 0, %s25
    %s51 = sphi 0, %s53
    %s54 = sphi 0, %s51
    %s55 = sphi 0, %s54
    %s71 = sphi 0, %s55
    %s79 = sphi 0, %s81
    %s82 = sphi 0, %s79
    %s83 = sphi 0, %s82
    %s99 = sphi 0, %s83
    %s105 = sphi 0, %s107
    %s108 = sphi 0, %s105
    %s109 = sphi 0, %s108
    %s125 = sphi 0, %s109
    %s131 = sphi 0, %s133
    %s134 = sphi 0, %s131
    %s135 = sphi 0, %s134
    %s151 = sphi 0, %s135
    %s157 = sphi 0, %s159
    %s160 = sphi 0, %s157
    %s161 = sphi 0, %s160
    %s177 = sphi 0, %s161
    %s187 = sphi 0, %s189
    %s190 = sphi 0, %s187
    %s191 = sphi 0, %s190
    %s207 = sphi 0, %s191
  $region4: #{dit_predictor_forward.22} parent=0 // loop_header_branch
    %14 = sbr.rel (%p12) target = $region8
  $region5: #{dit_predictor_forward.22} parent=0 // loop_body
    %s16 = ssub.s32 %s11, 1
    %s17 = ssub.s32 %s11, 2
    %s30 = sadd.s32 1, %s21
    %p31 = scmp.ge.s32.totalorder %s30, 1
    %s32 = scalar_select %p31, 0, %s30
    %s33 = sadd.s32 1, %s20
    %s34 = scalar_select %p31, %s33, %s20
    %p35 = scmp.ge.s32.totalorder %s34, 1
    %s36 = scalar_select %p35, 0, %s34
    %s37 = sadd.s32 1, %s19
    %s38 = scalar_select %p35, %s37, %s19
    %p39 = scmp.ge.s32.totalorder %s38, 1
    %s40 = scalar_select %p39, 0, %s38
    %s41 = sadd.s32 1, %s18
    %s42 = scalar_select %p39, %s41, %s18
    %p43 = scmp.ge.s32.totalorder %s42, 2
    %s44 = scalar_select %p43, 0, %s42
    %s45 = ssub.s32 %s18, %s44
    %s46 = ssub.s32 %s19, %s40
    %s47 = sor.u32 %s45, %s46
    %s48 = ssub.s32 %s21, %s32
    %s49 = sor.u32 %s47, %s48
    %p50 = scmp.eq.s32.totalorder %s49, 0
    %s52 = sadd.s32 %s51, 1
    %s53 = scalar_select %p50, %s51, %s52
    %p56 = pneg %p50
    %p57 = scmp.eq.s32.totalorder %s11, 1
    %p58 = por %p56, %p57
    %p59 = scmp.ne.s32.totalorder %s51, %s54
    %p60 = scmp.eq.s32.totalorder %s11, 0
    %p61 = por %p59, %p60
    %p62 = scmp.ne.s32.totalorder %s51, %s54
    %p63 = scmp.eq.s32.totalorder %s16, 1
    %p64 = por %p62, %p63
    %p65 = scmp.ne.s32.totalorder %s54, %s55
    %p66 = scmp.eq.s32.totalorder %s16, 0
    %p67 = por %p65, %p66
    %p68 = scmp.ne.s32.totalorder %s54, %s55
    %p69 = scmp.eq.s32.totalorder %s17, 1
    %p70 = por %p68, %p69
    %p72 = scmp.ne.s32.totalorder %s55, %s71
    %p73 = scmp.eq.s32.totalorder %s17, 0
    %p74 = por %p72, %p73
    %s75 = ssub.s32 %s21, %s32
    %s76 = ssub.s32 %s20, %s36
    %s77 = sor.u32 %s75, %s76
    %p78 = scmp.eq.s32.totalorder %s77, 0
    %s80 = sadd.s32 %s79, 1
    %s81 = scalar_select %p78, %s79, %s80
    %p84 = pneg %p78
    %p85 = scmp.eq.s32.totalorder %s11, 1
    %p86 = por %p84, %p85
    %p87 = scmp.ne.s32.totalorder %s79, %s82
    %p88 = scmp.eq.s32.totalorder %s11, 0
    %p89 = por %p87, %p88
    %p90 = scmp.ne.s32.totalorder %s79, %s82
    %p91 = scmp.eq.s32.totalorder %s16, 1
    %p92 = por %p90, %p91
    %p93 = scmp.ne.s32.totalorder %s82, %s83
    %p94 = scmp.eq.s32.totalorder %s16, 0
    %p95 = por %p93, %p94
    %p96 = scmp.ne.s32.totalorder %s82, %s83
    %p97 = scmp.eq.s32.totalorder %s17, 1
    %p98 = por %p96, %p97
    %p100 = scmp.ne.s32.totalorder %s83, %s99
    %p101 = scmp.eq.s32.totalorder %s17, 0
    %p102 = por %p100, %p101
    %s103 = ssub.s32 %s20, %s36
    %p104 = scmp.eq.s32.totalorder %s103, 0
    %s106 = sadd.s32 %s105, 1
    %s107 = scalar_select %p104, %s105, %s106
    %p110 = pneg %p104
    %p111 = scmp.eq.s32.totalorder %s11, 1
    %p112 = por %p110, %p111
    %p113 = scmp.ne.s32.totalorder %s105, %s108
    %p114 = scmp.eq.s32.totalorder %s11, 0
    %p115 = por %p113, %p114
    %p116 = scmp.ne.s32.totalorder %s105, %s108
    %p117 = scmp.eq.s32.totalorder %s16, 1
    %p118 = por %p116, %p117
    %p119 = scmp.ne.s32.totalorder %s108, %s109
    %p120 = scmp.eq.s32.totalorder %s16, 0
    %p121 = por %p119, %p120
    %p122 = scmp.ne.s32.totalorder %s108, %s109
    %p123 = scmp.eq.s32.totalorder %s17, 1
    %p124 = por %p122, %p123
    %p126 = scmp.ne.s32.totalorder %s109, %s125
    %p127 = scmp.eq.s32.totalorder %s17, 0
    %p128 = por %p126, %p127
    %s129 = ssub.s32 %s18, %s44
    %p130 = scmp.eq.s32.totalorder %s129, 0
    %s132 = sadd.s32 %s131, 1
    %s133 = scalar_select %p130, %s131, %s132
    %p136 = pneg %p130
    %p137 = scmp.eq.s32.totalorder %s11, 1
    %p138 = por %p136, %p137
    %p139 = scmp.ne.s32.totalorder %s131, %s134
    %p140 = scmp.eq.s32.totalorder %s11, 0
    %p141 = por %p139, %p140
    %p142 = scmp.ne.s32.totalorder %s131, %s134
    %p143 = scmp.eq.s32.totalorder %s16, 1
    %p144 = por %p142, %p143
    %p145 = scmp.ne.s32.totalorder %s134, %s135
    %p146 = scmp.eq.s32.totalorder %s16, 0
    %p147 = por %p145, %p146
    %p148 = scmp.ne.s32.totalorder %s134, %s135
    %p149 = scmp.eq.s32.totalorder %s17, 1
    %p150 = por %p148, %p149
    %p152 = scmp.ne.s32.totalorder %s135, %s151
    %p153 = scmp.eq.s32.totalorder %s17, 0
    %p154 = por %p152, %p153
    %s155 = ssub.s32 %s18, %s44
    %p156 = scmp.eq.s32.totalorder %s155, 0
    %s158 = sadd.s32 %s157, 1
    %s159 = scalar_select %p156, %s157, %s158
    %p162 = pneg %p156
    %p163 = scmp.eq.s32.totalorder %s11, 1
    %p164 = por %p162, %p163
    %p165 = scmp.ne.s32.totalorder %s157, %s160
    %p166 = scmp.eq.s32.totalorder %s11, 0
    %p167 = por %p165, %p166
    %p168 = scmp.ne.s32.totalorder %s157, %s160
    %p169 = scmp.eq.s32.totalorder %s16, 1
    %p170 = por %p168, %p169
    %p171 = scmp.ne.s32.totalorder %s160, %s161
    %p172 = scmp.eq.s32.totalorder %s16, 0
    %p173 = por %p171, %p172
    %p174 = scmp.ne.s32.totalorder %s160, %s161
    %p175 = scmp.eq.s32.totalorder %s17, 1
    %p176 = por %p174, %p175
    %p178 = scmp.ne.s32.totalorder %s161, %s177
    %p179 = scmp.eq.s32.totalorder %s17, 0
    %p180 = por %p178, %p179
    %s181 = ssub.s32 %s18, %s44
    %s182 = ssub.s32 %s19, %s40
    %s183 = sor.u32 %s181, %s182
    %s184 = ssub.s32 %s20, %s36
    %s185 = sor.u32 %s183, %s184
    %p186 = scmp.eq.s32.totalorder %s185, 0
    %s188 = sadd.s32 %s187, 1
    %s189 = scalar_select %p186, %s187, %s188
    %p192 = pneg %p186
    %p193 = scmp.eq.s32.totalorder %s11, 1
    %p194 = por %p192, %p193
    %p195 = scmp.ne.s32.totalorder %s187, %s190
    %p196 = scmp.eq.s32.totalorder %s11, 0
    %p197 = por %p195, %p196
    %p198 = scmp.ne.s32.totalorder %s187, %s190
    %p199 = scmp.eq.s32.totalorder %s16, 1
    %p200 = por %p198, %p199
    %p201 = scmp.ne.s32.totalorder %s190, %s191
    %p202 = scmp.eq.s32.totalorder %s16, 0
    %p203 = por %p201, %p202
    %p204 = scmp.ne.s32.totalorder %s190, %s191
    %p205 = scmp.eq.s32.totalorder %s17, 1
    %p206 = por %p204, %p205
    %p208 = scmp.ne.s32.totalorder %s191, %s207
    %p209 = scmp.eq.s32.totalorder %s17, 0
    %p210 = por %p208, %p209
    %p211 = scmp.le.s32.totalorder 1, %s11
    %p212 = scmp.lt.s32.totalorder %s11, 3
    %p213 = pnand %p211, %p212
    %p214 = pneg %p213
    // Predicated region
    $region9: #{dit_predictor_forward.22} parent=5 // pred_check
      _
    $region10: #{dit_predictor_forward.22} parent=5 // pred_check_branch
      %216 = sbr.rel (%p213) target = $region12
    $region11: #{dit_predictor_forward.22} parent=5 // pred_region
      %s217 = ssub.s32 %s11, 1
      // Predicated region
      $region13: #{dit_predictor_forward.22} parent=11 // pred_check
        %p218 = pneg %p95
      $region14: #{dit_predictor_forward.22} parent=11 // pred_check_branch
        %220 = sbr.rel (%p218) target = $region16
      $region15: #{dit_predictor_forward.22} parent=11 // pred_region
        %s221 = smul.u32 4, %s25
        %p222 = scmp.lt.s32.totalorder %s221, 3
        %s223 = scalar_select %p222, %s221, 3
        %p224 = scmp.lt.s32.totalorder %s24, 0
        %s225 = scalar_select %p224, %s24, 0
        %s226 = sadd.s32 %s225, %s223
        %s227 = smul.addr %s226, 4
        %s228 = scalar_lea.vmem %s1, %s227
        %s229 = smul.u32 4, %s25
      $region16: #{dit_predictor_forward.22} parent=11 // pred_fallthru
        _
      // Predicated region
      $region17: #{dit_predictor_forward.22} parent=11 // pred_check
        %p230 = pneg %p121
      $region18: #{dit_predictor_forward.22} parent=11 // pred_check_branch
        %232 = sbr.rel (%p230) target = $region20
      $region19: #{dit_predictor_forward.22} parent=11 // pred_region
        %p233 = scmp.lt.s32.totalorder %s24, 0
        %s234 = scalar_select %p233, %s24, 0
        %s235 = scalar_lea.vmem %s2, %s234
      $region20: #{dit_predictor_forward.22} parent=11 // pred_fallthru
        _
    $region12: #{dit_predictor_forward.22} parent=5 // pred_fallthru
      _
    %p236 = scmp.lt.s32.totalorder %s11, 2
    // Predicated region
    $region21: #{dit_predictor_forward.22} parent=5 // pred_check
      %p237 = pneg %p236
    $region22: #{dit_predictor_forward.22} parent=5 // pred_check_branch
      %239 = sbr.rel (%p237) target = $region24
    $region23: #{dit_predictor_forward.22} parent=5 // pred_region
      // Predicated region
      $region25: #{dit_predictor_forward.22} parent=23 // pred_check
        %p240 = pneg %p61
      $region26: #{dit_predictor_forward.22} parent=23 // pred_check_branch
        %242 = sbr.rel (%p240) target = $region28
      $region27: #{dit_predictor_forward.22} parent=23 // pred_region
        %p243 = scmp.lt.s32.totalorder %s18, 1
        %s244 = scalar_select %p243, %s18, 1
        %p245 = scmp.lt.s32.totalorder %s19, 0
        %s246 = scalar_select %p245, %s19, 0
        %p247 = scmp.lt.s32.totalorder %s21, 0
        %s248 = scalar_select %p247, %s21, 0
        %s249 = sadd.s32 %s248, %s246
        %s250 = sadd.s32 %s249, %s244
        %s251 = smul.addr %s250, 4
        %s252 = scalar_lea.vmem %s0, %s251
      $region28: #{dit_predictor_forward.22} parent=23 // pred_fallthru
        _
      // Predicated region
      $region29: #{dit_predictor_forward.22} parent=23 // pred_check
        %p253 = pneg %p141
      $region30: #{dit_predictor_forward.22} parent=23 // pred_check_branch
        %255 = sbr.rel (%p253) target = $region32
      $region31: #{dit_predictor_forward.22} parent=23 // pred_region
        %p256 = scmp.lt.s32.totalorder %s18, 1
        %s257 = scalar_select %p256, %s18, 1
        %s258 = scalar_lea.vmem %s3, %s257
      $region32: #{dit_predictor_forward.22} parent=23 // pred_fallthru
        _
      // Predicated region
      $region33: #{dit_predictor_forward.22} parent=23 // pred_check
        %p259 = pneg %p167
      $region34: #{dit_predictor_forward.22} parent=23 // pred_check_branch
        %261 = sbr.rel (%p259) target = $region36
      $region35: #{dit_predictor_forward.22} parent=23 // pred_region
        %p262 = scmp.lt.s32.totalorder %s18, 1
        %s263 = scalar_select %p262, %s18, 1
        %s264 = scalar_lea.vmem %s4, %s263
      $region36: #{dit_predictor_forward.22} parent=23 // pred_fallthru
        _
    $region24: #{dit_predictor_forward.22} parent=5 // pred_fallthru
      _
    %p265 = scmp.le.s32.totalorder 1, %s11
    %p266 = scmp.lt.s32.totalorder %s11, 3
    %p267 = pnand %p265, %p266
    %p268 = pneg %p267
    // Predicated region
    $region37: #{dit_predictor_forward.22} parent=5 // pred_check
      _
    $region38: #{dit_predictor_forward.22} parent=5 // pred_check_branch
      %270 = sbr.rel (%p267) target = $region40
    $region39: #{dit_predictor_forward.22} parent=5 // pred_region
      %s271 = ssub.s32 %s11, 1
      %p272 = scmp.lt.s32.totalorder %s22, 1
      %s273 = scalar_select %p272, %s22, 1
      %p274 = scmp.lt.s32.totalorder %s23, 0
      %s275 = scalar_select %p274, %s23, 0
      %p276 = scmp.lt.s32.totalorder %s25, 0
      %s277 = scalar_select %p276, %s25, 0
      %s278 = sadd.s32 %s277, %s275
      %s279 = sadd.s32 %s278, %s273
      %s280 = smul.addr %s279, 4
      %s281 = scalar_lea.vmem %s0, %s280
      %p282 = pneg %p67
      %p283 = pneg %p64
      %s284 = smul.u32 4, %s25
      %p285 = scmp.lt.s32.totalorder %s284, 3
      %s286 = scalar_select %p285, %s284, 3
      %p287 = scmp.lt.s32.totalorder %s24, 0
      %s288 = scalar_select %p287, %s24, 0
      %s289 = sadd.s32 %s288, %s286
      %s290 = smul.addr %s289, 4
      %s291 = scalar_lea.vmem %s1, %s290
      %p292 = pneg %p95
      %p293 = pneg %p92
      %p294 = scmp.lt.s32.totalorder %s24, 0
      %s295 = scalar_select %p294, %s24, 0
      %s296 = scalar_lea.vmem %s2, %s295
      %p297 = pneg %p121
      %p298 = pneg %p118
      %p299 = scmp.lt.s32.totalorder %s22, 1
      %s300 = scalar_select %p299, %s22, 1
      %s301 = scalar_lea.vmem %s3, %s300
      %p302 = pneg %p147
      %p303 = pneg %p144
      %p304 = scmp.lt.s32.totalorder %s22, 1
      %s305 = scalar_select %p304, %s22, 1
      %s306 = scalar_lea.vmem %s4, %s305
      %p307 = pneg %p173
      %p308 = pneg %p170
      %p309 = pneg %p203
      %p310 = pneg %p200
      %p311 = scmp.lt.s32.totalorder %s22, 1
      %s312 = scalar_select %p311, %s22, 1
      %p313 = scmp.lt.s32.totalorder %s23, 0
      %s314 = scalar_select %p313, %s23, 0
      %p315 = scmp.lt.s32.totalorder %s24, 0
      %s316 = scalar_select %p315, %s24, 0
      %s317 = sadd.s32 %s316, %s314
      %s318 = sadd.s32 %s317, %s312
      %s319 = smul.addr %s318, 4
      %s320 = scalar_lea.vmem %s5, %s319
      %p321 = scmp.lt.s32.totalorder %s22, 1
      %s322 = scalar_select %p321, %s22, 1
      %p323 = scmp.lt.s32.totalorder %s23, 0
      %s324 = scalar_select %p323, %s23, 0
      %p325 = scmp.lt.s32.totalorder %s25, 0
      %s326 = scalar_select %p325, %s25, 0
      %s327 = sadd.s32 %s326, %s324
      %s328 = sadd.s32 %s327, %s322
      %s329 = smul.addr %s328, 4
      %s330 = scalar_lea.vmem %s0, %s329
      %s331 = smul.u32 4, %s25
      %p332 = scmp.lt.s32.totalorder %s331, 3
      %s333 = scalar_select %p332, %s331, 3
      %p334 = scmp.lt.s32.totalorder %s24, 0
      %s335 = scalar_select %p334, %s24, 0
      %s336 = sadd.s32 %s335, %s333
      %s337 = smul.addr %s336, 4
      %s338 = scalar_lea.vmem %s1, %s337
      %s339 = smul.u32 4, %s25
      %p340 = scmp.lt.s32.totalorder %s24, 0
      %s341 = scalar_select %p340, %s24, 0
      %s342 = scalar_lea.vmem %s2, %s341
      %p343 = scmp.lt.s32.totalorder %s22, 1
      %s344 = scalar_select %p343, %s22, 1
      %s345 = scalar_lea.vmem %s3, %s344
      %p346 = scmp.lt.s32.totalorder %s22, 1
      %s347 = scalar_select %p346, %s22, 1
      %s348 = scalar_lea.vmem %s4, %s347
      %p349 = scmp.lt.s32.totalorder %s22, 1
      %s350 = scalar_select %p349, %s22, 1
      %p351 = scmp.lt.s32.totalorder %s23, 0
      %s352 = scalar_select %p351, %s23, 0
      %p353 = scmp.lt.s32.totalorder %s24, 0
      %s354 = scalar_select %p353, %s24, 0
      %s355 = sadd.s32 %s354, %s352
      %s356 = sadd.s32 %s355, %s350
      %s357 = smul.addr %s356, 4
      %s358 = scalar_lea.vmem %s5, %s357
      %p360 = scmp.eq.s32.totalorder %s24, 0
      // Predicated region
      $region41: #{dit_predictor_forward.22} parent=39 // pred_check
        %p361 = pneg %p360
      $region42: #{dit_predictor_forward.22} parent=39 // pred_check_branch
        %363 = sbr.rel (%p361) target = $region44
      $region43: #{dit_predictor_forward.22} parent=39 // pred_region
        %v364 = vld [vmem:[%s330] sm:$0xf]
        %v365 = vunpack.c.l.bf16 %v364
        %vm366 = vcmask 261120
        %v367 = vsel %vm366, %v365, 0.0
        %368 = vadd.xlane.f32.xlu0 %v367
        %v369 = vpop.xlane.xlu0 %368
        %v370 = vrcp.pop 32.0
        %v371 = vmul.f32 %v369, %v370
        %v372 = vsub.f32 %v365, %v371
        %v373 = vmul.f32 %v372, %v372
        %v374 = vsel %vm366, %v373, 0.0
        %375 = vadd.xlane.f32.xlu0 %v374
        %v376 = vpop.xlane.xlu0 %375
        %v377 = vmul.f32 %v376, %v370
        %v378 = vadd.f32 %v377, 1e-06
        %v379 = vrsqrt.pop %v378
        %v380 = vmul.f32 %v372, %v379
        %v381 = vld [vmem:[%s348] sm:$0x1]
        %v382 = vunpack.c.l.bf16 %v381
        %v383 = vadd.f32 %v382, 1.0
        %v384 = vlaneseq
        %v385 = vshrl.u32 %v384, 7
        %v386 = vsub.s32 0, %v385
        %v387 = vrot.slane %v383, %v386
        %v388 = vmul.f32 %v380, %v387
        %v389 = vld [vmem:[%s345] sm:$0x1]
        %v390 = vunpack.c.l.bf16 %v389
        %v391 = vlaneseq
        %v392 = vshrl.u32 %v391, 7
        %v393 = vsub.s32 0, %v392
        %v394 = vrot.slane %v390, %v393
        %v395 = vadd.f32 %v388, %v394
        %v396 = vpack.c.bf16 %v395, %v395
        %vm397 = vcmask 257024
        %398 = vst.msk [vmem:[#allocation2] sm:$0xf] %vm397, %v396
      $region44: #{dit_predictor_forward.22} parent=39 // pred_fallthru
        _
      %v399 = vld [vmem:[#allocation2] sm:$0xf]
      %v400 = vld [vmem:[%s338] sm:$0xf]
      %v401 = vld [vmem:[%s338 + $0x4] sm:$0xf]
      %v402 = vld [vmem:[%s338 + $0x8] sm:$0xf]
      %v403 = vld [vmem:[%s338 + $0xc] sm:$0xf]
      %v404 = vld [vmem:[%s342] sm:$0x1]
      %v406 = vlaneseq
      %v407 = vshrl.u32 %v406, 7
      %v408 = vsub.s32 0, %v407
      %v409 = vrot.slane %v404, %v408
      %v415 = vunpack.c.l.b16 %v400
      %v416 = vunpack.c.l.b16 %v401
      %v417 = vunpack.c.l.b16 %v402
      %v418 = vunpack.c.l.b16 %v403
      %v419 = vpack.c.b16 %v416, %v415
      %v420 = vpack.c.b16 %v418, %v417
      %vm423 = vcmask 261120
      %v425 = vsel %vm423, %v399, 0
      %427 = vmatprep.subr.bf16.mxu0 0
      %428 = vmatpush1.bf16.msra.mxu0 %v419
      %429 = vmatprep.subr.bf16.mxu0 0
      %430 = vmatpush1.bf16.msra.mxu0 %v420
      %431 = vmatprep.subr.bf16.mxu0 0
      %432 = vmatpush1.bf16.msra.mxu0 0
      %433 = vmatprep.subr.bf16.mxu0 0
      %434 = vmatpush1.bf16.msra.mxu0 0
      %435 = vmatprep.subr.bf16.mxu0 0
      %436 = vmatpush1.bf16.msra.mxu0 0
      %437 = vmatprep.subr.bf16.mxu0 0
      %438 = vmatpush1.bf16.msra.mxu0 0
      %439 = vmatprep.subr.bf16.mxu0 0
      %440 = vmatpush1.bf16.msra.mxu0 0
      %441 = vmatprep.subr.bf16.mxu0 0
      %442 = vmatpush1.bf16.msra.mxu0 0
      %443 = vmatprep.subr.bf16.mxu0 0
      %444 = vmatpush1.bf16.msra.mxu0 0
      %445 = vmatprep.subr.bf16.mxu0 0
      %446 = vmatpush1.bf16.msra.mxu0 0
      %447 = vmatprep.subr.bf16.mxu0 0
      %448 = vmatpush1.bf16.msra.mxu0 0
      %449 = vmatprep.subr.bf16.mxu0 0
      %450 = vmatpush1.bf16.msra.mxu0 0
      %451 = vmatprep.subr.bf16.mxu0 0
      %452 = vmatpush1.bf16.msra.mxu0 0
      %453 = vmatprep.subr.bf16.mxu0 0
      %454 = vmatpush1.bf16.msra.mxu0 0
      %455 = vmatprep.subr.bf16.mxu0 0
      %456 = vmatpush1.bf16.msra.mxu0 0
      %457 = vmatprep.subr.bf16.mxu0 0
      %458 = vmatpush1.bf16.msra.mxu0 0
      %459 = vmatprep.mubr.bf16.mxu0 0
      %460 = vmatmul.mubr.bf16.gmra.mrb[0].mxu0 %v425
      %v461 = vpop.f32.mrb[0].mxu0
      %v462 = vadd.f32 %v409, %v461
      %v463 = vpop.f32.mrb[0].mxu0
      %v464 = vpop.f32.mrb[0].mxu0
      %v465 = vpop.f32.mrb[0].mxu0
      %466 = vdwg.mxu0
      %v467 = vmul.f32 %v462, %v462
      %v468 = vmul.f32 %v462, %v467
      %v469 = vmul.f32 %v468, 0.044715
      %v470 = vadd.f32 %v462, %v469
      %v471 = vmul.f32 %v470, 0.7978846
      %v472 = vtanh.pop %v471
      %v473 = vadd.f32 %v472, 1.0
      %v474 = vmul.f32 %v473, 0.5
      %v475 = vmul.f32 %v462, %v474
      %v476 = vpack.c.bf16 %v475, %v475
      %477 = vst [vmem:[%s358] sm:$0xf] %v476
      %p478 = scmp.lt.s32.totalorder %s22, 1
      %s479 = scalar_select %p478, %s22, 1
      %p480 = scmp.lt.s32.totalorder %s23, 0
      %s481 = scalar_select %p480, %s23, 0
      %p482 = scmp.lt.s32.totalorder %s24, 0
      %s483 = scalar_select %p482, %s24, 0
      %s484 = sadd.s32 %s483, %s481
      %s485 = sadd.s32 %s484, %s479
      %s486 = smul.addr %s485, 4
      %s487 = scalar_lea.vmem %s5, %s486
      // Predicated region
      $region45: #{dit_predictor_forward.22} parent=39 // pred_check
        %p488 = pneg %p200
      $region46: #{dit_predictor_forward.22} parent=39 // pred_check_branch
        %490 = sbr.rel (%p488) target = $region48
      $region47: #{dit_predictor_forward.22} parent=39 // pred_region
        _
      $region48: #{dit_predictor_forward.22} parent=39 // pred_fallthru
        _
    $region40: #{dit_predictor_forward.22} parent=5 // pred_fallthru
      _
    %p491 = scmp.le.s32.totalorder 2, %s11
    // Predicated region
    $region49: #{dit_predictor_forward.22} parent=5 // pred_check
      %p492 = pneg %p491
    $region50: #{dit_predictor_forward.22} parent=5 // pred_check_branch
      %494 = sbr.rel (%p492) target = $region52
    $region51: #{dit_predictor_forward.22} parent=5 // pred_region
      %s495 = ssub.s32 %s11, 2
      // Predicated region
      $region53: #{dit_predictor_forward.22} parent=51 // pred_check
        %p496 = pneg %p206
      $region54: #{dit_predictor_forward.22} parent=51 // pred_check_branch
        %498 = sbr.rel (%p496) target = $region56
      $region55: #{dit_predictor_forward.22} parent=51 // pred_region
        %p499 = scmp.lt.s32.totalorder %s26, 1
        %s500 = scalar_select %p499, %s26, 1
        %p501 = scmp.lt.s32.totalorder %s27, 0
        %s502 = scalar_select %p501, %s27, 0
        %p503 = scmp.lt.s32.totalorder %s28, 0
        %s504 = scalar_select %p503, %s28, 0
        %s505 = sadd.s32 %s504, %s502
        %s506 = sadd.s32 %s505, %s500
        %s507 = smul.addr %s506, 4
        %s508 = scalar_lea.vmem %s5, %s507
      $region56: #{dit_predictor_forward.22} parent=51 // pred_fallthru
        _
    $region52: #{dit_predictor_forward.22} parent=5 // pred_fallthru
      _
  $region6: #{dit_predictor_forward.22} parent=0 // loop_footer
    %s15 = sadd.s32 1, %s11
  $region7: #{dit_predictor_forward.22} parent=0 // loop_footer_branch
    %10 = sbr.rel target = $region3
  $region8: #{dit_predictor_forward.22} parent=0 // loop_exit
    _

// kernel: dit_predictor_forward.20
$region0: #{dit_predictor_forward.20}
  #allocation0 [shape = 'u32[]', space=smem, size = 0x4, offset = 0x4, fixed_abs, tag = 'smem constant byte address 0x4 - core index']
  #allocation1 [shape = 'u32[144,128]{1,0:T(1,128)}', space=vmem, size = 0x12000, scoped, tag = 'internal scratch']
  #allocation2 [shape = 'f32[2,8,1]{2,1,0:T(8,128)}', space=vmem, size = 0x2000, scoped, tag = 'scratch operand']
  #allocation3 [shape = 'f32[2,8,1]{2,1,0:T(8,128)}', space=vmem, size = 0x2000, scoped, tag = 'scratch operand']
  #allocation4 [shape = 'f32[2,8,16]{2,1,0:T(8,128)}', space=vmem, size = 0x2000, scoped, tag = 'scratch operand']
  %s0 = inlined_call_operand.vmem [shape: bf16[2,2,8,16], index: 0, kind: input, shape index: {}]
  %s1 = inlined_call_operand.vmem [shape: bf16[2,2,8,16], index: 1, kind: input, shape index: {}]
  %s2 = inlined_call_operand.vmem [shape: bf16[2,2,8,16], index: 2, kind: input, shape index: {}]
  %s3 = inlined_call_operand.vmem [shape: f32[2,1,8], index: 3, kind: input, shape index: {}]
  %s4 = inlined_call_operand.vmem [shape: bf16[2,8,32], index: 4, kind: output, shape index: {}]
  %s5 = sld [smem:[#allocation0]]
  $region57: #{dit_predictor_forward.20} parent=0
    _
  %s7 = ssub.s32 1, %s5
  %s8 = scalar_select 0, %s7, %s5
  loop: start=0, step=1, limit=4
  $region2: #{dit_predictor_forward.20} parent=0 // loop_pre_header
    _
  $region3: #{dit_predictor_forward.20} parent=0 // loop_header
    %s10 = sphi 0, %s14
    %p11 = scmp.ge.s32.totalorder %s10, 4
    %s17 = sphi 0, %s36
    %s18 = sphi 0, %s32
    %s19 = sphi 0, %s28
    %s20 = sphi 0, %s17
    %s21 = sphi 0, %s18
    %s22 = sphi 0, %s19
    %s23 = sphi 0, %s20
    %s24 = sphi 0, %s21
    %s25 = sphi 0, %s22
    %s41 = sphi 0, %s43
    %s44 = sphi 0, %s41
    %s45 = sphi 0, %s44
    %s61 = sphi 0, %s45
    %s69 = sphi 0, %s71
    %s72 = sphi 0, %s69
    %s73 = sphi 0, %s72
    %s89 = sphi 0, %s73
    %s97 = sphi 0, %s99
    %s100 = sphi 0, %s97
    %s101 = sphi 0, %s100
    %s117 = sphi 0, %s101
    %s125 = sphi 0, %s127
    %s128 = sphi 0, %s125
    %s129 = sphi 0, %s128
    %s145 = sphi 0, %s129
    %s153 = sphi 0, %s155
    %s156 = sphi 0, %s153
    %s157 = sphi 0, %s156
    %s173 = sphi 0, %s157
  $region4: #{dit_predictor_forward.20} parent=0 // loop_header_branch
    %13 = sbr.rel (%p11) target = $region8
  $region5: #{dit_predictor_forward.20} parent=0 // loop_body
    %s15 = ssub.s32 %s10, 1
    %s16 = ssub.s32 %s10, 2
    %s26 = sadd.s32 1, %s19
    %p27 = scmp.ge.s32.totalorder %s26, 1
    %s28 = scalar_select %p27, 0, %s26
    %s29 = sadd.s32 1, %s18
    %s30 = scalar_select %p27, %s29, %s18
    %p31 = scmp.ge.s32.totalorder %s30, 1
    %s32 = scalar_select %p31, 0, %s30
    %s33 = sadd.s32 1, %s17
    %s34 = scalar_select %p31, %s33, %s17
    %p35 = scmp.ge.s32.totalorder %s34, 2
    %s36 = scalar_select %p35, 0, %s34
    %s37 = ssub.s32 %s17, %s36
    %s38 = ssub.s32 %s18, %s32
    %s39 = sor.u32 %s37, %s38
    %p40 = scmp.eq.s32.totalorder %s39, 0
    %s42 = sadd.s32 %s41, 1
    %s43 = scalar_select %p40, %s41, %s42
    %p46 = pneg %p40
    %p47 = scmp.eq.s32.totalorder %s10, 1
    %p48 = por %p46, %p47
    %p49 = scmp.ne.s32.totalorder %s41, %s44
    %p50 = scmp.eq.s32.totalorder %s10, 0
    %p51 = por %p49, %p50
    %p52 = scmp.ne.s32.totalorder %s41, %s44
    %p53 = scmp.eq.s32.totalorder %s15, 1
    %p54 = por %p52, %p53
    %p55 = scmp.ne.s32.totalorder %s44, %s45
    %p56 = scmp.eq.s32.totalorder %s15, 0
    %p57 = por %p55, %p56
    %p58 = scmp.ne.s32.totalorder %s44, %s45
    %p59 = scmp.eq.s32.totalorder %s16, 1
    %p60 = por %p58, %p59
    %p62 = scmp.ne.s32.totalorder %s45, %s61
    %p63 = scmp.eq.s32.totalorder %s16, 0
    %p64 = por %p62, %p63
    %s65 = ssub.s32 %s17, %s36
    %s66 = ssub.s32 %s19, %s28
    %s67 = sor.u32 %s65, %s66
    %p68 = scmp.eq.s32.totalorder %s67, 0
    %s70 = sadd.s32 %s69, 1
    %s71 = scalar_select %p68, %s69, %s70
    %p74 = pneg %p68
    %p75 = scmp.eq.s32.totalorder %s10, 1
    %p76 = por %p74, %p75
    %p77 = scmp.ne.s32.totalorder %s69, %s72
    %p78 = scmp.eq.s32.totalorder %s10, 0
    %p79 = por %p77, %p78
    %p80 = scmp.ne.s32.totalorder %s69, %s72
    %p81 = scmp.eq.s32.totalorder %s15, 1
    %p82 = por %p80, %p81
    %p83 = scmp.ne.s32.totalorder %s72, %s73
    %p84 = scmp.eq.s32.totalorder %s15, 0
    %p85 = por %p83, %p84
    %p86 = scmp.ne.s32.totalorder %s72, %s73
    %p87 = scmp.eq.s32.totalorder %s16, 1
    %p88 = por %p86, %p87
    %p90 = scmp.ne.s32.totalorder %s73, %s89
    %p91 = scmp.eq.s32.totalorder %s16, 0
    %p92 = por %p90, %p91
    %s93 = ssub.s32 %s17, %s36
    %s94 = ssub.s32 %s19, %s28
    %s95 = sor.u32 %s93, %s94
    %p96 = scmp.eq.s32.totalorder %s95, 0
    %s98 = sadd.s32 %s97, 1
    %s99 = scalar_select %p96, %s97, %s98
    %p102 = pneg %p96
    %p103 = scmp.eq.s32.totalorder %s10, 1
    %p104 = por %p102, %p103
    %p105 = scmp.ne.s32.totalorder %s97, %s100
    %p106 = scmp.eq.s32.totalorder %s10, 0
    %p107 = por %p105, %p106
    %p108 = scmp.ne.s32.totalorder %s97, %s100
    %p109 = scmp.eq.s32.totalorder %s15, 1
    %p110 = por %p108, %p109
    %p111 = scmp.ne.s32.totalorder %s100, %s101
    %p112 = scmp.eq.s32.totalorder %s15, 0
    %p113 = por %p111, %p112
    %p114 = scmp.ne.s32.totalorder %s100, %s101
    %p115 = scmp.eq.s32.totalorder %s16, 1
    %p116 = por %p114, %p115
    %p118 = scmp.ne.s32.totalorder %s101, %s117
    %p119 = scmp.eq.s32.totalorder %s16, 0
    %p120 = por %p118, %p119
    %s121 = ssub.s32 %s17, %s36
    %s122 = ssub.s32 %s19, %s28
    %s123 = sor.u32 %s121, %s122
    %p124 = scmp.eq.s32.totalorder %s123, 0
    %s126 = sadd.s32 %s125, 1
    %s127 = scalar_select %p124, %s125, %s126
    %p130 = pneg %p124
    %p131 = scmp.eq.s32.totalorder %s10, 1
    %p132 = por %p130, %p131
    %p133 = scmp.ne.s32.totalorder %s125, %s128
    %p134 = scmp.eq.s32.totalorder %s10, 0
    %p135 = por %p133, %p134
    %p136 = scmp.ne.s32.totalorder %s125, %s128
    %p137 = scmp.eq.s32.totalorder %s15, 1
    %p138 = por %p136, %p137
    %p139 = scmp.ne.s32.totalorder %s128, %s129
    %p140 = scmp.eq.s32.totalorder %s15, 0
    %p141 = por %p139, %p140
    %p142 = scmp.ne.s32.totalorder %s128, %s129
    %p143 = scmp.eq.s32.totalorder %s16, 1
    %p144 = por %p142, %p143
    %p146 = scmp.ne.s32.totalorder %s129, %s145
    %p147 = scmp.eq.s32.totalorder %s16, 0
    %p148 = por %p146, %p147
    %s149 = ssub.s32 %s17, %s36
    %s150 = ssub.s32 %s18, %s32
    %s151 = sor.u32 %s149, %s150
    %p152 = scmp.eq.s32.totalorder %s151, 0
    %s154 = sadd.s32 %s153, 1
    %s155 = scalar_select %p152, %s153, %s154
    %p158 = pneg %p152
    %p159 = scmp.eq.s32.totalorder %s10, 1
    %p160 = por %p158, %p159
    %p161 = scmp.ne.s32.totalorder %s153, %s156
    %p162 = scmp.eq.s32.totalorder %s10, 0
    %p163 = por %p161, %p162
    %p164 = scmp.ne.s32.totalorder %s153, %s156
    %p165 = scmp.eq.s32.totalorder %s15, 1
    %p166 = por %p164, %p165
    %p167 = scmp.ne.s32.totalorder %s156, %s157
    %p168 = scmp.eq.s32.totalorder %s15, 0
    %p169 = por %p167, %p168
    %p170 = scmp.ne.s32.totalorder %s156, %s157
    %p171 = scmp.eq.s32.totalorder %s16, 1
    %p172 = por %p170, %p171
    %p174 = scmp.ne.s32.totalorder %s157, %s173
    %p175 = scmp.eq.s32.totalorder %s16, 0
    %p176 = por %p174, %p175
    %p177 = scmp.le.s32.totalorder 1, %s10
    %p178 = scmp.lt.s32.totalorder %s10, 3
    %p179 = pnand %p177, %p178
    %p180 = pneg %p179
    // Predicated region
    $region9: #{dit_predictor_forward.20} parent=5 // pred_check
      _
    $region10: #{dit_predictor_forward.20} parent=5 // pred_check_branch
      %182 = sbr.rel (%p179) target = $region12
    $region11: #{dit_predictor_forward.20} parent=5 // pred_region
      %s183 = ssub.s32 %s10, 1
    $region12: #{dit_predictor_forward.20} parent=5 // pred_fallthru
      _
    %p184 = scmp.lt.s32.totalorder %s10, 2
    // Predicated region
    $region13: #{dit_predictor_forward.20} parent=5 // pred_check
      %p185 = pneg %p184
    $region14: #{dit_predictor_forward.20} parent=5 // pred_check_branch
      %187 = sbr.rel (%p185) target = $region16
    $region15: #{dit_predictor_forward.20} parent=5 // pred_region
      // Predicated region
      $region17: #{dit_predictor_forward.20} parent=15 // pred_check
        %p188 = pneg %p51
      $region18: #{dit_predictor_forward.20} parent=15 // pred_check_branch
        %190 = sbr.rel (%p188) target = $region20
      $region19: #{dit_predictor_forward.20} parent=15 // pred_region
        %p191 = scmp.lt.s32.totalorder %s17, 1
        %s192 = scalar_select %p191, %s17, 1
        %p193 = scmp.lt.s32.totalorder %s18, 0
        %s194 = scalar_select %p193, %s18, 0
        %s195 = smul.addr %s192, 2
        %s196 = sadd.s32 %s194, %s195
        %s197 = smul.addr %s196, 4
        %s198 = scalar_lea.vmem %s0, %s197
      $region20: #{dit_predictor_forward.20} parent=15 // pred_fallthru
        _
      // Predicated region
      $region21: #{dit_predictor_forward.20} parent=15 // pred_check
        %p199 = pneg %p79
      $region22: #{dit_predictor_forward.20} parent=15 // pred_check_branch
        %201 = sbr.rel (%p199) target = $region24
      $region23: #{dit_predictor_forward.20} parent=15 // pred_region
        %p202 = scmp.lt.s32.totalorder %s17, 1
        %s203 = scalar_select %p202, %s17, 1
        %p204 = scmp.lt.s32.totalorder %s19, 0
        %s205 = scalar_select %p204, %s19, 0
        %s206 = smul.addr %s203, 2
        %s207 = sadd.s32 %s205, %s206
        %s208 = smul.addr %s207, 4
        %s209 = scalar_lea.vmem %s1, %s208
      $region24: #{dit_predictor_forward.20} parent=15 // pred_fallthru
        _
      // Predicated region
      $region25: #{dit_predictor_forward.20} parent=15 // pred_check
        %p210 = pneg %p107
      $region26: #{dit_predictor_forward.20} parent=15 // pred_check_branch
        %212 = sbr.rel (%p210) target = $region28
      $region27: #{dit_predictor_forward.20} parent=15 // pred_region
        %p213 = scmp.lt.s32.totalorder %s17, 1
        %s214 = scalar_select %p213, %s17, 1
        %p215 = scmp.lt.s32.totalorder %s19, 0
        %s216 = scalar_select %p215, %s19, 0
        %s217 = smul.addr %s214, 2
        %s218 = sadd.s32 %s216, %s217
        %s219 = smul.addr %s218, 4
        %s220 = scalar_lea.vmem %s2, %s219
      $region28: #{dit_predictor_forward.20} parent=15 // pred_fallthru
        _
      // Predicated region
      $region29: #{dit_predictor_forward.20} parent=15 // pred_check
        %p221 = pneg %p135
      $region30: #{dit_predictor_forward.20} parent=15 // pred_check_branch
        %223 = sbr.rel (%p221) target = $region32
      $region31: #{dit_predictor_forward.20} parent=15 // pred_region
        %p224 = scmp.lt.s32.totalorder %s17, 1
        %s225 = scalar_select %p224, %s17, 1
        %p226 = scmp.lt.s32.totalorder %s19, 0
        %s227 = scalar_select %p226, %s19, 0
        %s228 = sadd.s32 %s227, %s225
        %s229 = scalar_lea.vmem %s3, %s228
      $region32: #{dit_predictor_forward.20} parent=15 // pred_fallthru
        _
    $region16: #{dit_predictor_forward.20} parent=5 // pred_fallthru
      _
    %p230 = scmp.le.s32.totalorder 1, %s10
    %p231 = scmp.lt.s32.totalorder %s10, 3
    %p232 = pnand %p230, %p231
    %p233 = pneg %p232
    // Predicated region
    $region33: #{dit_predictor_forward.20} parent=5 // pred_check
      _
    $region34: #{dit_predictor_forward.20} parent=5 // pred_check_branch
      %235 = sbr.rel (%p232) target = $region36
    $region35: #{dit_predictor_forward.20} parent=5 // pred_region
      %s236 = ssub.s32 %s10, 1
      %p237 = scmp.lt.s32.totalorder %s20, 1
      %s238 = scalar_select %p237, %s20, 1
      %p239 = scmp.lt.s32.totalorder %s21, 0
      %s240 = scalar_select %p239, %s21, 0
      %s241 = smul.addr %s238, 2
      %s242 = sadd.s32 %s240, %s241
      %s243 = smul.addr %s242, 4
      %s244 = scalar_lea.vmem %s0, %s243
      %p245 = pneg %p57
      %p246 = pneg %p54
      %p247 = scmp.lt.s32.totalorder %s20, 1
      %s248 = scalar_select %p247, %s20, 1
      %p249 = scmp.lt.s32.totalorder %s22, 0
      %s250 = scalar_select %p249, %s22, 0
      %s251 = smul.addr %s248, 2
      %s252 = sadd.s32 %s250, %s251
      %s253 = smul.addr %s252, 4
      %s254 = scalar_lea.vmem %s1, %s253
      %p255 = pneg %p85
      %p256 = pneg %p82
      %p257 = scmp.lt.s32.totalorder %s20, 1
      %s258 = scalar_select %p257, %s20, 1
      %p259 = scmp.lt.s32.totalorder %s22, 0
      %s260 = scalar_select %p259, %s22, 0
      %s261 = smul.addr %s258, 2
      %s262 = sadd.s32 %s260, %s261
      %s263 = smul.addr %s262, 4
      %s264 = scalar_lea.vmem %s2, %s263
      %p265 = pneg %p113
      %p266 = pneg %p110
      %p267 = scmp.lt.s32.totalorder %s20, 1
      %s268 = scalar_select %p267, %s20, 1
      %p269 = scmp.lt.s32.totalorder %s22, 0
      %s270 = scalar_select %p269, %s22, 0
      %s271 = sadd.s32 %s270, %s268
      %s272 = scalar_lea.vmem %s3, %s271
      %p273 = pneg %p141
      %p274 = pneg %p138
      %p275 = pneg %p169
      %p276 = pneg %p166
      %p277 = scmp.lt.s32.totalorder %s20, 1
      %s278 = scalar_select %p277, %s20, 1
      %p279 = scmp.lt.s32.totalorder %s21, 0
      %s280 = scalar_select %p279, %s21, 0
      %s281 = sadd.s32 %s280, %s278
      %s282 = smul.addr %s281, 4
      %s283 = scalar_lea.vmem %s4, %s282
      %p284 = scmp.lt.s32.totalorder %s20, 1
      %s285 = scalar_select %p284, %s20, 1
      %p286 = scmp.lt.s32.totalorder %s21, 0
      %s287 = scalar_select %p286, %s21, 0
      %s288 = smul.addr %s285, 2
      %s289 = sadd.s32 %s287, %s288
      %s290 = smul.addr %s289, 4
      %s291 = scalar_lea.vmem %s0, %s290
      %p292 = scmp.lt.s32.totalorder %s20, 1
      %s293 = scalar_select %p292, %s20, 1
      %p294 = scmp.lt.s32.totalorder %s22, 0
      %s295 = scalar_select %p294, %s22, 0
      %s296 = smul.addr %s293, 2
      %s297 = sadd.s32 %s295, %s296
      %s298 = smul.addr %s297, 4
      %s299 = scalar_lea.vmem %s1, %s298
      %p300 = scmp.lt.s32.totalorder %s20, 1
      %s301 = scalar_select %p300, %s20, 1
      %p302 = scmp.lt.s32.totalorder %s22, 0
      %s303 = scalar_select %p302, %s22, 0
      %s304 = smul.addr %s301, 2
      %s305 = sadd.s32 %s303, %s304
      %s306 = smul.addr %s305, 4
      %s307 = scalar_lea.vmem %s2, %s306
      %p308 = scmp.lt.s32.totalorder %s20, 1
      %s309 = scalar_select %p308, %s20, 1
      %p310 = scmp.lt.s32.totalorder %s22, 0
      %s311 = scalar_select %p310, %s22, 0
      %s312 = sadd.s32 %s311, %s309
      %s313 = scalar_lea.vmem %s3, %s312
      %p314 = scmp.lt.s32.totalorder %s20, 1
      %s315 = scalar_select %p314, %s20, 1
      %p316 = scmp.lt.s32.totalorder %s21, 0
      %s317 = scalar_select %p316, %s21, 0
      %s318 = sadd.s32 %s317, %s315
      %s319 = smul.addr %s318, 4
      %s320 = scalar_lea.vmem %s4, %s319
      %p322 = scmp.eq.s32.totalorder %s22, 0
      // Predicated region
      $region37: #{dit_predictor_forward.20} parent=35 // pred_check
        %p323 = pneg %p322
      $region38: #{dit_predictor_forward.20} parent=35 // pred_check_branch
        %325 = sbr.rel (%p323) target = $region40
      $region39: #{dit_predictor_forward.20} parent=35 // pred_region
        %vm326 = vcmask 7168
        %327 = vst.msk [vmem:[#allocation2] sm:$0xff] %vm326, -inf
        %328 = vst.msk [vmem:[#allocation2 + $0x8] sm:$0xff] %vm326, -inf
        %329 = vst.msk [vmem:[#allocation3] sm:$0xff] %vm326, 0.0
        %330 = vst.msk [vmem:[#allocation3 + $0x8] sm:$0xff] %vm326, 0.0
        %vm331 = vcmask 130048
        %332 = vst.msk [vmem:[#allocation4] sm:$0xff] %vm331, 0.0
        %333 = vst.msk [vmem:[#allocation4 + $0x8] sm:$0xff] %vm331, 0.0
      $region40: #{dit_predictor_forward.20} parent=35 // pred_fallthru
        _
      %v334 = vld [vmem:[%s291] sm:$0xf]
      %v335 = vld [vmem:[%s291 + $0x4] sm:$0xf]
      %v336 = vld [vmem:[%s299] sm:$0xf]
      %v337 = vld [vmem:[%s299 + $0x4] sm:$0xf]
      %v338 = vld [vmem:[%s307] sm:$0xf]
      %v339 = vld [vmem:[%s307 + $0x4] sm:$0xf]
      %vm340 = vcmask 130048
      %v342 = vsel %vm340, %v334, 0
      %v345 = vsel %vm340, %v336, 0
      %347 = vmatprep.subr.bf16.mxu0 0
      %348 = vmatpush1.bf16.xpose.msra.mxu0 %v345
      %349 = vmatprep.subr.bf16.mxu0 0
      %350 = vmatpush1.bf16.xpose.msra.mxu0 0
      %351 = vmatprep.subr.bf16.mxu0 0
      %352 = vmatpush1.bf16.xpose.msra.mxu0 0
      %353 = vmatprep.subr.bf16.mxu0 0
      %354 = vmatpush1.bf16.xpose.msra.mxu0 0
      %355 = vmatprep.subr.bf16.mxu0 0
      %356 = vmatpush1.bf16.xpose.msra.mxu0 0
      %357 = vmatprep.subr.bf16.mxu0 0
      %358 = vmatpush1.bf16.xpose.msra.mxu0 0
      %359 = vmatprep.subr.bf16.mxu0 0
      %360 = vmatpush1.bf16.xpose.msra.mxu0 0
      %361 = vmatprep.subr.bf16.mxu0 0
      %362 = vmatpush1.bf16.xpose.msra.mxu0 0
      %363 = vmatprep.subr.bf16.mxu0 0
      %364 = vmatpush1.bf16.xpose.msra.mxu0 0
      %365 = vmatprep.subr.bf16.mxu0 0
      %366 = vmatpush1.bf16.xpose.msra.mxu0 0
      %367 = vmatprep.subr.bf16.mxu0 0
      %368 = vmatpush1.bf16.xpose.msra.mxu0 0
      %369 = vmatprep.subr.bf16.mxu0 0
      %370 = vmatpush1.bf16.xpose.msra.mxu0 0
      %371 = vmatprep.subr.bf16.mxu0 0
      %372 = vmatpush1.bf16.xpose.msra.mxu0 0
      %373 = vmatprep.subr.bf16.mxu0 0
      %374 = vmatpush1.bf16.xpose.msra.mxu0 0
      %375 = vmatprep.subr.bf16.mxu0 0
      %376 = vmatpush1.bf16.xpose.msra.mxu0 0
      %377 = vmatprep.subr.bf16.mxu0 0
      %378 = vmatpush1.bf16.xpose.msra.mxu0 0
      %379 = vmatprep.mubr.bf16.mxu0 0
      %380 = vmatmul.mubr.bf16.gmra.mrb[0].mxu0 %v342
      %v381 = vpop.f32.mrb[0].mxu0
      %v382 = vadd.f32 0.0, %v381
      %v383 = vpop.f32.mrb[0].mxu0
      %v384 = vpop.f32.mrb[0].mxu0
      %v385 = vpop.f32.mrb[0].mxu0
      %386 = vdwg.mxu0
      %v388 = vsel %vm340, %v335, 0
      %v391 = vsel %vm340, %v337, 0
      %393 = vmatprep.subr.bf16.mxu0 0
      %394 = vmatpush1.bf16.xpose.msra.mxu0 %v391
      %395 = vmatprep.subr.bf16.mxu0 0
      %396 = vmatpush1.bf16.xpose.msra.mxu0 0
      %397 = vmatprep.subr.bf16.mxu0 0
      %398 = vmatpush1.bf16.xpose.msra.mxu0 0
      %399 = vmatprep.subr.bf16.mxu0 0
      %400 = vmatpush1.bf16.xpose.msra.mxu0 0
      %401 = vmatprep.subr.bf16.mxu0 0
      %402 = vmatpush1.bf16.xpose.msra.mxu0 0
      %403 = vmatprep.subr.bf16.mxu0 0
      %404 = vmatpush1.bf16.xpose.msra.mxu0 0
      %405 = vmatprep.subr.bf16.mxu0 0
      %406 = vmatpush1.bf16.xpose.msra.mxu0 0
      %407 = vmatprep.subr.bf16.mxu0 0
      %408 = vmatpush1.bf16.xpose.msra.mxu0 0
      %409 = vmatprep.subr.bf16.mxu0 0
      %410 = vmatpush1.bf16.xpose.msra.mxu0 0
      %411 = vmatprep.subr.bf16.mxu0 0
      %412 = vmatpush1.bf16.xpose.msra.mxu0 0
      %413 = vmatprep.subr.bf16.mxu0 0
      %414 = vmatpush1.bf16.xpose.msra.mxu0 0
      %415 = vmatprep.subr.bf16.mxu0 0
      %416 = vmatpush1.bf16.xpose.msra.mxu0 0
      %417 = vmatprep.subr.bf16.mxu0 0
      %418 = vmatpush1.bf16.xpose.msra.mxu0 0
      %419 = vmatprep.subr.bf16.mxu0 0
      %420 = vmatpush1.bf16.xpose.msra.mxu0 0
      %421 = vmatprep.subr.bf16.mxu0 0
      %422 = vmatpush1.bf16.xpose.msra.mxu0 0
      %423 = vmatprep.subr.bf16.mxu0 0
      %424 = vmatpush1.bf16.xpose.msra.mxu0 0
      %425 = vmatprep.mubr.bf16.mxu0 0
      %426 = vmatmul.mubr.bf16.gmra.mrb[0].mxu0 %v388
      %v427 = vpop.f32.mrb[0].mxu0
      %v428 = vadd.f32 0.0, %v427
      %v429 = vpop.f32.mrb[0].mxu0
      %v430 = vpop.f32.mrb[0].mxu0
      %v431 = vpop.f32.mrb[0].mxu0
      %432 = vdwg.mxu0
      %v433 = vld [vmem:[%s313] sm:$0x1]
      %vm434 = vcmp.gt.f32.partialorder %v433, 0.0
      %v435 = vsel %vm434, 1, 0
      %v436 = vlaneseq
      %v437 = vshrl.u32 %v436, 7
      %v438 = vsub.s32 0, %v437
      %v439 = vrot.slane %v435, %v438
      %vm440 = vcmp.eq.s32.totalorder %v439, 1
      %v441 = vsel %vm440, %v382, -1e+30
      %v442 = vsel %vm440, %v428, -1e+30
      %v443 = vld [vmem:[#allocation2] sm:$0xff]
      %v444 = vld [vmem:[#allocation2 + $0x8] sm:$0xff]
      %vm445 = vcmask 64512
      %v446 = vsel %vm445, %v441, -inf
      %447 = vmax.xlane.f32.xlu0 %v446
      %v448 = vpop.xlane.xlu0 %447
      %v449 = vsel %vm445, %v442, -inf
      %450 = vmax.xlane.f32.xlu0 %v449
      %v451 = vpop.xlane.xlu0 %450
      %v452 = vmax.f32 %v443, %v448
      %v453 = vmax.f32 %v444, %v451
      %v454 = vsub.f32 %v443, %v452
      %v455 = vsub.f32 %v444, %v453
      %v456 = vmul.f32 %v454, 1.442695
      %v457 = vpow.pop %v456
      %v458 = vmul.f32 %v455, 1.442695
      %v459 = vpow.pop %v458
      %461 = vset.pattern.permute.xlu0 0
      %462 = vperm.xlu0 %461, %v452
      %v463 = vpop.permute.xlu0 %462
      %466 = vset.pattern.permute.xlu0 0
      %467 = vperm.xlu0 %466, %v453
      %v468 = vpop.permute.xlu0 %467
      %v470 = vsub.f32 %v441, %v463
      %v471 = vsub.f32 %v442, %v468
      %v472 = vmul.f32 %v470, 1.442695
      %v473 = vpow.pop %v472
      %v474 = vmul.f32 %v471, 1.442695
      %v475 = vpow.pop %v474
      %v476 = vld [vmem:[#allocation3] sm:$0xff]
      %v477 = vld [vmem:[#allocation3 + $0x8] sm:$0xff]
      %v478 = vmul.f32 %v457, %v476
      %v479 = vmul.f32 %v459, %v477
      %v480 = vsel %vm445, %v473, 0.0
      %481 = vadd.xlane.f32.xlu0 %v480
      %v482 = vpop.xlane.xlu0 %481
      %v483 = vsel %vm445, %v475, 0.0
      %484 = vadd.xlane.f32.xlu0 %v483
      %v485 = vpop.xlane.xlu0 %484
      %v486 = vadd.f32 %v478, %v482
      %v487 = vadd.f32 %v479, %v485
      %vm488 = vcmask 7168
      %489 = vst.msk [vmem:[#allocation3] sm:$0xff] %vm488, %v486
      %490 = vst.msk [vmem:[#allocation3 + $0x8] sm:$0xff] %vm488, %v487
      %v491 = vld [vmem:[#allocation4] sm:$0xff]
      %v492 = vld [vmem:[#allocation4 + $0x8] sm:$0xff]
      %494 = vset.pattern.permute.xlu0 0
      %495 = vperm.xlu0 %494, %v457
      %v496 = vpop.permute.xlu0 %495
      %499 = vset.pattern.permute.xlu0 0
      %500 = vperm.xlu0 %499, %v459
      %v501 = vpop.permute.xlu0 %500
      %v503 = vmul.f32 %v496, %v491
      %v504 = vmul.f32 %v501, %v492
      %v505 = vpack.c.bf16 %v473, %v473
      %v506 = vpack.c.bf16 %v475, %v475
      %v508 = vsel %vm445, %v505, 0
      %vm510 = vcmask 1043456
      %v512 = vsel %vm510, %v338, 0
      %514 = vmatprep.subr.bf16.mxu0 0
      %515 = vmatpush1.bf16.msra.mxu0 %v512
      %516 = vmatprep.subr.bf16.mxu0 0
      %517 = vmatpush1.bf16.msra.mxu0 0
      %518 = vmatprep.subr.bf16.mxu0 0
      %519 = vmatpush1.bf16.msra.mxu0 0
      %520 = vmatprep.subr.bf16.mxu0 0
      %521 = vmatpush1.bf16.msra.mxu0 0
      %522 = vmatprep.subr.bf16.mxu0 0
      %523 = vmatpush1.bf16.msra.mxu0 0
      %524 = vmatprep.subr.bf16.mxu0 0
      %525 = vmatpush1.bf16.msra.mxu0 0
      %526 = vmatprep.subr.bf16.mxu0 0
      %527 = vmatpush1.bf16.msra.mxu0 0
      %528 = vmatprep.subr.bf16.mxu0 0
      %529 = vmatpush1.bf16.msra.mxu0 0
      %530 = vmatprep.subr.bf16.mxu0 0
      %531 = vmatpush1.bf16.msra.mxu0 0
      %532 = vmatprep.subr.bf16.mxu0 0
      %533 = vmatpush1.bf16.msra.mxu0 0
      %534 = vmatprep.subr.bf16.mxu0 0
      %535 = vmatpush1.bf16.msra.mxu0 0
      %536 = vmatprep.subr.bf16.mxu0 0
      %537 = vmatpush1.bf16.msra.mxu0 0
      %538 = vmatprep.subr.bf16.mxu0 0
      %539 = vmatpush1.bf16.msra.mxu0 0
      %540 = vmatprep.subr.bf16.mxu0 0
      %541 = vmatpush1.bf16.msra.mxu0 0
      %542 = vmatprep.subr.bf16.mxu0 0
      %543 = vmatpush1.bf16.msra.mxu0 0
      %544 = vmatprep.subr.bf16.mxu0 0
      %545 = vmatpush1.bf16.msra.mxu0 0
      %546 = vmatprep.mubr.bf16.mxu0 0
      %547 = vmatmul.mubr.bf16.gmra.mrb[0].mxu0 %v508
      %v548 = vpop.f32.mrb[0].mxu0
      %v549 = vadd.f32 0.0, %v548
      %v550 = vpop.f32.mrb[0].mxu0
      %v551 = vpop.f32.mrb[0].mxu0
      %v552 = vpop.f32.mrb[0].mxu0
      %553 = vdwg.mxu0
      %v555 = vsel %vm445, %v506, 0
      %v558 = vsel %vm510, %v339, 0
      %560 = vmatprep.subr.bf16.mxu0 0
      %561 = vmatpush1.bf16.msra.mxu0 %v558
      %562 = vmatprep.subr.bf16.mxu0 0
      %563 = vmatpush1.bf16.msra.mxu0 0
      %564 = vmatprep.subr.bf16.mxu0 0
      %565 = vmatpush1.bf16.msra.mxu0 0
      %566 = vmatprep.subr.bf16.mxu0 0
      %567 = vmatpush1.bf16.msra.mxu0 0
      %568 = vmatprep.subr.bf16.mxu0 0
      %569 = vmatpush1.bf16.msra.mxu0 0
      %570 = vmatprep.subr.bf16.mxu0 0
      %571 = vmatpush1.bf16.msra.mxu0 0
      %572 = vmatprep.subr.bf16.mxu0 0
      %573 = vmatpush1.bf16.msra.mxu0 0
      %574 = vmatprep.subr.bf16.mxu0 0
      %575 = vmatpush1.bf16.msra.mxu0 0
      %576 = vmatprep.subr.bf16.mxu0 0
      %577 = vmatpush1.bf16.msra.mxu0 0
      %578 = vmatprep.subr.bf16.mxu0 0
      %579 = vmatpush1.bf16.msra.mxu0 0
      %580 = vmatprep.subr.bf16.mxu0 0
      %581 = vmatpush1.bf16.msra.mxu0 0
      %582 = vmatprep.subr.bf16.mxu0 0
      %583 = vmatpush1.bf16.msra.mxu0 0
      %584 = vmatprep.subr.bf16.mxu0 0
      %585 = vmatpush1.bf16.msra.mxu0 0
      %586 = vmatprep.subr.bf16.mxu0 0
      %587 = vmatpush1.bf16.msra.mxu0 0
      %588 = vmatprep.subr.bf16.mxu0 0
      %589 = vmatpush1.bf16.msra.mxu0 0
      %590 = vmatprep.subr.bf16.mxu0 0
      %591 = vmatpush1.bf16.msra.mxu0 0
      %592 = vmatprep.mubr.bf16.mxu0 0
      %593 = vmatmul.mubr.bf16.gmra.mrb[0].mxu0 %v555
      %v594 = vpop.f32.mrb[0].mxu0
      %v595 = vadd.f32 0.0, %v594
      %v596 = vpop.f32.mrb[0].mxu0
      %v597 = vpop.f32.mrb[0].mxu0
      %v598 = vpop.f32.mrb[0].mxu0
      %599 = vdwg.mxu0
      %v600 = vadd.f32 %v503, %v549
      %v601 = vadd.f32 %v504, %v595
      %602 = vst.msk [vmem:[#allocation4] sm:$0xff] %vm340, %v600
      %603 = vst.msk [vmem:[#allocation4 + $0x8] sm:$0xff] %vm340, %v601
      %604 = vst.msk [vmem:[#allocation2] sm:$0xff] %vm488, %v452
      %605 = vst.msk [vmem:[#allocation2 + $0x8] sm:$0xff] %vm488, %v453
      // Predicated region
      $region41: #{dit_predictor_forward.20} parent=35 // pred_check
        %p606 = pneg %p322
      $region42: #{dit_predictor_forward.20} parent=35 // pred_check_branch
        %608 = sbr.rel (%p606) target = $region44
      $region43: #{dit_predictor_forward.20} parent=35 // pred_region
        %v609 = vld [vmem:[#allocation4] sm:$0xff]
        %v610 = vld [vmem:[#allocation3] sm:$0xff]
        %612 = vset.pattern.permute.xlu0 0
        %613 = vperm.xlu0 %612, %v610
        %v614 = vpop.permute.xlu0 %613
        %v616 = vrcp.pop %v614
        %v617 = vmul.f32 %v609, %v616
        %v618 = vpack.c.bf16 %v617, %v617
        %vm619 = vcmask 125952
        %620 = vst.msk [vmem:[%s320] sm:$0xf] %vm619, %v618
        %s621 = scalar_lea.vmem [#allocation4], 8
        %v622 = vld [vmem:[%s621] sm:$0xff]
        %s623 = scalar_lea.vmem [#allocation3], 8
        %v624 = vld [vmem:[%s623] sm:$0xff]
        %626 = vset.pattern.permute.xlu0 0
        %627 = vperm.xlu0 %626, %v624
        %v628 = vpop.permute.xlu0 %627
        %v630 = vrcp.pop %v628
        %v631 = vmul.f32 %v622, %v630
        %v632 = vpack.c.bf16 %v631, %v631
        %v634 = vunpack.c.l.b16 %v632
        %v635 = vpack.c.b16 %v634, %v634
        %636 = vrot.lane.b32.xlu0 %v635, 16
        %v637 = vpop.permute.xlu0 %636
        %vm639 = vcmask 257152
        %640 = vst.msk [vmem:[%s320] sm:$0xf] %vm639, %v637
      $region44: #{dit_predictor_forward.20} parent=35 // pred_fallthru
        _
      %p641 = scmp.lt.s32.totalorder %s20, 1
      %s642 = scalar_select %p641, %s20, 1
      %p643 = scmp.lt.s32.totalorder %s21, 0
      %s644 = scalar_select %p643, %s21, 0
      %s645 = sadd.s32 %s644, %s642
      %s646 = smul.addr %s645, 4
      %s647 = scalar_lea.vmem %s4, %s646
      // Predicated region
      $region45: #{dit_predictor_forward.20} parent=35 // pred_check
        %p648 = pneg %p166
      $region46: #{dit_predictor_forward.20} parent=35 // pred_check_branch
        %650 = sbr.rel (%p648) target = $region48
      $region47: #{dit_predictor_forward.20} parent=35 // pred_region
        _
      $region48: #{dit_predictor_forward.20} parent=35 // pred_fallthru
        _
    $region36: #{dit_predictor_forward.20} parent=5 // pred_fallthru
      _
    %p651 = scmp.le.s32.totalorder 2, %s10
    // Predicated region
    $region49: #{dit_predictor_forward.20} parent=5 // pred_check
      %p652 = pneg %p651
    $region50: #{dit_predictor_forward.20} parent=5 // pred_check_branch
      %654 = sbr.rel (%p652) target = $region52
    $region51: #{dit_predictor_forward.20} parent=5 // pred_region
      %s655 = ssub.s32 %s10, 2
      // Predicated region
      $region53: #{dit_predictor_forward.20} parent=51 // pred_check
        %p656 = pneg %p172
      $region54: #{dit_predictor_forward.20} parent=51 // pred_check_branch
        %658 = sbr.rel (%p656) target = $region56
      $region55: #{dit_predictor_forward.20} parent=51 // pred_region
        %p659 = scmp.lt.s32.totalorder %s23, 1
        %s660 = scalar_select %p659, %s23, 1
        %p661 = scmp.lt.s32.totalorder %s24, 0
        %s662 = scalar_select %p661, %s24, 0
        %s663 = sadd.s32 %s662, %s660
        %s664 = smul.addr %s663, 4
        %s665 = scalar_lea.vmem %s4, %s664
      $region56: #{dit_predictor_forward.20} parent=51 // pred_fallthru
        _
    $region52: #{dit_predictor_forward.20} parent=5 // pred_fallthru
      _
  $region6: #{dit_predictor_forward.20} parent=0 // loop_footer
    %s14 = sadd.s32 1, %s10
  $region7: #{dit_predictor_forward.20} parent=0 // loop_footer_branch
    %9 = sbr.rel target = $region3
  $region8: #{dit_predictor_forward.20} parent=0 // loop_exit
    _

// kernel: dit_predictor_forward.23
$region0: #{dit_predictor_forward.23}
  #allocation0 [shape = 'u32[]', space=smem, size = 0x4, offset = 0x4, fixed_abs, tag = 'smem constant byte address 0x4 - core index']
  #allocation1 [shape = 'u32[144,128]{1,0:T(1,128)}', space=vmem, size = 0x12000, scoped, tag = 'internal scratch']
  %s0 = inlined_call_operand.vmem [shape: bf16[2,8,128], index: 0, kind: input, shape index: {}]
  %s1 = inlined_call_operand.vmem [shape: bf16[128,32], index: 1, kind: input, shape index: {}]
  %s2 = inlined_call_operand.vmem [shape: f32[1,32], index: 2, kind: input, shape index: {}]
  %s3 = inlined_call_operand.vmem [shape: bf16[2,1,32], index: 3, kind: input, shape index: {}]
  %s4 = inlined_call_operand.vmem [shape: bf16[2,8,32], index: 4, kind: input, shape index: {}]
  %s5 = inlined_call_operand.vmem [shape: bf16[2,8,32], index: 5, kind: output, shape index: {}]
  %s6 = sld [smem:[#allocation0]]
  $region53: #{dit_predictor_forward.23} parent=0
    _
  %s8 = ssub.s32 1, %s6
  %s9 = scalar_select 0, %s8, %s6
  loop: start=0, step=1, limit=4
  $region2: #{dit_predictor_forward.23} parent=0 // loop_pre_header
    _
  $region3: #{dit_predictor_forward.23} parent=0 // loop_header
    %s11 = sphi 0, %s15
    %p12 = scmp.ge.s32.totalorder %s11, 4
    %s18 = sphi 0, %s44
    %s19 = sphi 0, %s40
    %s20 = sphi 0, %s36
    %s21 = sphi 0, %s32
    %s22 = sphi 0, %s18
    %s23 = sphi 0, %s19
    %s24 = sphi 0, %s20
    %s25 = sphi 0, %s21
    %s26 = sphi 0, %s22
    %s27 = sphi 0, %s23
    %s28 = sphi 0, %s24
    %s29 = sphi 0, %s25
    %s51 = sphi 0, %s53
    %s54 = sphi 0, %s51
    %s55 = sphi 0, %s54
    %s71 = sphi 0, %s55
    %s79 = sphi 0, %s81
    %s82 = sphi 0, %s79
    %s83 = sphi 0, %s82
    %s99 = sphi 0, %s83
    %s105 = sphi 0, %s107
    %s108 = sphi 0, %s105
    %s109 = sphi 0, %s108
    %s125 = sphi 0, %s109
    %s133 = sphi 0, %s135
    %s136 = sphi 0, %s133
    %s137 = sphi 0, %s136
    %s153 = sphi 0, %s137
    %s163 = sphi 0, %s165
    %s166 = sphi 0, %s163
    %s167 = sphi 0, %s166
    %s183 = sphi 0, %s167
    %s193 = sphi 0, %s195
    %s196 = sphi 0, %s193
    %s197 = sphi 0, %s196
    %s213 = sphi 0, %s197
  $region4: #{dit_predictor_forward.23} parent=0 // loop_header_branch
    %14 = sbr.rel (%p12) target = $region8
  $region5: #{dit_predictor_forward.23} parent=0 // loop_body
    %s16 = ssub.s32 %s11, 1
    %s17 = ssub.s32 %s11, 2
    %s30 = sadd.s32 1, %s21
    %p31 = scmp.ge.s32.totalorder %s30, 1
    %s32 = scalar_select %p31, 0, %s30
    %s33 = sadd.s32 1, %s20
    %s34 = scalar_select %p31, %s33, %s20
    %p35 = scmp.ge.s32.totalorder %s34, 1
    %s36 = scalar_select %p35, 0, %s34
    %s37 = sadd.s32 1, %s19
    %s38 = scalar_select %p35, %s37, %s19
    %p39 = scmp.ge.s32.totalorder %s38, 1
    %s40 = scalar_select %p39, 0, %s38
    %s41 = sadd.s32 1, %s18
    %s42 = scalar_select %p39, %s41, %s18
    %p43 = scmp.ge.s32.totalorder %s42, 2
    %s44 = scalar_select %p43, 0, %s42
    %s45 = ssub.s32 %s18, %s44
    %s46 = ssub.s32 %s19, %s40
    %s47 = sor.u32 %s45, %s46
    %s48 = ssub.s32 %s21, %s32
    %s49 = sor.u32 %s47, %s48
    %p50 = scmp.eq.s32.totalorder %s49, 0
    %s52 = sadd.s32 %s51, 1
    %s53 = scalar_select %p50, %s51, %s52
    %p56 = pneg %p50
    %p57 = scmp.eq.s32.totalorder %s11, 1
    %p58 = por %p56, %p57
    %p59 = scmp.ne.s32.totalorder %s51, %s54
    %p60 = scmp.eq.s32.totalorder %s11, 0
    %p61 = por %p59, %p60
    %p62 = scmp.ne.s32.totalorder %s51, %s54
    %p63 = scmp.eq.s32.totalorder %s16, 1
    %p64 = por %p62, %p63
    %p65 = scmp.ne.s32.totalorder %s54, %s55
    %p66 = scmp.eq.s32.totalorder %s16, 0
    %p67 = por %p65, %p66
    %p68 = scmp.ne.s32.totalorder %s54, %s55
    %p69 = scmp.eq.s32.totalorder %s17, 1
    %p70 = por %p68, %p69
    %p72 = scmp.ne.s32.totalorder %s55, %s71
    %p73 = scmp.eq.s32.totalorder %s17, 0
    %p74 = por %p72, %p73
    %s75 = ssub.s32 %s21, %s32
    %s76 = ssub.s32 %s20, %s36
    %s77 = sor.u32 %s75, %s76
    %p78 = scmp.eq.s32.totalorder %s77, 0
    %s80 = sadd.s32 %s79, 1
    %s81 = scalar_select %p78, %s79, %s80
    %p84 = pneg %p78
    %p85 = scmp.eq.s32.totalorder %s11, 1
    %p86 = por %p84, %p85
    %p87 = scmp.ne.s32.totalorder %s79, %s82
    %p88 = scmp.eq.s32.totalorder %s11, 0
    %p89 = por %p87, %p88
    %p90 = scmp.ne.s32.totalorder %s79, %s82
    %p91 = scmp.eq.s32.totalorder %s16, 1
    %p92 = por %p90, %p91
    %p93 = scmp.ne.s32.totalorder %s82, %s83
    %p94 = scmp.eq.s32.totalorder %s16, 0
    %p95 = por %p93, %p94
    %p96 = scmp.ne.s32.totalorder %s82, %s83
    %p97 = scmp.eq.s32.totalorder %s17, 1
    %p98 = por %p96, %p97
    %p100 = scmp.ne.s32.totalorder %s83, %s99
    %p101 = scmp.eq.s32.totalorder %s17, 0
    %p102 = por %p100, %p101
    %s103 = ssub.s32 %s20, %s36
    %p104 = scmp.eq.s32.totalorder %s103, 0
    %s106 = sadd.s32 %s105, 1
    %s107 = scalar_select %p104, %s105, %s106
    %p110 = pneg %p104
    %p111 = scmp.eq.s32.totalorder %s11, 1
    %p112 = por %p110, %p111
    %p113 = scmp.ne.s32.totalorder %s105, %s108
    %p114 = scmp.eq.s32.totalorder %s11, 0
    %p115 = por %p113, %p114
    %p116 = scmp.ne.s32.totalorder %s105, %s108
    %p117 = scmp.eq.s32.totalorder %s16, 1
    %p118 = por %p116, %p117
    %p119 = scmp.ne.s32.totalorder %s108, %s109
    %p120 = scmp.eq.s32.totalorder %s16, 0
    %p121 = por %p119, %p120
    %p122 = scmp.ne.s32.totalorder %s108, %s109
    %p123 = scmp.eq.s32.totalorder %s17, 1
    %p124 = por %p122, %p123
    %p126 = scmp.ne.s32.totalorder %s109, %s125
    %p127 = scmp.eq.s32.totalorder %s17, 0
    %p128 = por %p126, %p127
    %s129 = ssub.s32 %s18, %s44
    %s130 = ssub.s32 %s20, %s36
    %s131 = sor.u32 %s129, %s130
    %p132 = scmp.eq.s32.totalorder %s131, 0
    %s134 = sadd.s32 %s133, 1
    %s135 = scalar_select %p132, %s133, %s134
    %p138 = pneg %p132
    %p139 = scmp.eq.s32.totalorder %s11, 1
    %p140 = por %p138, %p139
    %p141 = scmp.ne.s32.totalorder %s133, %s136
    %p142 = scmp.eq.s32.totalorder %s11, 0
    %p143 = por %p141, %p142
    %p144 = scmp.ne.s32.totalorder %s133, %s136
    %p145 = scmp.eq.s32.totalorder %s16, 1
    %p146 = por %p144, %p145
    %p147 = scmp.ne.s32.totalorder %s136, %s137
    %p148 = scmp.eq.s32.totalorder %s16, 0
    %p149 = por %p147, %p148
    %p150 = scmp.ne.s32.totalorder %s136, %s137
    %p151 = scmp.eq.s32.totalorder %s17, 1
    %p152 = por %p150, %p151
    %p154 = scmp.ne.s32.totalorder %s137, %s153
    %p155 = scmp.eq.s32.totalorder %s17, 0
    %p156 = por %p154, %p155
    %s157 = ssub.s32 %s18, %s44
    %s158 = ssub.s32 %s19, %s40
    %s159 = sor.u32 %s157, %s158
    %s160 = ssub.s32 %s20, %s36
    %s161 = sor.u32 %s159, %s160
    %p162 = scmp.eq.s32.totalorder %s161, 0
    %s164 = sadd.s32 %s163, 1
    %s165 = scalar_select %p162, %s163, %s164
    %p168 = pneg %p162
    %p169 = scmp.eq.s32.totalorder %s11, 1
    %p170 = por %p168, %p169
    %p171 = scmp.ne.s32.totalorder %s163, %s166
    %p172 = scmp.eq.s32.totalorder %s11, 0
    %p173 = por %p171, %p172
    %p174 = scmp.ne.s32.totalorder %s163, %s166
    %p175 = scmp.eq.s32.totalorder %s16, 1
    %p176 = por %p174, %p175
    %p177 = scmp.ne.s32.totalorder %s166, %s167
    %p178 = scmp.eq.s32.totalorder %s16, 0
    %p179 = por %p177, %p178
    %p180 = scmp.ne.s32.totalorder %s166, %s167
    %p181 = scmp.eq.s32.totalorder %s17, 1
    %p182 = por %p180, %p181
    %p184 = scmp.ne.s32.totalorder %s167, %s183
    %p185 = scmp.eq.s32.totalorder %s17, 0
    %p186 = por %p184, %p185
    %s187 = ssub.s32 %s18, %s44
    %s188 = ssub.s32 %s19, %s40
    %s189 = sor.u32 %s187, %s188
    %s190 = ssub.s32 %s20, %s36
    %s191 = sor.u32 %s189, %s190
    %p192 = scmp.eq.s32.totalorder %s191, 0
    %s194 = sadd.s32 %s193, 1
    %s195 = scalar_select %p192, %s193, %s194
    %p198 = pneg %p192
    %p199 = scmp.eq.s32.totalorder %s11, 1
    %p200 = por %p198, %p199
    %p201 = scmp.ne.s32.totalorder %s193, %s196
    %p202 = scmp.eq.s32.totalorder %s11, 0
    %p203 = por %p201, %p202
    %p204 = scmp.ne.s32.totalorder %s193, %s196
    %p205 = scmp.eq.s32.totalorder %s16, 1
    %p206 = por %p204, %p205
    %p207 = scmp.ne.s32.totalorder %s196, %s197
    %p208 = scmp.eq.s32.totalorder %s16, 0
    %p209 = por %p207, %p208
    %p210 = scmp.ne.s32.totalorder %s196, %s197
    %p211 = scmp.eq.s32.totalorder %s17, 1
    %p212 = por %p210, %p211
    %p214 = scmp.ne.s32.totalorder %s197, %s213
    %p215 = scmp.eq.s32.totalorder %s17, 0
    %p216 = por %p214, %p215
    %p217 = scmp.le.s32.totalorder 1, %s11
    %p218 = scmp.lt.s32.totalorder %s11, 3
    %p219 = pnand %p217, %p218
    %p220 = pneg %p219
    // Predicated region
    $region9: #{dit_predictor_forward.23} parent=5 // pred_check
      _
    $region10: #{dit_predictor_forward.23} parent=5 // pred_check_branch
      %222 = sbr.rel (%p219) target = $region12
    $region11: #{dit_predictor_forward.23} parent=5 // pred_region
      %s223 = ssub.s32 %s11, 1
      // Predicated region
      $region13: #{dit_predictor_forward.23} parent=11 // pred_check
        %p224 = pneg %p95
      $region14: #{dit_predictor_forward.23} parent=11 // pred_check_branch
        %226 = sbr.rel (%p224) target = $region16
      $region15: #{dit_predictor_forward.23} parent=11 // pred_region
        %s227 = smul.u32 16, %s25
        %p228 = scmp.lt.s32.totalorder %s227, 15
        %s229 = scalar_select %p228, %s227, 15
        %p230 = scmp.lt.s32.totalorder %s24, 0
        %s231 = scalar_select %p230, %s24, 0
        %s232 = sadd.s32 %s231, %s229
        %s233 = smul.addr %s232, 4
        %s234 = scalar_lea.vmem %s1, %s233
        %s235 = smul.u32 16, %s25
      $region16: #{dit_predictor_forward.23} parent=11 // pred_fallthru
        _
      // Predicated region
      $region17: #{dit_predictor_forward.23} parent=11 // pred_check
        %p236 = pneg %p121
      $region18: #{dit_predictor_forward.23} parent=11 // pred_check_branch
        %238 = sbr.rel (%p236) target = $region20
      $region19: #{dit_predictor_forward.23} parent=11 // pred_region
        %p239 = scmp.lt.s32.totalorder %s24, 0
        %s240 = scalar_select %p239, %s24, 0
        %s241 = scalar_lea.vmem %s2, %s240
      $region20: #{dit_predictor_forward.23} parent=11 // pred_fallthru
        _
    $region12: #{dit_predictor_forward.23} parent=5 // pred_fallthru
      _
    %p242 = scmp.lt.s32.totalorder %s11, 2
    // Predicated region
    $region21: #{dit_predictor_forward.23} parent=5 // pred_check
      %p243 = pneg %p242
    $region22: #{dit_predictor_forward.23} parent=5 // pred_check_branch
      %245 = sbr.rel (%p243) target = $region24
    $region23: #{dit_predictor_forward.23} parent=5 // pred_region
      // Predicated region
      $region25: #{dit_predictor_forward.23} parent=23 // pred_check
        %p246 = pneg %p61
      $region26: #{dit_predictor_forward.23} parent=23 // pred_check_branch
        %248 = sbr.rel (%p246) target = $region28
      $region27: #{dit_predictor_forward.23} parent=23 // pred_region
        %p249 = scmp.lt.s32.totalorder %s18, 1
        %s250 = scalar_select %p249, %s18, 1
        %p251 = scmp.lt.s32.totalorder %s19, 0
        %s252 = scalar_select %p251, %s19, 0
        %p253 = scmp.lt.s32.totalorder %s21, 0
        %s254 = scalar_select %p253, %s21, 0
        %s255 = sadd.s32 %s254, %s252
        %s256 = sadd.s32 %s255, %s250
        %s257 = smul.addr %s256, 4
        %s258 = scalar_lea.vmem %s0, %s257
      $region28: #{dit_predictor_forward.23} parent=23 // pred_fallthru
        _
      // Predicated region
      $region29: #{dit_predictor_forward.23} parent=23 // pred_check
        %p259 = pneg %p143
      $region30: #{dit_predictor_forward.23} parent=23 // pred_check_branch
        %261 = sbr.rel (%p259) target = $region32
      $region31: #{dit_predictor_forward.23} parent=23 // pred_region
        %p262 = scmp.lt.s32.totalorder %s18, 1
        %s263 = scalar_select %p262, %s18, 1
        %p264 = scmp.lt.s32.totalorder %s20, 0
        %s265 = scalar_select %p264, %s20, 0
        %s266 = sadd.s32 %s265, %s263
        %s267 = scalar_lea.vmem %s3, %s266
      $region32: #{dit_predictor_forward.23} parent=23 // pred_fallthru
        _
      // Predicated region
      $region33: #{dit_predictor_forward.23} parent=23 // pred_check
        %p268 = pneg %p173
      $region34: #{dit_predictor_forward.23} parent=23 // pred_check_branch
        %270 = sbr.rel (%p268) target = $region36
      $region35: #{dit_predictor_forward.23} parent=23 // pred_region
        %p271 = scmp.lt.s32.totalorder %s18, 1
        %s272 = scalar_select %p271, %s18, 1
        %p273 = scmp.lt.s32.totalorder %s19, 0
        %s274 = scalar_select %p273, %s19, 0
        %p275 = scmp.lt.s32.totalorder %s20, 0
        %s276 = scalar_select %p275, %s20, 0
        %s277 = sadd.s32 %s276, %s274
        %s278 = sadd.s32 %s277, %s272
        %s279 = smul.addr %s278, 4
        %s280 = scalar_lea.vmem %s4, %s279
      $region36: #{dit_predictor_forward.23} parent=23 // pred_fallthru
        _
    $region24: #{dit_predictor_forward.23} parent=5 // pred_fallthru
      _
    %p281 = scmp.le.s32.totalorder 1, %s11
    %p282 = scmp.lt.s32.totalorder %s11, 3
    %p283 = pnand %p281, %p282
    %p284 = pneg %p283
    // Predicated region
    $region37: #{dit_predictor_forward.23} parent=5 // pred_check
      _
    $region38: #{dit_predictor_forward.23} parent=5 // pred_check_branch
      %286 = sbr.rel (%p283) target = $region40
    $region39: #{dit_predictor_forward.23} parent=5 // pred_region
      %s287 = ssub.s32 %s11, 1
      %p288 = scmp.lt.s32.totalorder %s22, 1
      %s289 = scalar_select %p288, %s22, 1
      %p290 = scmp.lt.s32.totalorder %s23, 0
      %s291 = scalar_select %p290, %s23, 0
      %p292 = scmp.lt.s32.totalorder %s25, 0
      %s293 = scalar_select %p292, %s25, 0
      %s294 = sadd.s32 %s293, %s291
      %s295 = sadd.s32 %s294, %s289
      %s296 = smul.addr %s295, 4
      %s297 = scalar_lea.vmem %s0, %s296
      %p298 = pneg %p67
      %p299 = pneg %p64
      %s300 = smul.u32 16, %s25
      %p301 = scmp.lt.s32.totalorder %s300, 15
      %s302 = scalar_select %p301, %s300, 15
      %p303 = scmp.lt.s32.totalorder %s24, 0
      %s304 = scalar_select %p303, %s24, 0
      %s305 = sadd.s32 %s304, %s302
      %s306 = smul.addr %s305, 4
      %s307 = scalar_lea.vmem %s1, %s306
      %p308 = pneg %p95
      %p309 = pneg %p92
      %p310 = scmp.lt.s32.totalorder %s24, 0
      %s311 = scalar_select %p310, %s24, 0
      %s312 = scalar_lea.vmem %s2, %s311
      %p313 = pneg %p121
      %p314 = pneg %p118
      %p315 = scmp.lt.s32.totalorder %s22, 1
      %s316 = scalar_select %p315, %s22, 1
      %p317 = scmp.lt.s32.totalorder %s24, 0
      %s318 = scalar_select %p317, %s24, 0
      %s319 = sadd.s32 %s318, %s316
      %s320 = scalar_lea.vmem %s3, %s319
      %p321 = pneg %p149
      %p322 = pneg %p146
      %p323 = scmp.lt.s32.totalorder %s22, 1
      %s324 = scalar_select %p323, %s22, 1
      %p325 = scmp.lt.s32.totalorder %s23, 0
      %s326 = scalar_select %p325, %s23, 0
      %p327 = scmp.lt.s32.totalorder %s24, 0
      %s328 = scalar_select %p327, %s24, 0
      %s329 = sadd.s32 %s328, %s326
      %s330 = sadd.s32 %s329, %s324
      %s331 = smul.addr %s330, 4
      %s332 = scalar_lea.vmem %s4, %s331
      %p333 = pneg %p179
      %p334 = pneg %p176
      %p335 = pneg %p209
      %p336 = pneg %p206
      %p337 = scmp.lt.s32.totalorder %s22, 1
      %s338 = scalar_select %p337, %s22, 1
      %p339 = scmp.lt.s32.totalorder %s23, 0
      %s340 = scalar_select %p339, %s23, 0
      %p341 = scmp.lt.s32.totalorder %s24, 0
      %s342 = scalar_select %p341, %s24, 0
      %s343 = sadd.s32 %s342, %s340
      %s344 = sadd.s32 %s343, %s338
      %s345 = smul.addr %s344, 4
      %s346 = scalar_lea.vmem %s5, %s345
      %p347 = scmp.lt.s32.totalorder %s22, 1
      %s348 = scalar_select %p347, %s22, 1
      %p349 = scmp.lt.s32.totalorder %s23, 0
      %s350 = scalar_select %p349, %s23, 0
      %p351 = scmp.lt.s32.totalorder %s25, 0
      %s352 = scalar_select %p351, %s25, 0
      %s353 = sadd.s32 %s352, %s350
      %s354 = sadd.s32 %s353, %s348
      %s355 = smul.addr %s354, 4
      %s356 = scalar_lea.vmem %s0, %s355
      %s357 = smul.u32 16, %s25
      %p358 = scmp.lt.s32.totalorder %s357, 15
      %s359 = scalar_select %p358, %s357, 15
      %p360 = scmp.lt.s32.totalorder %s24, 0
      %s361 = scalar_select %p360, %s24, 0
      %s362 = sadd.s32 %s361, %s359
      %s363 = smul.addr %s362, 4
      %s364 = scalar_lea.vmem %s1, %s363
      %s365 = smul.u32 16, %s25
      %p366 = scmp.lt.s32.totalorder %s24, 0
      %s367 = scalar_select %p366, %s24, 0
      %s368 = scalar_lea.vmem %s2, %s367
      %p369 = scmp.lt.s32.totalorder %s22, 1
      %s370 = scalar_select %p369, %s22, 1
      %p371 = scmp.lt.s32.totalorder %s24, 0
      %s372 = scalar_select %p371, %s24, 0
      %s373 = sadd.s32 %s372, %s370
      %s374 = scalar_lea.vmem %s3, %s373
      %p375 = scmp.lt.s32.totalorder %s22, 1
      %s376 = scalar_select %p375, %s22, 1
      %p377 = scmp.lt.s32.totalorder %s23, 0
      %s378 = scalar_select %p377, %s23, 0
      %p379 = scmp.lt.s32.totalorder %s24, 0
      %s380 = scalar_select %p379, %s24, 0
      %s381 = sadd.s32 %s380, %s378
      %s382 = sadd.s32 %s381, %s376
      %s383 = smul.addr %s382, 4
      %s384 = scalar_lea.vmem %s4, %s383
      %p385 = scmp.lt.s32.totalorder %s22, 1
      %s386 = scalar_select %p385, %s22, 1
      %p387 = scmp.lt.s32.totalorder %s23, 0
      %s388 = scalar_select %p387, %s23, 0
      %p389 = scmp.lt.s32.totalorder %s24, 0
      %s390 = scalar_select %p389, %s24, 0
      %s391 = sadd.s32 %s390, %s388
      %s392 = sadd.s32 %s391, %s386
      %s393 = smul.addr %s392, 4
      %s394 = scalar_lea.vmem %s5, %s393
      %v396 = vld [vmem:[%s356] sm:$0xf]
      %v397 = vld [vmem:[%s364] sm:$0xf]
      %v398 = vld [vmem:[%s364 + $0x4] sm:$0xf]
      %v399 = vld [vmem:[%s364 + $0x8] sm:$0xf]
      %v400 = vld [vmem:[%s364 + $0xc] sm:$0xf]
      %v401 = vld [vmem:[%s364 + $0x10] sm:$0xf]
      %v402 = vld [vmem:[%s364 + $0x14] sm:$0xf]
      %v403 = vld [vmem:[%s364 + $0x18] sm:$0xf]
      %v404 = vld [vmem:[%s364 + $0x1c] sm:$0xf]
      %v405 = vld [vmem:[%s364 + $0x20] sm:$0xf]
      %v406 = vld [vmem:[%s364 + $0x24] sm:$0xf]
      %v407 = vld [vmem:[%s364 + $0x28] sm:$0xf]
      %v408 = vld [vmem:[%s364 + $0x2c] sm:$0xf]
      %v409 = vld [vmem:[%s364 + $0x30] sm:$0xf]
      %v410 = vld [vmem:[%s364 + $0x34] sm:$0xf]
      %v411 = vld [vmem:[%s364 + $0x38] sm:$0xf]
      %v412 = vld [vmem:[%s364 + $0x3c] sm:$0xf]
      %v413 = vld [vmem:[%s368] sm:$0x1]
      %v415 = vlaneseq
      %v416 = vshrl.u32 %v415, 7
      %v417 = vsub.s32 0, %v416
      %v418 = vrot.slane %v413, %v417
      %v436 = vunpack.c.l.b16 %v397
      %v437 = vunpack.c.l.b16 %v398
      %v438 = vunpack.c.l.b16 %v399
      %v439 = vunpack.c.l.b16 %v400
      %v440 = vunpack.c.l.b16 %v401
      %v441 = vunpack.c.l.b16 %v402
      %v442 = vunpack.c.l.b16 %v403
      %v443 = vunpack.c.l.b16 %v404
      %v444 = vunpack.c.l.b16 %v405
      %v445 = vunpack.c.l.b16 %v406
      %v446 = vunpack.c.l.b16 %v407
      %v447 = vunpack.c.l.b16 %v408
      %v448 = vunpack.c.l.b16 %v409
      %v449 = vunpack.c.l.b16 %v410
      %v450 = vunpack.c.l.b16 %v411
      %v451 = vunpack.c.l.b16 %v412
      %v452 = vpack.c.b16 %v437, %v436
      %v453 = vpack.c.b16 %v439, %v438
      %v454 = vpack.c.b16 %v441, %v440
      %v455 = vpack.c.b16 %v443, %v442
      %v456 = vpack.c.b16 %v445, %v444
      %v457 = vpack.c.b16 %v447, %v446
      %v458 = vpack.c.b16 %v449, %v448
      %v459 = vpack.c.b16 %v451, %v450
      %468 = vmatprep.subr.bf16.mxu0 0
      %469 = vmatpush1.bf16.msra.mxu0 %v452
      %470 = vmatprep.subr.bf16.mxu0 0
      %471 = vmatpush1.bf16.msra.mxu0 %v453
      %472 = vmatprep.subr.bf16.mxu0 0
      %473 = vmatpush1.bf16.msra.mxu0 %v454
      %474 = vmatprep.subr.bf16.mxu0 0
      %475 = vmatpush1.bf16.msra.mxu0 %v455
      %476 = vmatprep.subr.bf16.mxu0 0
      %477 = vmatpush1.bf16.msra.mxu0 %v456
      %478 = vmatprep.subr.bf16.mxu0 0
      %479 = vmatpush1.bf16.msra.mxu0 %v457
      %480 = vmatprep.subr.bf16.mxu0 0
      %481 = vmatpush1.bf16.msra.mxu0 %v458
      %482 = vmatprep.subr.bf16.mxu0 0
      %483 = vmatpush1.bf16.msra.mxu0 %v459
      %484 = vmatprep.subr.bf16.mxu0 0
      %485 = vmatpush1.bf16.msra.mxu0 0
      %486 = vmatprep.subr.bf16.mxu0 0
      %487 = vmatpush1.bf16.msra.mxu0 0
      %488 = vmatprep.subr.bf16.mxu0 0
      %489 = vmatpush1.bf16.msra.mxu0 0
      %490 = vmatprep.subr.bf16.mxu0 0
      %491 = vmatpush1.bf16.msra.mxu0 0
      %492 = vmatprep.subr.bf16.mxu0 0
      %493 = vmatpush1.bf16.msra.mxu0 0
      %494 = vmatprep.subr.bf16.mxu0 0
      %495 = vmatpush1.bf16.msra.mxu0 0
      %496 = vmatprep.subr.bf16.mxu0 0
      %497 = vmatpush1.bf16.msra.mxu0 0
      %498 = vmatprep.subr.bf16.mxu0 0
      %499 = vmatpush1.bf16.msra.mxu0 0
      %500 = vmatprep.mubr.bf16.mxu0 0
      %501 = vmatmul.mubr.bf16.gmra.mrb[0].mxu0 %v396
      %v502 = vpop.f32.mrb[0].mxu0
      %v503 = vadd.f32 %v418, %v502
      %v504 = vpop.f32.mrb[0].mxu0
      %v505 = vpop.f32.mrb[0].mxu0
      %v506 = vpop.f32.mrb[0].mxu0
      %507 = vdwg.mxu0
      %v508 = vld [vmem:[%s374] sm:$0x1]
      %v509 = vunpack.c.l.bf16 %v508
      %v510 = vlaneseq
      %v511 = vshrl.u32 %v510, 7
      %v512 = vsub.s32 0, %v511
      %v513 = vrot.slane %v509, %v512
      %v514 = vmul.f32 %v503, %v513
      %v515 = vld [vmem:[%s384] sm:$0xf]
      %v516 = vunpack.c.l.bf16 %v515
      %v517 = vadd.f32 %v514, %v516
      %v518 = vpack.c.bf16 %v517, %v517
      %vm519 = vcmask 257024
      %520 = vst.msk [vmem:[%s394] sm:$0xf] %vm519, %v518
      %p521 = scmp.lt.s32.totalorder %s22, 1
      %s522 = scalar_select %p521, %s22, 1
      %p523 = scmp.lt.s32.totalorder %s23, 0
      %s524 = scalar_select %p523, %s23, 0
      %p525 = scmp.lt.s32.totalorder %s24, 0
      %s526 = scalar_select %p525, %s24, 0
      %s527 = sadd.s32 %s526, %s524
      %s528 = sadd.s32 %s527, %s522
      %s529 = smul.addr %s528, 4
      %s530 = scalar_lea.vmem %s5, %s529
      // Predicated region
      $region41: #{dit_predictor_forward.23} parent=39 // pred_check
        %p531 = pneg %p206
      $region42: #{dit_predictor_forward.23} parent=39 // pred_check_branch
        %533 = sbr.rel (%p531) target = $region44
      $region43: #{dit_predictor_forward.23} parent=39 // pred_region
        _
      $region44: #{dit_predictor_forward.23} parent=39 // pred_fallthru
        _
    $region40: #{dit_predictor_forward.23} parent=5 // pred_fallthru
      _
    %p534 = scmp.le.s32.totalorder 2, %s11
    // Predicated region
    $region45: #{dit_predictor_forward.23} parent=5 // pred_check
      %p535 = pneg %p534
    $region46: #{dit_predictor_forward.23} parent=5 // pred_check_branch
      %537 = sbr.rel (%p535) target = $region48
    $region47: #{dit_predictor_forward.23} parent=5 // pred_region
      %s538 = ssub.s32 %s11, 2
      // Predicated region
      $region49: #{dit_predictor_forward.23} parent=47 // pred_check
        %p539 = pneg %p212
      $region50: #{dit_predictor_forward.23} parent=47 // pred_check_branch
        %541 = sbr.rel (%p539) target = $region52
      $region51: #{dit_predictor_forward.23} parent=47 // pred_region
        %p542 = scmp.lt.s32.totalorder %s26, 1
        %s543 = scalar_select %p542, %s26, 1
        %p544 = scmp.lt.s32.totalorder %s27, 0
        %s545 = scalar_select %p544, %s27, 0
        %p546 = scmp.lt.s32.totalorder %s28, 0
        %s547 = scalar_select %p546, %s28, 0
        %s548 = sadd.s32 %s547, %s545
        %s549 = sadd.s32 %s548, %s543
        %s550 = smul.addr %s549, 4
        %s551 = scalar_lea.vmem %s5, %s550
      $region52: #{dit_predictor_forward.23} parent=47 // pred_fallthru
        _
    $region48: #{dit_predictor_forward.23} parent=5 // pred_fallthru
      _
  $region6: #{dit_predictor_forward.23} parent=0 // loop_footer
    %s15 = sadd.s32 1, %s11
  $region7: #{dit_predictor_forward.23} parent=0 // loop_footer_branch
    %10 = sbr.rel target = $region3
  $region8: #{dit_predictor_forward.23} parent=0 // loop_exit
    _

// kernel: dit_predictor_forward.29
$region0: #{dit_predictor_forward.29}
  #allocation0 [shape = 'u32[]', space=smem, size = 0x4, offset = 0x4, fixed_abs, tag = 'smem constant byte address 0x4 - core index']
  #allocation1 [shape = 'u32[144,128]{1,0:T(1,128)}', space=vmem, size = 0x12000, scoped, tag = 'internal scratch']
  #allocation2 [shape = 'f32[1,1]{1,0:T(1,128)S(1)}', space=vmem, size = 0x200, scoped, tag = 'scoped memory for dit_predictor_forward.29']
  %s0 = inlined_call_operand.vmem [shape: bf16[2,8,32], index: 0, kind: input, shape index: {}]
  %s1 = inlined_call_operand.vmem [shape: bf16[2,1,32], index: 1, kind: input, shape index: {}]
  %s2 = inlined_call_operand.vmem [shape: bf16[2,1,32], index: 2, kind: input, shape index: {}]
  %s3 = inlined_call_operand.vmem [shape: f32[1,32], index: 3, kind: input, shape index: {}]
  %s4 = inlined_call_operand.<no memory space> [shape: f32[1,1], index: 4, kind: input, shape index: {}]
  %s5 = inlined_call_operand.vmem [shape: f32[2,8,1], index: 5, kind: output, shape index: {}]
  %s6 = sld [smem:[#allocation0]]
  $region53: #{dit_predictor_forward.29} parent=0
    _
  %s8 = ssub.s32 1, %s6
  %s9 = scalar_select 0, %s8, %s6
  %v10 = vstv %s4
  %11 = vst [vmem:[#allocation2] sm:$0x1] %v10
  loop: start=0, step=1, limit=4
  $region2: #{dit_predictor_forward.29} parent=0 // loop_pre_header
    _
  $region3: #{dit_predictor_forward.29} parent=0 // loop_header
    %s13 = sphi 0, %s17
    %p14 = scmp.ge.s32.totalorder %s13, 4
    %s20 = sphi 0, %s32
    %s21 = sphi 0, %s28
    %s22 = sphi 0, %s20
    %s23 = sphi 0, %s21
    %s24 = sphi 0, %s22
    %s25 = sphi 0, %s23
    %s37 = sphi 0, %s39
    %s40 = sphi 0, %s37
    %s41 = sphi 0, %s40
    %s57 = sphi 0, %s41
    %s63 = sphi 0, %s65
    %s66 = sphi 0, %s63
    %s67 = sphi 0, %s66
    %s83 = sphi 0, %s67
    %s89 = sphi 0, %s91
    %s92 = sphi 0, %s89
    %s93 = sphi 0, %s92
    %s109 = sphi 0, %s93
    %s113 = sphi 0, %s113
    %s115 = sphi 0, %s113
    %s116 = sphi 0, %s115
    %s130 = sphi 0, %s116
    %s134 = sphi 0, %s134
    %s136 = sphi 0, %s134
    %s137 = sphi 0, %s136
    %s151 = sphi 0, %s137
    %s159 = sphi 0, %s161
    %s162 = sphi 0, %s159
    %s163 = sphi 0, %s162
    %s179 = sphi 0, %s163
  $region4: #{dit_predictor_forward.29} parent=0 // loop_header_branch
    %16 = sbr.rel (%p14) target = $region8
  $region5: #{dit_predictor_forward.29} parent=0 // loop_body
    %s18 = ssub.s32 %s13, 1
    %s19 = ssub.s32 %s13, 2
    %s26 = sadd.s32 1, %s21
    %p27 = scmp.ge.s32.totalorder %s26, 1
    %s28 = scalar_select %p27, 0, %s26
    %s29 = sadd.s32 1, %s20
    %s30 = scalar_select %p27, %s29, %s20
    %p31 = scmp.ge.s32.totalorder %s30, 2
    %s32 = scalar_select %p31, 0, %s30
    %s33 = ssub.s32 %s20, %s32
    %s34 = ssub.s32 %s21, %s28
    %s35 = sor.u32 %s33, %s34
    %p36 = scmp.eq.s32.totalorder %s35, 0
    %s38 = sadd.s32 %s37, 1
    %s39 = scalar_select %p36, %s37, %s38
    %p42 = pneg %p36
    %p43 = scmp.eq.s32.totalorder %s13, 1
    %p44 = por %p42, %p43
    %p45 = scmp.ne.s32.totalorder %s37, %s40
    %p46 = scmp.eq.s32.totalorder %s13, 0
    %p47 = por %p45, %p46
    %p48 = scmp.ne.s32.totalorder %s37, %s40
    %p49 = scmp.eq.s32.totalorder %s18, 1
    %p50 = por %p48, %p49
    %p51 = scmp.ne.s32.totalorder %s40, %s41
    %p52 = scmp.eq.s32.totalorder %s18, 0
    %p53 = por %p51, %p52
    %p54 = scmp.ne.s32.totalorder %s40, %s41
    %p55 = scmp.eq.s32.totalorder %s19, 1
    %p56 = por %p54, %p55
    %p58 = scmp.ne.s32.totalorder %s41, %s57
    %p59 = scmp.eq.s32.totalorder %s19, 0
    %p60 = por %p58, %p59
    %s61 = ssub.s32 %s20, %s32
    %p62 = scmp.eq.s32.totalorder %s61, 0
    %s64 = sadd.s32 %s63, 1
    %s65 = scalar_select %p62, %s63, %s64
    %p68 = pneg %p62
    %p69 = scmp.eq.s32.totalorder %s13, 1
    %p70 = por %p68, %p69
    %p71 = scmp.ne.s32.totalorder %s63, %s66
    %p72 = scmp.eq.s32.totalorder %s13, 0
    %p73 = por %p71, %p72
    %p74 = scmp.ne.s32.totalorder %s63, %s66
    %p75 = scmp.eq.s32.totalorder %s18, 1
    %p76 = por %p74, %p75
    %p77 = scmp.ne.s32.totalorder %s66, %s67
    %p78 = scmp.eq.s32.totalorder %s18, 0
    %p79 = por %p77, %p78
    %p80 = scmp.ne.s32.totalorder %s66, %s67
    %p81 = scmp.eq.s32.totalorder %s19, 1
    %p82 = por %p80, %p81
    %p84 = scmp.ne.s32.totalorder %s67, %s83
    %p85 = scmp.eq.s32.totalorder %s19, 0
    %p86 = por %p84, %p85
    %s87 = ssub.s32 %s20, %s32
    %p88 = scmp.eq.s32.totalorder %s87, 0
    %s90 = sadd.s32 %s89, 1
    %s91 = scalar_select %p88, %s89, %s90
    %p94 = pneg %p88
    %p95 = scmp.eq.s32.totalorder %s13, 1
    %p96 = por %p94, %p95
    %p97 = scmp.ne.s32.totalorder %s89, %s92
    %p98 = scmp.eq.s32.totalorder %s13, 0
    %p99 = por %p97, %p98
    %p100 = scmp.ne.s32.totalorder %s89, %s92
    %p101 = scmp.eq.s32.totalorder %s18, 1
    %p102 = por %p100, %p101
    %p103 = scmp.ne.s32.totalorder %s92, %s93
    %p104 = scmp.eq.s32.totalorder %s18, 0
    %p105 = por %p103, %p104
    %p106 = scmp.ne.s32.totalorder %s92, %s93
    %p107 = scmp.eq.s32.totalorder %s19, 1
    %p108 = por %p106, %p107
    %p110 = scmp.ne.s32.totalorder %s93, %s109
    %p111 = scmp.eq.s32.totalorder %s19, 0
    %p112 = por %p110, %p111
    %s114 = sadd.s32 %s113, 1
    %p117 = scmp.eq.s32.totalorder %s13, 1
    %p118 = scmp.ne.s32.totalorder %s113, %s115
    %p119 = scmp.eq.s32.totalorder %s13, 0
    %p120 = por %p118, %p119
    %p121 = scmp.ne.s32.totalorder %s113, %s115
    %p122 = scmp.eq.s32.totalorder %s18, 1
    %p123 = por %p121, %p122
    %p124 = scmp.ne.s32.totalorder %s115, %s116
    %p125 = scmp.eq.s32.totalorder %s18, 0
    %p126 = por %p124, %p125
    %p127 = scmp.ne.s32.totalorder %s115, %s116
    %p128 = scmp.eq.s32.totalorder %s19, 1
    %p129 = por %p127, %p128
    %p131 = scmp.ne.s32.totalorder %s116, %s130
    %p132 = scmp.eq.s32.totalorder %s19, 0
    %p133 = por %p131, %p132
    %s135 = sadd.s32 %s134, 1
    %p138 = scmp.eq.s32.totalorder %s13, 1
    %p139 = scmp.ne.s32.totalorder %s134, %s136
    %p140 = scmp.eq.s32.totalorder %s13, 0
    %p141 = por %p139, %p140
    %p142 = scmp.ne.s32.totalorder %s134, %s136
    %p143 = scmp.eq.s32.totalorder %s18, 1
    %p144 = por %p142, %p143
    %p145 = scmp.ne.s32.totalorder %s136, %s137
    %p146 = scmp.eq.s32.totalorder %s18, 0
    %p147 = por %p145, %p146
    %p148 = scmp.ne.s32.totalorder %s136, %s137
    %p149 = scmp.eq.s32.totalorder %s19, 1
    %p150 = por %p148, %p149
    %p152 = scmp.ne.s32.totalorder %s137, %s151
    %p153 = scmp.eq.s32.totalorder %s19, 0
    %p154 = por %p152, %p153
    %s155 = ssub.s32 %s20, %s32
    %s156 = ssub.s32 %s21, %s28
    %s157 = sor.u32 %s155, %s156
    %p158 = scmp.eq.s32.totalorder %s157, 0
    %s160 = sadd.s32 %s159, 1
    %s161 = scalar_select %p158, %s159, %s160
    %p164 = pneg %p158
    %p165 = scmp.eq.s32.totalorder %s13, 1
    %p166 = por %p164, %p165
    %p167 = scmp.ne.s32.totalorder %s159, %s162
    %p168 = scmp.eq.s32.totalorder %s13, 0
    %p169 = por %p167, %p168
    %p170 = scmp.ne.s32.totalorder %s159, %s162
    %p171 = scmp.eq.s32.totalorder %s18, 1
    %p172 = por %p170, %p171
    %p173 = scmp.ne.s32.totalorder %s162, %s163
    %p174 = scmp.eq.s32.totalorder %s18, 0
    %p175 = por %p173, %p174
    %p176 = scmp.ne.s32.totalorder %s162, %s163
    %p177 = scmp.eq.s32.totalorder %s19, 1
    %p178 = por %p176, %p177
    %p180 = scmp.ne.s32.totalorder %s163, %s179
    %p181 = scmp.eq.s32.totalorder %s19, 0
    %p182 = por %p180, %p181
    %p183 = scmp.le.s32.totalorder 1, %s13
    %p184 = scmp.lt.s32.totalorder %s13, 3
    %p185 = pnand %p183, %p184
    %p186 = pneg %p185
    // Predicated region
    $region9: #{dit_predictor_forward.29} parent=5 // pred_check
      _
    $region10: #{dit_predictor_forward.29} parent=5 // pred_check_branch
      %188 = sbr.rel (%p185) target = $region12
    $region11: #{dit_predictor_forward.29} parent=5 // pred_region
      %s189 = ssub.s32 %s13, 1
      // Predicated region
      $region13: #{dit_predictor_forward.29} parent=11 // pred_check
        %p190 = pneg %p126
      $region14: #{dit_predictor_forward.29} parent=11 // pred_check_branch
        %192 = sbr.rel (%p190) target = $region16
      $region15: #{dit_predictor_forward.29} parent=11 // pred_region
        _
      $region16: #{dit_predictor_forward.29} parent=11 // pred_fallthru
        _
      // Predicated region
      $region17: #{dit_predictor_forward.29} parent=11 // pred_check
        %p193 = pneg %p147
      $region18: #{dit_predictor_forward.29} parent=11 // pred_check_branch
        %195 = sbr.rel (%p193) target = $region20
      $region19: #{dit_predictor_forward.29} parent=11 // pred_region
        _
      $region20: #{dit_predictor_forward.29} parent=11 // pred_fallthru
        _
    $region12: #{dit_predictor_forward.29} parent=5 // pred_fallthru
      _
    %p196 = scmp.lt.s32.totalorder %s13, 2
    // Predicated region
    $region21: #{dit_predictor_forward.29} parent=5 // pred_check
      %p197 = pneg %p196
    $region22: #{dit_predictor_forward.29} parent=5 // pred_check_branch
      %199 = sbr.rel (%p197) target = $region24
    $region23: #{dit_predictor_forward.29} parent=5 // pred_region
      // Predicated region
      $region25: #{dit_predictor_forward.29} parent=23 // pred_check
        %p200 = pneg %p47
      $region26: #{dit_predictor_forward.29} parent=23 // pred_check_branch
        %202 = sbr.rel (%p200) target = $region28
      $region27: #{dit_predictor_forward.29} parent=23 // pred_region
        %p203 = scmp.lt.s32.totalorder %s20, 1
        %s204 = scalar_select %p203, %s20, 1
        %p205 = scmp.lt.s32.totalorder %s21, 0
        %s206 = scalar_select %p205, %s21, 0
        %s207 = sadd.s32 %s206, %s204
        %s208 = smul.addr %s207, 4
        %s209 = scalar_lea.vmem %s0, %s208
      $region28: #{dit_predictor_forward.29} parent=23 // pred_fallthru
        _
      // Predicated region
      $region29: #{dit_predictor_forward.29} parent=23 // pred_check
        %p210 = pneg %p73
      $region30: #{dit_predictor_forward.29} parent=23 // pred_check_branch
        %212 = sbr.rel (%p210) target = $region32
      $region31: #{dit_predictor_forward.29} parent=23 // pred_region
        %p213 = scmp.lt.s32.totalorder %s20, 1
        %s214 = scalar_select %p213, %s20, 1
        %s215 = scalar_lea.vmem %s1, %s214
      $region32: #{dit_predictor_forward.29} parent=23 // pred_fallthru
        _
      // Predicated region
      $region33: #{dit_predictor_forward.29} parent=23 // pred_check
        %p216 = pneg %p99
      $region34: #{dit_predictor_forward.29} parent=23 // pred_check_branch
        %218 = sbr.rel (%p216) target = $region36
      $region35: #{dit_predictor_forward.29} parent=23 // pred_region
        %p219 = scmp.lt.s32.totalorder %s20, 1
        %s220 = scalar_select %p219, %s20, 1
        %s221 = scalar_lea.vmem %s2, %s220
      $region36: #{dit_predictor_forward.29} parent=23 // pred_fallthru
        _
    $region24: #{dit_predictor_forward.29} parent=5 // pred_fallthru
      _
    %p222 = scmp.le.s32.totalorder 1, %s13
    %p223 = scmp.lt.s32.totalorder %s13, 3
    %p224 = pnand %p222, %p223
    %p225 = pneg %p224
    // Predicated region
    $region37: #{dit_predictor_forward.29} parent=5 // pred_check
      _
    $region38: #{dit_predictor_forward.29} parent=5 // pred_check_branch
      %227 = sbr.rel (%p224) target = $region40
    $region39: #{dit_predictor_forward.29} parent=5 // pred_region
      %s228 = ssub.s32 %s13, 1
      %p229 = scmp.lt.s32.totalorder %s22, 1
      %s230 = scalar_select %p229, %s22, 1
      %p231 = scmp.lt.s32.totalorder %s23, 0
      %s232 = scalar_select %p231, %s23, 0
      %s233 = sadd.s32 %s232, %s230
      %s234 = smul.addr %s233, 4
      %s235 = scalar_lea.vmem %s0, %s234
      %p236 = pneg %p53
      %p237 = pneg %p50
      %p238 = scmp.lt.s32.totalorder %s22, 1
      %s239 = scalar_select %p238, %s22, 1
      %s240 = scalar_lea.vmem %s1, %s239
      %p241 = pneg %p79
      %p242 = pneg %p76
      %p243 = scmp.lt.s32.totalorder %s22, 1
      %s244 = scalar_select %p243, %s22, 1
      %s245 = scalar_lea.vmem %s2, %s244
      %p246 = pneg %p105
      %p247 = pneg %p102
      %p248 = pneg %p126
      %p249 = pneg %p123
      %p250 = pneg %p147
      %p251 = pneg %p144
      %p252 = pneg %p175
      %p253 = pneg %p172
      %p254 = scmp.lt.s32.totalorder %s22, 1
      %s255 = scalar_select %p254, %s22, 1
      %p256 = scmp.lt.s32.totalorder %s23, 0
      %s257 = scalar_select %p256, %s23, 0
      %s258 = sadd.s32 %s257, %s255
      %s259 = smul.addr %s258, 8
      %s260 = scalar_lea.vmem %s5, %s259
      %p261 = scmp.lt.s32.totalorder %s22, 1
      %s262 = scalar_select %p261, %s22, 1
      %p263 = scmp.lt.s32.totalorder %s23, 0
      %s264 = scalar_select %p263, %s23, 0
      %s265 = sadd.s32 %s264, %s262
      %s266 = smul.addr %s265, 4
      %s267 = scalar_lea.vmem %s0, %s266
      %p268 = scmp.lt.s32.totalorder %s22, 1
      %s269 = scalar_select %p268, %s22, 1
      %s270 = scalar_lea.vmem %s1, %s269
      %p271 = scmp.lt.s32.totalorder %s22, 1
      %s272 = scalar_select %p271, %s22, 1
      %s273 = scalar_lea.vmem %s2, %s272
      %p274 = scmp.lt.s32.totalorder %s22, 1
      %s275 = scalar_select %p274, %s22, 1
      %p276 = scmp.lt.s32.totalorder %s23, 0
      %s277 = scalar_select %p276, %s23, 0
      %s278 = sadd.s32 %s277, %s275
      %s279 = smul.addr %s278, 8
      %s280 = scalar_lea.vmem %s5, %s279
      %v281 = vld [vmem:[%s267] sm:$0xf]
      %v282 = vunpack.c.l.bf16 %v281
      %vm283 = vcmask 261120
      %v284 = vsel %vm283, %v282, 0.0
      %285 = vadd.xlane.f32.xlu0 %v284
      %v286 = vpop.xlane.xlu0 %285
      %v287 = vrcp.pop 32.0
      %v288 = vmul.f32 %v286, %v287
      %v289 = vsub.f32 %v282, %v288
      %v290 = vmul.f32 %v289, %v289
      %v291 = vsel %vm283, %v290, 0.0
      %292 = vadd.xlane.f32.xlu0 %v291
      %v293 = vpop.xlane.xlu0 %292
      %v294 = vmul.f32 %v293, %v287
      %v295 = vadd.f32 %v294, 1e-06
      %v296 = vrsqrt.pop %v295
      %v297 = vmul.f32 %v289, %v296
      %v298 = vld [vmem:[%s273] sm:$0x1]
      %v299 = vunpack.c.l.bf16 %v298
      %v300 = vadd.f32 %v299, 1.0
      %v301 = vlaneseq
      %v302 = vshrl.u32 %v301, 7
      %v303 = vsub.s32 0, %v302
      %v304 = vrot.slane %v300, %v303
      %v305 = vmul.f32 %v297, %v304
      %v306 = vld [vmem:[%s270] sm:$0x1]
      %v307 = vunpack.c.l.bf16 %v306
      %v308 = vlaneseq
      %v309 = vshrl.u32 %v308, 7
      %v310 = vsub.s32 0, %v309
      %v311 = vrot.slane %v307, %v310
      %v312 = vadd.f32 %v305, %v311
      %v313 = vld [vmem:[%s3] sm:$0x1]
      %v315 = vlaneseq
      %v316 = vshrl.u32 %v315, 7
      %v317 = vsub.s32 0, %v316
      %v318 = vrot.slane %v313, %v317
      %v320 = vmul.f32 %v312, %v318
      %v321 = vsel %vm283, %v320, 0.0
      %322 = vadd.xlane.f32.xlu0 %v321
      %v323 = vpop.xlane.xlu0 %322
      %v324 = vld [vmem:[#allocation2] sm:$0x1]
      %s325 = vtos %v324
      %v326 = vstv %s325
      %v327 = vadd.f32 %v323, %v326
      %vm328 = vcmask 7168
      %329 = vst.msk [vmem:[%s280] sm:$0xff] %vm328, %v327
      %p330 = scmp.lt.s32.totalorder %s22, 1
      %s331 = scalar_select %p330, %s22, 1
      %p332 = scmp.lt.s32.totalorder %s23, 0
      %s333 = scalar_select %p332, %s23, 0
      %s334 = sadd.s32 %s333, %s331
      %s335 = smul.addr %s334, 8
      %s336 = scalar_lea.vmem %s5, %s335
      // Predicated region
      $region41: #{dit_predictor_forward.29} parent=39 // pred_check
        %p337 = pneg %p172
      $region42: #{dit_predictor_forward.29} parent=39 // pred_check_branch
        %339 = sbr.rel (%p337) target = $region44
      $region43: #{dit_predictor_forward.29} parent=39 // pred_region
        _
      $region44: #{dit_predictor_forward.29} parent=39 // pred_fallthru
        _
    $region40: #{dit_predictor_forward.29} parent=5 // pred_fallthru
      _
    %p340 = scmp.le.s32.totalorder 2, %s13
    // Predicated region
    $region45: #{dit_predictor_forward.29} parent=5 // pred_check
      %p341 = pneg %p340
    $region46: #{dit_predictor_forward.29} parent=5 // pred_check_branch
      %343 = sbr.rel (%p341) target = $region48
    $region47: #{dit_predictor_forward.29} parent=5 // pred_region
      %s344 = ssub.s32 %s13, 2
      // Predicated region
      $region49: #{dit_predictor_forward.29} parent=47 // pred_check
        %p345 = pneg %p178
      $region50: #{dit_predictor_forward.29} parent=47 // pred_check_branch
        %347 = sbr.rel (%p345) target = $region52
      $region51: #{dit_predictor_forward.29} parent=47 // pred_region
        %p348 = scmp.lt.s32.totalorder %s24, 1
        %s349 = scalar_select %p348, %s24, 1
        %p350 = scmp.lt.s32.totalorder %s25, 0
        %s351 = scalar_select %p350, %s25, 0
        %s352 = sadd.s32 %s351, %s349
        %s353 = smul.addr %s352, 8
        %s354 = scalar_lea.vmem %s5, %s353
      $region52: #{dit_predictor_forward.29} parent=47 // pred_fallthru
        _
    $region48: #{dit_predictor_forward.29} parent=5 // pred_fallthru
      _
  $region6: #{dit_predictor_forward.29} parent=0 // loop_footer
    %s17 = sadd.s32 1, %s13
  $region7: #{dit_predictor_forward.29} parent=0 // loop_footer_branch
    %12 = sbr.rel target = $region3
  $region8: #{dit_predictor_forward.29} parent=0 // loop_exit
    _

</llo_original>
